<compile_context>
chip_gen: v7x
topology: tpu7x:2x2x1
jax: 0.10.0
libtpu: 0.0.40
codegen_flags: <defaults>
</compile_context>

<pallas_src>
import jax
import jax.numpy as jnp
from jax.experimental import pallas as pl
from jax.experimental.pallas import tpu as pltpu

LATENT_DIM = 100
LATENT_PADDED = 128    # zero-pad K of the first matmul to a clean lane tile
OUT_DIM = 784          # 28 * 28
EPS = 1e-5


def _generator_kernel(z_ref,
                      w1_ref, b1_ref,
                      w2_ref, g2_ref, beta2_ref,
                      w3_ref, g3_ref, beta3_ref,
                      w4_hbm_ref, b4_ref,
                      out_ref,
                      w4_vmem, w4_sem):
    # Start the layer-4 weight fetch immediately so it overlaps with layers 1-3.
    w4_copy = pltpu.make_async_copy(w4_hbm_ref, w4_vmem, w4_sem)
    w4_copy.start()

    z = z_ref[...]                                              # (B, 128) f32

    # --- Linear(100 -> 128, K zero-padded to 128) + ReLU --------------------
    h1 = jnp.dot(z.astype(jnp.bfloat16), w1_ref[...],
                 preferred_element_type=jnp.float32)
    h1 = jnp.maximum(h1 + b1_ref[...], 0.0)

    # --- Linear(128 -> 256) + BatchNorm1d(256) + ReLU -----------------------
    # Linear bias dropped: cancelled exactly by the BN mean subtraction.
    h2 = jnp.dot(h1.astype(jnp.bfloat16), w2_ref[...],
                 preferred_element_type=jnp.float32)
    mu2 = jnp.mean(h2, axis=0, keepdims=True)
    hc2 = h2 - mu2                                              # hoisted once
    var2 = jnp.mean(hc2 * hc2, axis=0, keepdims=True)           # biased var
    h2 = jnp.maximum(hc2 * jax.lax.rsqrt(var2 + EPS) * g2_ref[...]
                     + beta2_ref[...], 0.0)

    # --- Linear(256 -> 512) + BatchNorm1d(512) + ReLU -----------------------
    h3 = jnp.dot(h2.astype(jnp.bfloat16), w3_ref[...],
                 preferred_element_type=jnp.float32)
    mu3 = jnp.mean(h3, axis=0, keepdims=True)
    hc3 = h3 - mu3
    var3 = jnp.mean(hc3 * hc3, axis=0, keepdims=True)
    h3 = jnp.maximum(hc3 * jax.lax.rsqrt(var3 + EPS) * g3_ref[...]
                     + beta3_ref[...], 0.0)

    # --- Linear(512 -> 784) + Tanh -------------------------------------------
    w4_copy.wait()
    h4 = jnp.dot(h3.astype(jnp.bfloat16), w4_vmem[...],
                 preferred_element_type=jnp.float32)
    out_ref[...] = jnp.tanh(h4 + b4_ref[...])                   # (B, 784) f32


def init_params(key):
    """Deterministic synthetic f32 parameters, PyTorch-default shapes/init."""
    ks = jax.random.split(key, 8)

    def lin(kw, kb, fan_in, fan_out):
        bound = 1.0 / jnp.sqrt(float(fan_in))
        w = jax.random.uniform(kw, (fan_in, fan_out), jnp.float32, -bound, bound)
        b = jax.random.uniform(kb, (1, fan_out), jnp.float32, -bound, bound)
        return w, b

    w1, b1 = lin(ks[0], ks[1], LATENT_DIM, 128)
    w2, b2 = lin(ks[2], ks[3], 128, 256)
    w3, b3 = lin(ks[4], ks[5], 256, 512)
    w4, b4 = lin(ks[6], ks[7], 512, OUT_DIM)

    g2 = jnp.ones((1, 256), jnp.float32)
    beta2 = jnp.zeros((1, 256), jnp.float32)
    g3 = jnp.ones((1, 512), jnp.float32)
    beta3 = jnp.zeros((1, 512), jnp.float32)

    return dict(w1=w1, b1=b1, w2=w2, b2=b2, g2=g2, beta2=beta2,
                w3=w3, b3=b3, g3=g3, beta3=beta3, w4=w4, b4=b4)


def prepare_params(params):
    """Kernel-ready params: bf16 weights, K-padded w1, b2/b3 dropped (dead)."""
    w1p = jnp.pad(params["w1"], ((0, LATENT_PADDED - LATENT_DIM), (0, 0)))
    return dict(
        w1=w1p.astype(jnp.bfloat16), b1=params["b1"],
        w2=params["w2"].astype(jnp.bfloat16),
        g2=params["g2"], beta2=params["beta2"],
        w3=params["w3"].astype(jnp.bfloat16),
        g3=params["g3"], beta3=params["beta3"],
        w4=params["w4"].astype(jnp.bfloat16), b4=params["b4"],
    )


def generator_forward(z, kparams):
    """z: (B, latent_dim) f32 -> img: (B, 1, 28, 28) f32 (PyTorch NCHW view)."""
    B = z.shape[0]
    z_p = jnp.pad(z, ((0, 0), (0, LATENT_PADDED - LATENT_DIM)))

    args = (z_p,
            kparams["w1"], kparams["b1"],
            kparams["w2"], kparams["g2"], kparams["beta2"],
            kparams["w3"], kparams["g3"], kparams["beta3"],
            kparams["w4"], kparams["b4"])

    vmem = pl.BlockSpec(memory_space=pltpu.MemorySpace.VMEM)
    any_spec = pl.BlockSpec(memory_space=pl.ANY)        # w4: manual async DMA
    in_specs = [vmem] * 9 + [any_spec, vmem]

    flat = pl.pallas_call(
        _generator_kernel,
        out_shape=jax.ShapeDtypeStruct((B, OUT_DIM), jnp.float32),
        in_specs=in_specs,
        out_specs=vmem,
        scratch_shapes=[pltpu.VMEM((512, OUT_DIM), jnp.bfloat16),
                        pltpu.SemaphoreType.DMA(())],
        # ~1.2 MiB bf16 weights + small activations; 32 MiB leaves plenty of
        # headroom and is safe on v7x (64 MiB physical VMEM per TC).
        compiler_params=pltpu.CompilerParams(vmem_limit_bytes=32 << 20),
    )(*args)

    # Contiguous reshape == PyTorch img.view(B, 1, 28, 28): no extra HBM pass.
    return flat.reshape(B, 1, 28, 28)


def _reference_forward_bf16(z, params):
    """Pure-JAX reference mirroring the kernel's bf16-dot / f32 math exactly
    (including the dropped pre-BN biases)."""
    def bdot(a, w):
        return jnp.dot(a.astype(jnp.bfloat16), w.astype(jnp.bfloat16),
                       preferred_element_type=jnp.float32)

    h = jnp.maximum(bdot(z, params["w1"]) + params["b1"], 0.0)

    h = bdot(h, params["w2"])
    mu = jnp.mean(h, axis=0, keepdims=True)
    hc = h - mu
    var = jnp.mean(hc * hc, axis=0, keepdims=True)
    h = jnp.maximum(hc * jax.lax.rsqrt(var + EPS) * params["g2"]
                    + params["beta2"], 0.0)

    h = bdot(h, params["w3"])
    mu = jnp.mean(h, axis=0, keepdims=True)
    hc = h - mu
    var = jnp.mean(hc * hc, axis=0, keepdims=True)
    h = jnp.maximum(hc * jax.lax.rsqrt(var + EPS) * params["g3"]
                    + params["beta3"], 0.0)

    h = jnp.tanh(bdot(h, params["w4"]) + params["b4"])
    return h.reshape(z.shape[0], 1, 28, 28)


def _reference_forward_f32(z, params):
    """Full-precision reference matching the original PyTorch module math
    (biases included -- they cancel inside BatchNorm up to rounding)."""
    h = jnp.maximum(z @ params["w1"] + params["b1"], 0.0)

    h = h @ params["w2"] + params["b2"]
    mu = jnp.mean(h, axis=0, keepdims=True)
    var = jnp.mean((h - mu) ** 2, axis=0, keepdims=True)
    h = jnp.maximum((h - mu) / jnp.sqrt(var + EPS) * params["g2"]
                    + params["beta2"], 0.0)

    h = h @ params["w3"] + params["b3"]
    mu = jnp.mean(h, axis=0, keepdims=True)
    var = jnp.mean((h - mu) ** 2, axis=0, keepdims=True)
    h = jnp.maximum((h - mu) / jnp.sqrt(var + EPS) * params["g3"]
                    + params["beta3"], 0.0)

    h = jnp.tanh(h @ params["w4"] + params["b4"])
    return h.reshape(z.shape[0], 1, 28, 28)


if __name__ == "__main__":
    key = jax.random.PRNGKey(0)
    k_params, k_z = jax.random.split(key)

    B = 8
    params = init_params(k_params)
    kparams = prepare_params(params)
    z = jax.random.normal(k_z, (B, LATENT_DIM), jnp.float32)

    img = generator_forward(z, kparams)
    jax.block_until_ready(img)
    assert img.shape == (B, 1, 28, 28)

    # Tight check against a reference doing the same bf16-dot / f32 math.
    ref_bf16 = _reference_forward_bf16(z, params)
    assert jnp.allclose(img, ref_bf16, atol=5e-3, rtol=5e-3), \
        float(jnp.max(jnp.abs(img - ref_bf16)))

    # Loose semantic check against the original full-f32 module math
    # (bf16 matmul inputs introduce ~1e-3 relative error per layer).
    ref_f32 = _reference_forward_f32(z, params)
    assert jnp.allclose(img, ref_f32, atol=5e-2, rtol=5e-2), \
        float(jnp.max(jnp.abs(img - ref_f32)))

    print("KERNEL_OK")
</pallas_src>

<mosaic_0001>
module attributes {stable_mosaic.version = 11 : i64} {
  func.func @_generator_kernel(%arg0: memref<8x128xf32, #tpu.memory_space<vmem>>, %arg1: memref<128x128xbf16, #tpu.memory_space<vmem>>, %arg2: memref<1x128xf32, #tpu.memory_space<vmem>>, %arg3: memref<128x256xbf16, #tpu.memory_space<vmem>>, %arg4: memref<1x256xf32, #tpu.memory_space<vmem>>, %arg5: memref<1x256xf32, #tpu.memory_space<vmem>>, %arg6: memref<256x512xbf16, #tpu.memory_space<vmem>>, %arg7: memref<1x512xf32, #tpu.memory_space<vmem>>, %arg8: memref<1x512xf32, #tpu.memory_space<vmem>>, %arg9: memref<512x784xbf16, #tpu.memory_space<any>>, %arg10: memref<1x784xf32, #tpu.memory_space<vmem>>, %arg11: memref<8x784xf32, #tpu.memory_space<vmem>>, %arg12: memref<512x784xbf16, #tpu.memory_space<vmem>>, %arg13: memref<!tpu.dma_semaphore, #tpu.memory_space<semaphore_mem>>) attributes {dimension_semantics = [], scalar_prefetch = 0 : i64, scratch_operands = 2 : i64, tpu.core_type = #tpu.core_type<tc>} {
    tpu.enqueue_dma source(%arg9 : memref<512x784xbf16, #tpu.memory_space<any>>) target(%arg12 : memref<512x784xbf16, #tpu.memory_space<vmem>>) target_semaphore(%arg13 : memref<!tpu.dma_semaphore, #tpu.memory_space<semaphore_mem>>)
    %c0 = arith.constant 0 : index
    %c0_0 = arith.constant 0 : index
    %0 = vector.load %arg0[%c0, %c0_0] : memref<8x128xf32, #tpu.memory_space<vmem>>, vector<8x128xf32>
    %1 = arith.truncf %0 : vector<8x128xf32> to vector<8x128xbf16>
    %c0_1 = arith.constant 0 : index
    %c0_2 = arith.constant 0 : index
    %2 = vector.load %arg1[%c0_1, %c0_2] : memref<128x128xbf16, #tpu.memory_space<vmem>>, vector<128x128xbf16>
    %cst = arith.constant dense<0.000000e+00> : vector<8x128xf32>
    %3 = tpu.matmul %1, %2, %cst {dimension_numbers = #tpu.dot_dimension_numbers<[1], [0], [0], [1], [0, 0, 1, 1], [], []>} : vector<8x128xbf16>, vector<128x128xbf16>, vector<8x128xf32> -> vector<8x128xf32>
    %c0_3 = arith.constant 0 : index
    %c0_4 = arith.constant 0 : index
    %4 = vector.load %arg2[%c0_3, %c0_4] : memref<1x128xf32, #tpu.memory_space<vmem>>, vector<1x128xf32>
    %5 = vector.broadcast %4 : vector<1x128xf32> to vector<8x128xf32>
    %6 = arith.addf %3, %5 : vector<8x128xf32>
    %cst_5 = arith.constant 0.000000e+00 : f32
    %7 = vector.broadcast %cst_5 : f32 to vector<8x128xf32>
    %8 = arith.maximumf %6, %7 : vector<8x128xf32>
    %9 = arith.truncf %8 : vector<8x128xf32> to vector<8x128xbf16>
    %c0_6 = arith.constant 0 : index
    %c0_7 = arith.constant 0 : index
    %10 = vector.load %arg3[%c0_6, %c0_7] : memref<128x256xbf16, #tpu.memory_space<vmem>>, vector<128x256xbf16>
    %cst_8 = arith.constant dense<0.000000e+00> : vector<8x256xf32>
    %11 = tpu.matmul %9, %10, %cst_8 {dimension_numbers = #tpu.dot_dimension_numbers<[1], [0], [0], [1], [0, 0, 1, 1], [], []>} : vector<8x128xbf16>, vector<128x256xbf16>, vector<8x256xf32> -> vector<8x256xf32>
    %cst_9 = arith.constant dense<0.000000e+00> : vector<256xf32>
    %12 = vector.multi_reduction <add>, %11, %cst_9 [0] : vector<8x256xf32> to vector<256xf32>
    %13 = vector.shape_cast %12 : vector<256xf32> to vector<1x256xf32>
    %cst_10 = arith.constant 8.000000e+00 : f32
    %14 = vector.broadcast %cst_10 : f32 to vector<1x256xf32>
    %15 = arith.divf %13, %14 : vector<1x256xf32>
    %16 = vector.broadcast %15 : vector<1x256xf32> to vector<8x256xf32>
    %17 = arith.subf %11, %16 : vector<8x256xf32>
    %18 = arith.mulf %17, %17 : vector<8x256xf32>
    %cst_11 = arith.constant dense<0.000000e+00> : vector<256xf32>
    %19 = vector.multi_reduction <add>, %18, %cst_11 [0] : vector<8x256xf32> to vector<256xf32>
    %20 = vector.shape_cast %19 : vector<256xf32> to vector<1x256xf32>
    %cst_12 = arith.constant 8.000000e+00 : f32
    %21 = vector.broadcast %cst_12 : f32 to vector<1x256xf32>
    %22 = arith.divf %20, %21 : vector<1x256xf32>
    %cst_13 = arith.constant 9.99999974E-6 : f32
    %23 = vector.broadcast %cst_13 : f32 to vector<1x256xf32>
    %24 = arith.addf %22, %23 : vector<1x256xf32>
    %25 = math.rsqrt %24 : vector<1x256xf32>
    %26 = vector.broadcast %25 : vector<1x256xf32> to vector<8x256xf32>
    %27 = arith.mulf %17, %26 : vector<8x256xf32>
    %c0_14 = arith.constant 0 : index
    %c0_15 = arith.constant 0 : index
    %28 = vector.load %arg4[%c0_14, %c0_15] : memref<1x256xf32, #tpu.memory_space<vmem>>, vector<1x256xf32>
    %29 = vector.broadcast %28 : vector<1x256xf32> to vector<8x256xf32>
    %30 = arith.mulf %27, %29 : vector<8x256xf32>
    %c0_16 = arith.constant 0 : index
    %c0_17 = arith.constant 0 : index
    %31 = vector.load %arg5[%c0_16, %c0_17] : memref<1x256xf32, #tpu.memory_space<vmem>>, vector<1x256xf32>
    %32 = vector.broadcast %31 : vector<1x256xf32> to vector<8x256xf32>
    %33 = arith.addf %30, %32 : vector<8x256xf32>
    %cst_18 = arith.constant 0.000000e+00 : f32
    %34 = vector.broadcast %cst_18 : f32 to vector<8x256xf32>
    %35 = arith.maximumf %33, %34 : vector<8x256xf32>
    %36 = arith.truncf %35 : vector<8x256xf32> to vector<8x256xbf16>
    %c0_19 = arith.constant 0 : index
    %c0_20 = arith.constant 0 : index
    %37 = vector.load %arg6[%c0_19, %c0_20] : memref<256x512xbf16, #tpu.memory_space<vmem>>, vector<256x512xbf16>
    %cst_21 = arith.constant dense<0.000000e+00> : vector<8x512xf32>
    %38 = tpu.matmul %36, %37, %cst_21 {dimension_numbers = #tpu.dot_dimension_numbers<[1], [0], [0], [1], [0, 0, 1, 1], [], []>} : vector<8x256xbf16>, vector<256x512xbf16>, vector<8x512xf32> -> vector<8x512xf32>
    %cst_22 = arith.constant dense<0.000000e+00> : vector<512xf32>
    %39 = vector.multi_reduction <add>, %38, %cst_22 [0] : vector<8x512xf32> to vector<512xf32>
    %40 = vector.shape_cast %39 : vector<512xf32> to vector<1x512xf32>
    %cst_23 = arith.constant 8.000000e+00 : f32
    %41 = vector.broadcast %cst_23 : f32 to vector<1x512xf32>
    %42 = arith.divf %40, %41 : vector<1x512xf32>
    %43 = vector.broadcast %42 : vector<1x512xf32> to vector<8x512xf32>
    %44 = arith.subf %38, %43 : vector<8x512xf32>
    %45 = arith.mulf %44, %44 : vector<8x512xf32>
    %cst_24 = arith.constant dense<0.000000e+00> : vector<512xf32>
    %46 = vector.multi_reduction <add>, %45, %cst_24 [0] : vector<8x512xf32> to vector<512xf32>
    %47 = vector.shape_cast %46 : vector<512xf32> to vector<1x512xf32>
    %cst_25 = arith.constant 8.000000e+00 : f32
    %48 = vector.broadcast %cst_25 : f32 to vector<1x512xf32>
    %49 = arith.divf %47, %48 : vector<1x512xf32>
    %cst_26 = arith.constant 9.99999974E-6 : f32
    %50 = vector.broadcast %cst_26 : f32 to vector<1x512xf32>
    %51 = arith.addf %49, %50 : vector<1x512xf32>
    %52 = math.rsqrt %51 : vector<1x512xf32>
    %53 = vector.broadcast %52 : vector<1x512xf32> to vector<8x512xf32>
    %54 = arith.mulf %44, %53 : vector<8x512xf32>
    %c0_27 = arith.constant 0 : index
    %c0_28 = arith.constant 0 : index
    %55 = vector.load %arg7[%c0_27, %c0_28] : memref<1x512xf32, #tpu.memory_space<vmem>>, vector<1x512xf32>
    %56 = vector.broadcast %55 : vector<1x512xf32> to vector<8x512xf32>
    %57 = arith.mulf %54, %56 : vector<8x512xf32>
    %c0_29 = arith.constant 0 : index
    %c0_30 = arith.constant 0 : index
    %58 = vector.load %arg8[%c0_29, %c0_30] : memref<1x512xf32, #tpu.memory_space<vmem>>, vector<1x512xf32>
    %59 = vector.broadcast %58 : vector<1x512xf32> to vector<8x512xf32>
    %60 = arith.addf %57, %59 : vector<8x512xf32>
    %cst_31 = arith.constant 0.000000e+00 : f32
    %61 = vector.broadcast %cst_31 : f32 to vector<8x512xf32>
    %62 = arith.maximumf %60, %61 : vector<8x512xf32>
    tpu.wait_dma2 semaphore(%arg13 : memref<!tpu.dma_semaphore, #tpu.memory_space<semaphore_mem>>) src(%arg9 : memref<512x784xbf16, #tpu.memory_space<any>>) dst(%arg12 : memref<512x784xbf16, #tpu.memory_space<vmem>>)
    %63 = arith.truncf %62 : vector<8x512xf32> to vector<8x512xbf16>
    %c0_32 = arith.constant 0 : index
    %c0_33 = arith.constant 0 : index
    %64 = vector.load %arg12[%c0_32, %c0_33] : memref<512x784xbf16, #tpu.memory_space<vmem>>, vector<512x784xbf16>
    %cst_34 = arith.constant dense<0.000000e+00> : vector<8x784xf32>
    %65 = tpu.matmul %63, %64, %cst_34 {dimension_numbers = #tpu.dot_dimension_numbers<[1], [0], [0], [1], [0, 0, 1, 1], [], []>} : vector<8x512xbf16>, vector<512x784xbf16>, vector<8x784xf32> -> vector<8x784xf32>
    %c0_35 = arith.constant 0 : index
    %c0_36 = arith.constant 0 : index
    %66 = vector.load %arg10[%c0_35, %c0_36] : memref<1x784xf32, #tpu.memory_space<vmem>>, vector<1x784xf32>
    %67 = vector.broadcast %66 : vector<1x784xf32> to vector<8x784xf32>
    %68 = arith.addf %65, %67 : vector<8x784xf32>
    %69 = math.tanh %68 : vector<8x784xf32>
    %c0_37 = arith.constant 0 : index
    %c0_38 = arith.constant 0 : index
    %70 = vector.load %arg11[%c0_37, %c0_38] : memref<8x784xf32, #tpu.memory_space<vmem>>, vector<8x784xf32>
    tpu.vector_store %arg11[%c0_37, %c0_38], %69 {strides = array<i32>} : memref<8x784xf32, #tpu.memory_space<vmem>>, vector<8x784xf32>,
    return
  }
}

</mosaic_0001>

<llo_original>
// kernel: tpu_custom_call.1
$region0: #{tpu_custom_call.1}
  #allocation0 [shape = 'u32[]', space=smem, size = 0x4, offset = 0x4, fixed_abs, tag = 'smem constant byte address 0x4 - core index']
  #allocation1 [shape = 'u32[144,128]{1,0:T(1,128)}', space=vmem, size = 0x12000, scoped, tag = 'internal scratch']
  #allocation2 [shape = 'bf16[512,784]{1,0:T(16,128)(2,1)}', space=vmem, size = 0xe0000, scoped, tag = 'scratch operand']
  #allocation3 [shape = 's32[1]{0}', space=sflag, size = 0x4, scoped, tag = 'scratch operand']
  #allocation6 [shape = 's32[]', space=sflag, size = 0x4, offset = 0, fixed_abs, tag = 'sflag constant byte address 0x0 - dummy sync flag']
  %s0 = inlined_call_operand.vmem [shape: f32[8,128], index: 0, kind: input, shape index: {}]
  %s1 = inlined_call_operand.vmem [shape: bf16[128,128], index: 1, kind: input, shape index: {}]
  %s2 = inlined_call_operand.vmem [shape: f32[1,128], index: 2, kind: input, shape index: {}]
  %s3 = inlined_call_operand.vmem [shape: bf16[128,256], index: 3, kind: input, shape index: {}]
  %s4 = inlined_call_operand.vmem [shape: f32[1,256], index: 4, kind: input, shape index: {}]
  %s5 = inlined_call_operand.vmem [shape: f32[1,256], index: 5, kind: input, shape index: {}]
  %s6 = inlined_call_operand.vmem [shape: bf16[256,512], index: 6, kind: input, shape index: {}]
  %s7 = inlined_call_operand.vmem [shape: f32[1,512], index: 7, kind: input, shape index: {}]
  %s8 = inlined_call_operand.vmem [shape: f32[1,512], index: 8, kind: input, shape index: {}]
  %s9 = inlined_call_operand.vmem [shape: bf16[512,784], index: 9, kind: input, shape index: {}]
  %s10 = inlined_call_operand.vmem [shape: f32[1,784], index: 10, kind: input, shape index: {}]
  %s11 = inlined_call_operand.hbm [shape: f32[8,784], index: 11, kind: output, shape index: {}]
  %s12 = sld [smem:[#allocation0]]
  $region87: #{tpu_custom_call.1} parent=0
    _
  %s14 = ssub.s32 1, %s12
  %s15 = scalar_select 0, %s14, %s12
  $region1: #{tpu_custom_call.1} parent=0
    #allocation4 [shape = 'u8[28672]{0}', space=vmem, size = 0x7000, scoped, tag = 'output window, operand 0, single buffered']
    #allocation5 [shape = 's32[1]{0}', space=sflag, size = 0x4, scoped, tag = 'scoped memory for tpu_custom_call.1']
    %16 = vsyncpa [#allocation5], 0
    // Predicated region
    $region2: #{tpu_custom_call.1} parent=1 // pred_check
      _
    $region3: #{tpu_custom_call.1} parent=1 // pred_check_branch
      %18 = sbr.rel (0) target = $region5
    $region4: #{tpu_custom_call.1} parent=1 // pred_region
      _
    $region5: #{tpu_custom_call.1} parent=1 // pred_fallthru
      _
    // Predicated region
    $region6: #{tpu_custom_call.1} parent=1 // pred_check
      _
    $region7: #{tpu_custom_call.1} parent=1 // pred_check_branch
      %20 = sbr.rel (0) target = $region9
    $region8: #{tpu_custom_call.1} parent=1 // pred_region
      _
    $region9: #{tpu_custom_call.1} parent=1 // pred_fallthru
      _
    // Predicated region
    $region10: #{tpu_custom_call.1} parent=1 // pred_check
      _
    $region11: #{tpu_custom_call.1} parent=1 // pred_check_branch
      %22 = sbr.rel (0) target = $region13
    $region12: #{tpu_custom_call.1} parent=1 // pred_region
      _
    $region13: #{tpu_custom_call.1} parent=1 // pred_fallthru
      _
    // Predicated region
    $region14: #{tpu_custom_call.1} parent=1 // pred_check
      _
    $region15: #{tpu_custom_call.1} parent=1 // pred_check_branch
      %24 = sbr.rel (0) target = $region17
    $region16: #{tpu_custom_call.1} parent=1 // pred_region
      _
    $region17: #{tpu_custom_call.1} parent=1 // pred_fallthru
      _
    // Predicated region
    $region18: #{tpu_custom_call.1} parent=1 // pred_check
      _
    $region19: #{tpu_custom_call.1} parent=1 // pred_check_branch
      %26 = sbr.rel (0) target = $region21
    $region20: #{tpu_custom_call.1} parent=1 // pred_region
      _
    $region21: #{tpu_custom_call.1} parent=1 // pred_fallthru
      _
    // Predicated region
    $region22: #{tpu_custom_call.1} parent=1 // pred_check
      _
    $region23: #{tpu_custom_call.1} parent=1 // pred_check_branch
      %28 = sbr.rel (0) target = $region25
    $region24: #{tpu_custom_call.1} parent=1 // pred_region
      _
    $region25: #{tpu_custom_call.1} parent=1 // pred_fallthru
      _
    // Predicated region
    $region26: #{tpu_custom_call.1} parent=1 // pred_check
      _
    $region27: #{tpu_custom_call.1} parent=1 // pred_check_branch
      %30 = sbr.rel (0) target = $region29
    $region28: #{tpu_custom_call.1} parent=1 // pred_region
      _
    $region29: #{tpu_custom_call.1} parent=1 // pred_fallthru
      _
    // Predicated region
    $region30: #{tpu_custom_call.1} parent=1 // pred_check
      _
    $region31: #{tpu_custom_call.1} parent=1 // pred_check_branch
      %32 = sbr.rel (0) target = $region33
    $region32: #{tpu_custom_call.1} parent=1 // pred_region
      _
    $region33: #{tpu_custom_call.1} parent=1 // pred_fallthru
      _
    // Predicated region
    $region34: #{tpu_custom_call.1} parent=1 // pred_check
      _
    $region35: #{tpu_custom_call.1} parent=1 // pred_check_branch
      %34 = sbr.rel (0) target = $region37
    $region36: #{tpu_custom_call.1} parent=1 // pred_region
      _
    $region37: #{tpu_custom_call.1} parent=1 // pred_fallthru
      _
    // Predicated region
    $region38: #{tpu_custom_call.1} parent=1 // pred_check
      _
    $region39: #{tpu_custom_call.1} parent=1 // pred_check_branch
      %36 = sbr.rel (0) target = $region41
    $region40: #{tpu_custom_call.1} parent=1 // pred_region
      _
    $region41: #{tpu_custom_call.1} parent=1 // pred_fallthru
      _
    %p39 = scmp.lt.u32.totalorder 4, 8
    %p40 = pneg %p39
    // Predicated region
    $region42: #{tpu_custom_call.1} parent=1 // pred_check
      _
    $region43: #{tpu_custom_call.1} parent=1 // pred_check_branch
      %42 = sbr.rel (%p39) target = $region45
    $region44: #{tpu_custom_call.1} parent=1 // pred_region
      %s951 = sand.u32 4, 7
      %p952 = scmp.eq.s32.totalorder %s951, 0
      %p953 = pneg %p952
      // Predicated region
      $region57: #{tpu_custom_call.1} parent=44 // pred_check
        _
      $region58: #{tpu_custom_call.1} parent=44 // pred_check_branch
        %955 = sbr.rel (%p952) target = $region60
      $region59: #{tpu_custom_call.1} parent=44 // pred_region
        %s956 = sand.u32 4, 7
        %s957 = ssub.s32 4, %s956
        %s958 = scalar_lea.vmem %s9, %s957
        %s959 = ssub.s32 4, %s956
        %s960 = scalar_lea.vmem [#allocation2], %s959
        loop: start=0, step=1, limit=1
        $region61: #{tpu_custom_call.1} parent=59 // loop_pre_header
          _
        $region62: #{tpu_custom_call.1} parent=59 // loop_header
          %s962 = sphi 0, %s966
          %p963 = scmp.ge.s32.totalorder %s962, 1
          %s967 = sphi %s9, %s9
          %s968 = sphi [#allocation2], [#allocation2]
        $region63: #{tpu_custom_call.1} parent=59 // loop_header_branch
          %965 = sbr.rel (%p963) target = $region67
        $region64: #{tpu_custom_call.1} parent=59 // loop_body
          _
        $region65: #{tpu_custom_call.1} parent=59 // loop_footer
          %s966 = sadd.s32 1, %s962
        $region66: #{tpu_custom_call.1} parent=59 // loop_footer_branch
          %961 = sbr.rel target = $region62
        $region67: #{tpu_custom_call.1} parent=59 // loop_exit
          _
        %s969 = sshllo.u32 0, %s956
        loop: start=0, step=1, limit=1
        $region68: #{tpu_custom_call.1} parent=59 // loop_pre_header
          _
        $region69: #{tpu_custom_call.1} parent=59 // loop_header
          %s971 = sphi 0, %s975
          %p972 = scmp.ge.s32.totalorder %s971, 1
          %s976 = sphi %s958, %s958
          %s977 = sphi %s960, %s960
        $region70: #{tpu_custom_call.1} parent=59 // loop_header_branch
          %974 = sbr.rel (%p972) target = $region74
        $region71: #{tpu_custom_call.1} parent=59 // loop_body
          %v978 = vld [vmem:[%s976] sm:%s969]
          %979 = vst [vmem:[%s977] sm:%s969] %v978
          %v980 = vld [vmem:[%s976 + $0x1c] sm:%s969]
          %981 = vst [vmem:[%s977 + $0x4] sm:%s969] %v980
          %v982 = vld [vmem:[%s976 + $0x4] sm:%s969]
          %983 = vst [vmem:[%s977 + $0x8] sm:%s969] %v982
          %v984 = vld [vmem:[%s976 + $0x20] sm:%s969]
          %985 = vst [vmem:[%s977 + $0xc] sm:%s969] %v984
          %v986 = vld [vmem:[%s976 + $0x8] sm:%s969]
          %987 = vst [vmem:[%s977 + $0x10] sm:%s969] %v986
          %v988 = vld [vmem:[%s976 + $0x24] sm:%s969]
          %989 = vst [vmem:[%s977 + $0x14] sm:%s969] %v988
          %v990 = vld [vmem:[%s976 + $0xc] sm:%s969]
          %991 = vst [vmem:[%s977 + $0x18] sm:%s969] %v990
          %v992 = vld [vmem:[%s976 + $0x28] sm:%s969]
          %993 = vst [vmem:[%s977 + $0x1c] sm:%s969] %v992
          %v994 = vld [vmem:[%s976 + $0x10] sm:%s969]
          %995 = vst [vmem:[%s977 + $0x20] sm:%s969] %v994
          %v996 = vld [vmem:[%s976 + $0x2c] sm:%s969]
          %997 = vst [vmem:[%s977 + $0x24] sm:%s969] %v996
          %v998 = vld [vmem:[%s976 + $0x14] sm:%s969]
          %999 = vst [vmem:[%s977 + $0x28] sm:%s969] %v998
          %v1000 = vld [vmem:[%s976 + $0x30] sm:%s969]
          %1001 = vst [vmem:[%s977 + $0x2c] sm:%s969] %v1000
          %v1002 = vld [vmem:[%s976 + $0x18] sm:%s969]
          %1003 = vst [vmem:[%s977 + $0x30] sm:%s969] %v1002
          %v1004 = vld [vmem:[%s976 + $0x34] sm:%s969]
          %1005 = vst [vmem:[%s977 + $0x34] sm:%s969] %v1004
          %v1006 = vld [vmem:[%s976 + $0x38] sm:%s969]
          %1007 = vst [vmem:[%s977 + $0x38] sm:%s969] %v1006
          %v1008 = vld [vmem:[%s976 + $0x54] sm:%s969]
          %1009 = vst [vmem:[%s977 + $0x3c] sm:%s969] %v1008
          %v1010 = vld [vmem:[%s976 + $0x3c] sm:%s969]
          %1011 = vst [vmem:[%s977 + $0x40] sm:%s969] %v1010
          %v1012 = vld [vmem:[%s976 + $0x58] sm:%s969]
          %1013 = vst [vmem:[%s977 + $0x44] sm:%s969] %v1012
          %v1014 = vld [vmem:[%s976 + $0x40] sm:%s969]
          %1015 = vst [vmem:[%s977 + $0x48] sm:%s969] %v1014
          %v1016 = vld [vmem:[%s976 + $0x5c] sm:%s969]
          %1017 = vst [vmem:[%s977 + $0x4c] sm:%s969] %v1016
          %v1018 = vld [vmem:[%s976 + $0x44] sm:%s969]
          %1019 = vst [vmem:[%s977 + $0x50] sm:%s969] %v1018
          %v1020 = vld [vmem:[%s976 + $0x60] sm:%s969]
          %1021 = vst [vmem:[%s977 + $0x54] sm:%s969] %v1020
          %v1022 = vld [vmem:[%s976 + $0x48] sm:%s969]
          %1023 = vst [vmem:[%s977 + $0x58] sm:%s969] %v1022
          %v1024 = vld [vmem:[%s976 + $0x64] sm:%s969]
          %1025 = vst [vmem:[%s977 + $0x5c] sm:%s969] %v1024
          %v1026 = vld [vmem:[%s976 + $0x4c] sm:%s969]
          %1027 = vst [vmem:[%s977 + $0x60] sm:%s969] %v1026
          %v1028 = vld [vmem:[%s976 + $0x68] sm:%s969]
          %1029 = vst [vmem:[%s977 + $0x64] sm:%s969] %v1028
          %v1030 = vld [vmem:[%s976 + $0x50] sm:%s969]
          %1031 = vst [vmem:[%s977 + $0x68] sm:%s969] %v1030
          %v1032 = vld [vmem:[%s976 + $0x6c] sm:%s969]
          %1033 = vst [vmem:[%s977 + $0x6c] sm:%s969] %v1032
          %v1034 = vld [vmem:[%s976 + $0x70] sm:%s969]
          %1035 = vst [vmem:[%s977 + $0x70] sm:%s969] %v1034
          %v1036 = vld [vmem:[%s976 + $0x8c] sm:%s969]
          %1037 = vst [vmem:[%s977 + $0x74] sm:%s969] %v1036
          %v1038 = vld [vmem:[%s976 + $0x74] sm:%s969]
          %1039 = vst [vmem:[%s977 + $0x78] sm:%s969] %v1038
          %v1040 = vld [vmem:[%s976 + $0x90] sm:%s969]
          %1041 = vst [vmem:[%s977 + $0x7c] sm:%s969] %v1040
          %v1042 = vld [vmem:[%s976 + $0x78] sm:%s969]
          %1043 = vst [vmem:[%s977 + $0x80] sm:%s969] %v1042
          %v1044 = vld [vmem:[%s976 + $0x94] sm:%s969]
          %1045 = vst [vmem:[%s977 + $0x84] sm:%s969] %v1044
          %v1046 = vld [vmem:[%s976 + $0x7c] sm:%s969]
          %1047 = vst [vmem:[%s977 + $0x88] sm:%s969] %v1046
          %v1048 = vld [vmem:[%s976 + $0x98] sm:%s969]
          %1049 = vst [vmem:[%s977 + $0x8c] sm:%s969] %v1048
          %v1050 = vld [vmem:[%s976 + $0x80] sm:%s969]
          %1051 = vst [vmem:[%s977 + $0x90] sm:%s969] %v1050
          %v1052 = vld [vmem:[%s976 + $0x9c] sm:%s969]
          %1053 = vst [vmem:[%s977 + $0x94] sm:%s969] %v1052
          %v1054 = vld [vmem:[%s976 + $0x84] sm:%s969]
          %1055 = vst [vmem:[%s977 + $0x98] sm:%s969] %v1054
          %v1056 = vld [vmem:[%s976 + $0xa0] sm:%s969]
          %1057 = vst [vmem:[%s977 + $0x9c] sm:%s969] %v1056
          %v1058 = vld [vmem:[%s976 + $0x88] sm:%s969]
          %1059 = vst [vmem:[%s977 + $0xa0] sm:%s969] %v1058
          %v1060 = vld [vmem:[%s976 + $0xa4] sm:%s969]
          %1061 = vst [vmem:[%s977 + $0xa4] sm:%s969] %v1060
          %v1062 = vld [vmem:[%s976 + $0xa8] sm:%s969]
          %1063 = vst [vmem:[%s977 + $0xa8] sm:%s969] %v1062
          %v1064 = vld [vmem:[%s976 + $0xc4] sm:%s969]
          %1065 = vst [vmem:[%s977 + $0xac] sm:%s969] %v1064
          %v1066 = vld [vmem:[%s976 + $0xac] sm:%s969]
          %1067 = vst [vmem:[%s977 + $0xb0] sm:%s969] %v1066
          %v1068 = vld [vmem:[%s976 + $0xc8] sm:%s969]
          %1069 = vst [vmem:[%s977 + $0xb4] sm:%s969] %v1068
          %v1070 = vld [vmem:[%s976 + $0xb0] sm:%s969]
          %1071 = vst [vmem:[%s977 + $0xb8] sm:%s969] %v1070
          %v1072 = vld [vmem:[%s976 + $0xcc] sm:%s969]
          %1073 = vst [vmem:[%s977 + $0xbc] sm:%s969] %v1072
          %v1074 = vld [vmem:[%s976 + $0xb4] sm:%s969]
          %1075 = vst [vmem:[%s977 + $0xc0] sm:%s969] %v1074
          %v1076 = vld [vmem:[%s976 + $0xd0] sm:%s969]
          %1077 = vst [vmem:[%s977 + $0xc4] sm:%s969] %v1076
          %v1078 = vld [vmem:[%s976 + $0xb8] sm:%s969]
          %1079 = vst [vmem:[%s977 + $0xc8] sm:%s969] %v1078
          %v1080 = vld [vmem:[%s976 + $0xd4] sm:%s969]
          %1081 = vst [vmem:[%s977 + $0xcc] sm:%s969] %v1080
          %v1082 = vld [vmem:[%s976 + $0xbc] sm:%s969]
          %1083 = vst [vmem:[%s977 + $0xd0] sm:%s969] %v1082
          %v1084 = vld [vmem:[%s976 + $0xd8] sm:%s969]
          %1085 = vst [vmem:[%s977 + $0xd4] sm:%s969] %v1084
          %v1086 = vld [vmem:[%s976 + $0xc0] sm:%s969]
          %1087 = vst [vmem:[%s977 + $0xd8] sm:%s969] %v1086
          %v1088 = vld [vmem:[%s976 + $0xdc] sm:%s969]
          %1089 = vst [vmem:[%s977 + $0xdc] sm:%s969] %v1088
          %v1090 = vld [vmem:[%s976 + $0xe0] sm:%s969]
          %1091 = vst [vmem:[%s977 + $0xe0] sm:%s969] %v1090
          %v1092 = vld [vmem:[%s976 + $0xfc] sm:%s969]
          %1093 = vst [vmem:[%s977 + $0xe4] sm:%s969] %v1092
          %v1094 = vld [vmem:[%s976 + $0xe4] sm:%s969]
          %1095 = vst [vmem:[%s977 + $0xe8] sm:%s969] %v1094
          %v1096 = vld [vmem:[%s976 + $0x100] sm:%s969]
          %1097 = vst [vmem:[%s977 + $0xec] sm:%s969] %v1096
          %v1098 = vld [vmem:[%s976 + $0xe8] sm:%s969]
          %1099 = vst [vmem:[%s977 + $0xf0] sm:%s969] %v1098
          %v1100 = vld [vmem:[%s976 + $0x104] sm:%s969]
          %1101 = vst [vmem:[%s977 + $0xf4] sm:%s969] %v1100
          %v1102 = vld [vmem:[%s976 + $0xec] sm:%s969]
          %1103 = vst [vmem:[%s977 + $0xf8] sm:%s969] %v1102
          %v1104 = vld [vmem:[%s976 + $0x108] sm:%s969]
          %1105 = vst [vmem:[%s977 + $0xfc] sm:%s969] %v1104
          %v1106 = vld [vmem:[%s976 + $0xf0] sm:%s969]
          %1107 = vst [vmem:[%s977 + $0x100] sm:%s969] %v1106
          %v1108 = vld [vmem:[%s976 + $0x10c] sm:%s969]
          %1109 = vst [vmem:[%s977 + $0x104] sm:%s969] %v1108
          %v1110 = vld [vmem:[%s976 + $0xf4] sm:%s969]
          %1111 = vst [vmem:[%s977 + $0x108] sm:%s969] %v1110
          %v1112 = vld [vmem:[%s976 + $0x110] sm:%s969]
          %1113 = vst [vmem:[%s977 + $0x10c] sm:%s969] %v1112
          %v1114 = vld [vmem:[%s976 + $0xf8] sm:%s969]
          %1115 = vst [vmem:[%s977 + $0x110] sm:%s969] %v1114
          %v1116 = vld [vmem:[%s976 + $0x114] sm:%s969]
          %1117 = vst [vmem:[%s977 + $0x114] sm:%s969] %v1116
          %v1118 = vld [vmem:[%s976 + $0x118] sm:%s969]
          %1119 = vst [vmem:[%s977 + $0x118] sm:%s969] %v1118
          %v1120 = vld [vmem:[%s976 + $0x134] sm:%s969]
          %1121 = vst [vmem:[%s977 + $0x11c] sm:%s969] %v1120
          %v1122 = vld [vmem:[%s976 + $0x11c] sm:%s969]
          %1123 = vst [vmem:[%s977 + $0x120] sm:%s969] %v1122
          %v1124 = vld [vmem:[%s976 + $0x138] sm:%s969]
          %1125 = vst [vmem:[%s977 + $0x124] sm:%s969] %v1124
          %v1126 = vld [vmem:[%s976 + $0x120] sm:%s969]
          %1127 = vst [vmem:[%s977 + $0x128] sm:%s969] %v1126
          %v1128 = vld [vmem:[%s976 + $0x13c] sm:%s969]
          %1129 = vst [vmem:[%s977 + $0x12c] sm:%s969] %v1128
          %v1130 = vld [vmem:[%s976 + $0x124] sm:%s969]
          %1131 = vst [vmem:[%s977 + $0x130] sm:%s969] %v1130
          %v1132 = vld [vmem:[%s976 + $0x140] sm:%s969]
          %1133 = vst [vmem:[%s977 + $0x134] sm:%s969] %v1132
          %v1134 = vld [vmem:[%s976 + $0x128] sm:%s969]
          %1135 = vst [vmem:[%s977 + $0x138] sm:%s969] %v1134
          %v1136 = vld [vmem:[%s976 + $0x144] sm:%s969]
          %1137 = vst [vmem:[%s977 + $0x13c] sm:%s969] %v1136
          %v1138 = vld [vmem:[%s976 + $0x12c] sm:%s969]
          %1139 = vst [vmem:[%s977 + $0x140] sm:%s969] %v1138
          %v1140 = vld [vmem:[%s976 + $0x148] sm:%s969]
          %1141 = vst [vmem:[%s977 + $0x144] sm:%s969] %v1140
          %v1142 = vld [vmem:[%s976 + $0x130] sm:%s969]
          %1143 = vst [vmem:[%s977 + $0x148] sm:%s969] %v1142
          %v1144 = vld [vmem:[%s976 + $0x14c] sm:%s969]
          %1145 = vst [vmem:[%s977 + $0x14c] sm:%s969] %v1144
          %v1146 = vld [vmem:[%s976 + $0x150] sm:%s969]
          %1147 = vst [vmem:[%s977 + $0x150] sm:%s969] %v1146
          %v1148 = vld [vmem:[%s976 + $0x16c] sm:%s969]
          %1149 = vst [vmem:[%s977 + $0x154] sm:%s969] %v1148
          %v1150 = vld [vmem:[%s976 + $0x154] sm:%s969]
          %1151 = vst [vmem:[%s977 + $0x158] sm:%s969] %v1150
          %v1152 = vld [vmem:[%s976 + $0x170] sm:%s969]
          %1153 = vst [vmem:[%s977 + $0x15c] sm:%s969] %v1152
          %v1154 = vld [vmem:[%s976 + $0x158] sm:%s969]
          %1155 = vst [vmem:[%s977 + $0x160] sm:%s969] %v1154
          %v1156 = vld [vmem:[%s976 + $0x174] sm:%s969]
          %1157 = vst [vmem:[%s977 + $0x164] sm:%s969] %v1156
          %v1158 = vld [vmem:[%s976 + $0x15c] sm:%s969]
          %1159 = vst [vmem:[%s977 + $0x168] sm:%s969] %v1158
          %v1160 = vld [vmem:[%s976 + $0x178] sm:%s969]
          %1161 = vst [vmem:[%s977 + $0x16c] sm:%s969] %v1160
          %v1162 = vld [vmem:[%s976 + $0x160] sm:%s969]
          %1163 = vst [vmem:[%s977 + $0x170] sm:%s969] %v1162
          %v1164 = vld [vmem:[%s976 + $0x17c] sm:%s969]
          %1165 = vst [vmem:[%s977 + $0x174] sm:%s969] %v1164
          %v1166 = vld [vmem:[%s976 + $0x164] sm:%s969]
          %1167 = vst [vmem:[%s977 + $0x178] sm:%s969] %v1166
          %v1168 = vld [vmem:[%s976 + $0x180] sm:%s969]
          %1169 = vst [vmem:[%s977 + $0x17c] sm:%s969] %v1168
          %v1170 = vld [vmem:[%s976 + $0x168] sm:%s969]
          %1171 = vst [vmem:[%s977 + $0x180] sm:%s969] %v1170
          %v1172 = vld [vmem:[%s976 + $0x184] sm:%s969]
          %1173 = vst [vmem:[%s977 + $0x184] sm:%s969] %v1172
          %v1174 = vld [vmem:[%s976 + $0x188] sm:%s969]
          %1175 = vst [vmem:[%s977 + $0x188] sm:%s969] %v1174
          %v1176 = vld [vmem:[%s976 + $0x1a4] sm:%s969]
          %1177 = vst [vmem:[%s977 + $0x18c] sm:%s969] %v1176
          %v1178 = vld [vmem:[%s976 + $0x18c] sm:%s969]
          %1179 = vst [vmem:[%s977 + $0x190] sm:%s969] %v1178
          %v1180 = vld [vmem:[%s976 + $0x1a8] sm:%s969]
          %1181 = vst [vmem:[%s977 + $0x194] sm:%s969] %v1180
          %v1182 = vld [vmem:[%s976 + $0x190] sm:%s969]
          %1183 = vst [vmem:[%s977 + $0x198] sm:%s969] %v1182
          %v1184 = vld [vmem:[%s976 + $0x1ac] sm:%s969]
          %1185 = vst [vmem:[%s977 + $0x19c] sm:%s969] %v1184
          %v1186 = vld [vmem:[%s976 + $0x194] sm:%s969]
          %1187 = vst [vmem:[%s977 + $0x1a0] sm:%s969] %v1186
          %v1188 = vld [vmem:[%s976 + $0x1b0] sm:%s969]
          %1189 = vst [vmem:[%s977 + $0x1a4] sm:%s969] %v1188
          %v1190 = vld [vmem:[%s976 + $0x198] sm:%s969]
          %1191 = vst [vmem:[%s977 + $0x1a8] sm:%s969] %v1190
          %v1192 = vld [vmem:[%s976 + $0x1b4] sm:%s969]
          %1193 = vst [vmem:[%s977 + $0x1ac] sm:%s969] %v1192
          %v1194 = vld [vmem:[%s976 + $0x19c] sm:%s969]
          %1195 = vst [vmem:[%s977 + $0x1b0] sm:%s969] %v1194
          %v1196 = vld [vmem:[%s976 + $0x1b8] sm:%s969]
          %1197 = vst [vmem:[%s977 + $0x1b4] sm:%s969] %v1196
          %v1198 = vld [vmem:[%s976 + $0x1a0] sm:%s969]
          %1199 = vst [vmem:[%s977 + $0x1b8] sm:%s969] %v1198
          %v1200 = vld [vmem:[%s976 + $0x1bc] sm:%s969]
          %1201 = vst [vmem:[%s977 + $0x1bc] sm:%s969] %v1200
          %v1202 = vld [vmem:[%s976 + $0x1c0] sm:%s969]
          %1203 = vst [vmem:[%s977 + $0x1c0] sm:%s969] %v1202
          %v1204 = vld [vmem:[%s976 + $0x1dc] sm:%s969]
          %1205 = vst [vmem:[%s977 + $0x1c4] sm:%s969] %v1204
          %v1206 = vld [vmem:[%s976 + $0x1c4] sm:%s969]
          %1207 = vst [vmem:[%s977 + $0x1c8] sm:%s969] %v1206
          %v1208 = vld [vmem:[%s976 + $0x1e0] sm:%s969]
          %1209 = vst [vmem:[%s977 + $0x1cc] sm:%s969] %v1208
          %v1210 = vld [vmem:[%s976 + $0x1c8] sm:%s969]
          %1211 = vst [vmem:[%s977 + $0x1d0] sm:%s969] %v1210
          %v1212 = vld [vmem:[%s976 + $0x1e4] sm:%s969]
          %1213 = vst [vmem:[%s977 + $0x1d4] sm:%s969] %v1212
          %v1214 = vld [vmem:[%s976 + $0x1cc] sm:%s969]
          %1215 = vst [vmem:[%s977 + $0x1d8] sm:%s969] %v1214
          %v1216 = vld [vmem:[%s976 + $0x1e8] sm:%s969]
          %1217 = vst [vmem:[%s977 + $0x1dc] sm:%s969] %v1216
          %v1218 = vld [vmem:[%s976 + $0x1d0] sm:%s969]
          %1219 = vst [vmem:[%s977 + $0x1e0] sm:%s969] %v1218
          %v1220 = vld [vmem:[%s976 + $0x1ec] sm:%s969]
          %1221 = vst [vmem:[%s977 + $0x1e4] sm:%s969] %v1220
          %v1222 = vld [vmem:[%s976 + $0x1d4] sm:%s969]
          %1223 = vst [vmem:[%s977 + $0x1e8] sm:%s969] %v1222
          %v1224 = vld [vmem:[%s976 + $0x1f0] sm:%s969]
          %1225 = vst [vmem:[%s977 + $0x1ec] sm:%s969] %v1224
          %v1226 = vld [vmem:[%s976 + $0x1d8] sm:%s969]
          %1227 = vst [vmem:[%s977 + $0x1f0] sm:%s969] %v1226
          %v1228 = vld [vmem:[%s976 + $0x1f4] sm:%s969]
          %1229 = vst [vmem:[%s977 + $0x1f4] sm:%s969] %v1228
          %v1230 = vld [vmem:[%s976 + $0x1f8] sm:%s969]
          %1231 = vst [vmem:[%s977 + $0x1f8] sm:%s969] %v1230
          %v1232 = vld [vmem:[%s976 + $0x214] sm:%s969]
          %1233 = vst [vmem:[%s977 + $0x1fc] sm:%s969] %v1232
          %v1234 = vld [vmem:[%s976 + $0x1fc] sm:%s969]
          %1235 = vst [vmem:[%s977 + $0x200] sm:%s969] %v1234
          %v1236 = vld [vmem:[%s976 + $0x218] sm:%s969]
          %1237 = vst [vmem:[%s977 + $0x204] sm:%s969] %v1236
          %v1238 = vld [vmem:[%s976 + $0x200] sm:%s969]
          %1239 = vst [vmem:[%s977 + $0x208] sm:%s969] %v1238
          %v1240 = vld [vmem:[%s976 + $0x21c] sm:%s969]
          %1241 = vst [vmem:[%s977 + $0x20c] sm:%s969] %v1240
          %v1242 = vld [vmem:[%s976 + $0x204] sm:%s969]
          %1243 = vst [vmem:[%s977 + $0x210] sm:%s969] %v1242
          %v1244 = vld [vmem:[%s976 + $0x220] sm:%s969]
          %1245 = vst [vmem:[%s977 + $0x214] sm:%s969] %v1244
          %v1246 = vld [vmem:[%s976 + $0x208] sm:%s969]
          %1247 = vst [vmem:[%s977 + $0x218] sm:%s969] %v1246
          %v1248 = vld [vmem:[%s976 + $0x224] sm:%s969]
          %1249 = vst [vmem:[%s977 + $0x21c] sm:%s969] %v1248
          %v1250 = vld [vmem:[%s976 + $0x20c] sm:%s969]
          %1251 = vst [vmem:[%s977 + $0x220] sm:%s969] %v1250
          %v1252 = vld [vmem:[%s976 + $0x228] sm:%s969]
          %1253 = vst [vmem:[%s977 + $0x224] sm:%s969] %v1252
          %v1254 = vld [vmem:[%s976 + $0x210] sm:%s969]
          %1255 = vst [vmem:[%s977 + $0x228] sm:%s969] %v1254
          %v1256 = vld [vmem:[%s976 + $0x22c] sm:%s969]
          %1257 = vst [vmem:[%s977 + $0x22c] sm:%s969] %v1256
          %v1258 = vld [vmem:[%s976 + $0x230] sm:%s969]
          %1259 = vst [vmem:[%s977 + $0x230] sm:%s969] %v1258
          %v1260 = vld [vmem:[%s976 + $0x24c] sm:%s969]
          %1261 = vst [vmem:[%s977 + $0x234] sm:%s969] %v1260
          %v1262 = vld [vmem:[%s976 + $0x234] sm:%s969]
          %1263 = vst [vmem:[%s977 + $0x238] sm:%s969] %v1262
          %v1264 = vld [vmem:[%s976 + $0x250] sm:%s969]
          %1265 = vst [vmem:[%s977 + $0x23c] sm:%s969] %v1264
          %v1266 = vld [vmem:[%s976 + $0x238] sm:%s969]
          %1267 = vst [vmem:[%s977 + $0x240] sm:%s969] %v1266
          %v1268 = vld [vmem:[%s976 + $0x254] sm:%s969]
          %1269 = vst [vmem:[%s977 + $0x244] sm:%s969] %v1268
          %v1270 = vld [vmem:[%s976 + $0x23c] sm:%s969]
          %1271 = vst [vmem:[%s977 + $0x248] sm:%s969] %v1270
          %v1272 = vld [vmem:[%s976 + $0x258] sm:%s969]
          %1273 = vst [vmem:[%s977 + $0x24c] sm:%s969] %v1272
          %v1274 = vld [vmem:[%s976 + $0x240] sm:%s969]
          %1275 = vst [vmem:[%s977 + $0x250] sm:%s969] %v1274
          %v1276 = vld [vmem:[%s976 + $0x25c] sm:%s969]
          %1277 = vst [vmem:[%s977 + $0x254] sm:%s969] %v1276
          %v1278 = vld [vmem:[%s976 + $0x244] sm:%s969]
          %1279 = vst [vmem:[%s977 + $0x258] sm:%s969] %v1278
          %v1280 = vld [vmem:[%s976 + $0x260] sm:%s969]
          %1281 = vst [vmem:[%s977 + $0x25c] sm:%s969] %v1280
          %v1282 = vld [vmem:[%s976 + $0x248] sm:%s969]
          %1283 = vst [vmem:[%s977 + $0x260] sm:%s969] %v1282
          %v1284 = vld [vmem:[%s976 + $0x264] sm:%s969]
          %1285 = vst [vmem:[%s977 + $0x264] sm:%s969] %v1284
          %v1286 = vld [vmem:[%s976 + $0x268] sm:%s969]
          %1287 = vst [vmem:[%s977 + $0x268] sm:%s969] %v1286
          %v1288 = vld [vmem:[%s976 + $0x284] sm:%s969]
          %1289 = vst [vmem:[%s977 + $0x26c] sm:%s969] %v1288
          %v1290 = vld [vmem:[%s976 + $0x26c] sm:%s969]
          %1291 = vst [vmem:[%s977 + $0x270] sm:%s969] %v1290
          %v1292 = vld [vmem:[%s976 + $0x288] sm:%s969]
          %1293 = vst [vmem:[%s977 + $0x274] sm:%s969] %v1292
          %v1294 = vld [vmem:[%s976 + $0x270] sm:%s969]
          %1295 = vst [vmem:[%s977 + $0x278] sm:%s969] %v1294
          %v1296 = vld [vmem:[%s976 + $0x28c] sm:%s969]
          %1297 = vst [vmem:[%s977 + $0x27c] sm:%s969] %v1296
          %v1298 = vld [vmem:[%s976 + $0x274] sm:%s969]
          %1299 = vst [vmem:[%s977 + $0x280] sm:%s969] %v1298
          %v1300 = vld [vmem:[%s976 + $0x290] sm:%s969]
          %1301 = vst [vmem:[%s977 + $0x284] sm:%s969] %v1300
          %v1302 = vld [vmem:[%s976 + $0x278] sm:%s969]
          %1303 = vst [vmem:[%s977 + $0x288] sm:%s969] %v1302
          %v1304 = vld [vmem:[%s976 + $0x294] sm:%s969]
          %1305 = vst [vmem:[%s977 + $0x28c] sm:%s969] %v1304
          %v1306 = vld [vmem:[%s976 + $0x27c] sm:%s969]
          %1307 = vst [vmem:[%s977 + $0x290] sm:%s969] %v1306
          %v1308 = vld [vmem:[%s976 + $0x298] sm:%s969]
          %1309 = vst [vmem:[%s977 + $0x294] sm:%s969] %v1308
          %v1310 = vld [vmem:[%s976 + $0x280] sm:%s969]
          %1311 = vst [vmem:[%s977 + $0x298] sm:%s969] %v1310
          %v1312 = vld [vmem:[%s976 + $0x29c] sm:%s969]
          %1313 = vst [vmem:[%s977 + $0x29c] sm:%s969] %v1312
          %v1314 = vld [vmem:[%s976 + $0x2a0] sm:%s969]
          %1315 = vst [vmem:[%s977 + $0x2a0] sm:%s969] %v1314
          %v1316 = vld [vmem:[%s976 + $0x2bc] sm:%s969]
          %1317 = vst [vmem:[%s977 + $0x2a4] sm:%s969] %v1316
          %v1318 = vld [vmem:[%s976 + $0x2a4] sm:%s969]
          %1319 = vst [vmem:[%s977 + $0x2a8] sm:%s969] %v1318
          %v1320 = vld [vmem:[%s976 + $0x2c0] sm:%s969]
          %1321 = vst [vmem:[%s977 + $0x2ac] sm:%s969] %v1320
          %v1322 = vld [vmem:[%s976 + $0x2a8] sm:%s969]
          %1323 = vst [vmem:[%s977 + $0x2b0] sm:%s969] %v1322
          %v1324 = vld [vmem:[%s976 + $0x2c4] sm:%s969]
          %1325 = vst [vmem:[%s977 + $0x2b4] sm:%s969] %v1324
          %v1326 = vld [vmem:[%s976 + $0x2ac] sm:%s969]
          %1327 = vst [vmem:[%s977 + $0x2b8] sm:%s969] %v1326
          %v1328 = vld [vmem:[%s976 + $0x2c8] sm:%s969]
          %1329 = vst [vmem:[%s977 + $0x2bc] sm:%s969] %v1328
          %v1330 = vld [vmem:[%s976 + $0x2b0] sm:%s969]
          %1331 = vst [vmem:[%s977 + $0x2c0] sm:%s969] %v1330
          %v1332 = vld [vmem:[%s976 + $0x2cc] sm:%s969]
          %1333 = vst [vmem:[%s977 + $0x2c4] sm:%s969] %v1332
          %v1334 = vld [vmem:[%s976 + $0x2b4] sm:%s969]
          %1335 = vst [vmem:[%s977 + $0x2c8] sm:%s969] %v1334
          %v1336 = vld [vmem:[%s976 + $0x2d0] sm:%s969]
          %1337 = vst [vmem:[%s977 + $0x2cc] sm:%s969] %v1336
          %v1338 = vld [vmem:[%s976 + $0x2b8] sm:%s969]
          %1339 = vst [vmem:[%s977 + $0x2d0] sm:%s969] %v1338
          %v1340 = vld [vmem:[%s976 + $0x2d4] sm:%s969]
          %1341 = vst [vmem:[%s977 + $0x2d4] sm:%s969] %v1340
          %v1342 = vld [vmem:[%s976 + $0x2d8] sm:%s969]
          %1343 = vst [vmem:[%s977 + $0x2d8] sm:%s969] %v1342
          %v1344 = vld [vmem:[%s976 + $0x2f4] sm:%s969]
          %1345 = vst [vmem:[%s977 + $0x2dc] sm:%s969] %v1344
          %v1346 = vld [vmem:[%s976 + $0x2dc] sm:%s969]
          %1347 = vst [vmem:[%s977 + $0x2e0] sm:%s969] %v1346
          %v1348 = vld [vmem:[%s976 + $0x2f8] sm:%s969]
          %1349 = vst [vmem:[%s977 + $0x2e4] sm:%s969] %v1348
          %v1350 = vld [vmem:[%s976 + $0x2e0] sm:%s969]
          %1351 = vst [vmem:[%s977 + $0x2e8] sm:%s969] %v1350
          %v1352 = vld [vmem:[%s976 + $0x2fc] sm:%s969]
          %1353 = vst [vmem:[%s977 + $0x2ec] sm:%s969] %v1352
          %v1354 = vld [vmem:[%s976 + $0x2e4] sm:%s969]
          %1355 = vst [vmem:[%s977 + $0x2f0] sm:%s969] %v1354
          %v1356 = vld [vmem:[%s976 + $0x300] sm:%s969]
          %1357 = vst [vmem:[%s977 + $0x2f4] sm:%s969] %v1356
          %v1358 = vld [vmem:[%s976 + $0x2e8] sm:%s969]
          %1359 = vst [vmem:[%s977 + $0x2f8] sm:%s969] %v1358
          %v1360 = vld [vmem:[%s976 + $0x304] sm:%s969]
          %1361 = vst [vmem:[%s977 + $0x2fc] sm:%s969] %v1360
          %v1362 = vld [vmem:[%s976 + $0x2ec] sm:%s969]
          %1363 = vst [vmem:[%s977 + $0x300] sm:%s969] %v1362
          %v1364 = vld [vmem:[%s976 + $0x308] sm:%s969]
          %1365 = vst [vmem:[%s977 + $0x304] sm:%s969] %v1364
          %v1366 = vld [vmem:[%s976 + $0x2f0] sm:%s969]
          %1367 = vst [vmem:[%s977 + $0x308] sm:%s969] %v1366
          %v1368 = vld [vmem:[%s976 + $0x30c] sm:%s969]
          %1369 = vst [vmem:[%s977 + $0x30c] sm:%s969] %v1368
          %v1370 = vld [vmem:[%s976 + $0x310] sm:%s969]
          %1371 = vst [vmem:[%s977 + $0x310] sm:%s969] %v1370
          %v1372 = vld [vmem:[%s976 + $0x32c] sm:%s969]
          %1373 = vst [vmem:[%s977 + $0x314] sm:%s969] %v1372
          %v1374 = vld [vmem:[%s976 + $0x314] sm:%s969]
          %1375 = vst [vmem:[%s977 + $0x318] sm:%s969] %v1374
          %v1376 = vld [vmem:[%s976 + $0x330] sm:%s969]
          %1377 = vst [vmem:[%s977 + $0x31c] sm:%s969] %v1376
          %v1378 = vld [vmem:[%s976 + $0x318] sm:%s969]
          %1379 = vst [vmem:[%s977 + $0x320] sm:%s969] %v1378
          %v1380 = vld [vmem:[%s976 + $0x334] sm:%s969]
          %1381 = vst [vmem:[%s977 + $0x324] sm:%s969] %v1380
          %v1382 = vld [vmem:[%s976 + $0x31c] sm:%s969]
          %1383 = vst [vmem:[%s977 + $0x328] sm:%s969] %v1382
          %v1384 = vld [vmem:[%s976 + $0x338] sm:%s969]
          %1385 = vst [vmem:[%s977 + $0x32c] sm:%s969] %v1384
          %v1386 = vld [vmem:[%s976 + $0x320] sm:%s969]
          %1387 = vst [vmem:[%s977 + $0x330] sm:%s969] %v1386
          %v1388 = vld [vmem:[%s976 + $0x33c] sm:%s969]
          %1389 = vst [vmem:[%s977 + $0x334] sm:%s969] %v1388
          %v1390 = vld [vmem:[%s976 + $0x324] sm:%s969]
          %1391 = vst [vmem:[%s977 + $0x338] sm:%s969] %v1390
          %v1392 = vld [vmem:[%s976 + $0x340] sm:%s969]
          %1393 = vst [vmem:[%s977 + $0x33c] sm:%s969] %v1392
          %v1394 = vld [vmem:[%s976 + $0x328] sm:%s969]
          %1395 = vst [vmem:[%s977 + $0x340] sm:%s969] %v1394
          %v1396 = vld [vmem:[%s976 + $0x344] sm:%s969]
          %1397 = vst [vmem:[%s977 + $0x344] sm:%s969] %v1396
          %v1398 = vld [vmem:[%s976 + $0x348] sm:%s969]
          %1399 = vst [vmem:[%s977 + $0x348] sm:%s969] %v1398
          %v1400 = vld [vmem:[%s976 + $0x364] sm:%s969]
          %1401 = vst [vmem:[%s977 + $0x34c] sm:%s969] %v1400
          %v1402 = vld [vmem:[%s976 + $0x34c] sm:%s969]
          %1403 = vst [vmem:[%s977 + $0x350] sm:%s969] %v1402
          %v1404 = vld [vmem:[%s976 + $0x368] sm:%s969]
          %1405 = vst [vmem:[%s977 + $0x354] sm:%s969] %v1404
          %v1406 = vld [vmem:[%s976 + $0x350] sm:%s969]
          %1407 = vst [vmem:[%s977 + $0x358] sm:%s969] %v1406
          %v1408 = vld [vmem:[%s976 + $0x36c] sm:%s969]
          %1409 = vst [vmem:[%s977 + $0x35c] sm:%s969] %v1408
          %v1410 = vld [vmem:[%s976 + $0x354] sm:%s969]
          %1411 = vst [vmem:[%s977 + $0x360] sm:%s969] %v1410
          %v1412 = vld [vmem:[%s976 + $0x370] sm:%s969]
          %1413 = vst [vmem:[%s977 + $0x364] sm:%s969] %v1412
          %v1414 = vld [vmem:[%s976 + $0x358] sm:%s969]
          %1415 = vst [vmem:[%s977 + $0x368] sm:%s969] %v1414
          %v1416 = vld [vmem:[%s976 + $0x374] sm:%s969]
          %1417 = vst [vmem:[%s977 + $0x36c] sm:%s969] %v1416
          %v1418 = vld [vmem:[%s976 + $0x35c] sm:%s969]
          %1419 = vst [vmem:[%s977 + $0x370] sm:%s969] %v1418
          %v1420 = vld [vmem:[%s976 + $0x378] sm:%s969]
          %1421 = vst [vmem:[%s977 + $0x374] sm:%s969] %v1420
          %v1422 = vld [vmem:[%s976 + $0x360] sm:%s969]
          %1423 = vst [vmem:[%s977 + $0x378] sm:%s969] %v1422
          %v1424 = vld [vmem:[%s976 + $0x37c] sm:%s969]
          %1425 = vst [vmem:[%s977 + $0x37c] sm:%s969] %v1424
          %v1426 = vld [vmem:[%s976 + $0x380] sm:%s969]
          %1427 = vst [vmem:[%s977 + $0x380] sm:%s969] %v1426
          %v1428 = vld [vmem:[%s976 + $0x39c] sm:%s969]
          %1429 = vst [vmem:[%s977 + $0x384] sm:%s969] %v1428
          %v1430 = vld [vmem:[%s976 + $0x384] sm:%s969]
          %1431 = vst [vmem:[%s977 + $0x388] sm:%s969] %v1430
          %v1432 = vld [vmem:[%s976 + $0x3a0] sm:%s969]
          %1433 = vst [vmem:[%s977 + $0x38c] sm:%s969] %v1432
          %v1434 = vld [vmem:[%s976 + $0x388] sm:%s969]
          %1435 = vst [vmem:[%s977 + $0x390] sm:%s969] %v1434
          %v1436 = vld [vmem:[%s976 + $0x3a4] sm:%s969]
          %1437 = vst [vmem:[%s977 + $0x394] sm:%s969] %v1436
          %v1438 = vld [vmem:[%s976 + $0x38c] sm:%s969]
          %1439 = vst [vmem:[%s977 + $0x398] sm:%s969] %v1438
          %v1440 = vld [vmem:[%s976 + $0x3a8] sm:%s969]
          %1441 = vst [vmem:[%s977 + $0x39c] sm:%s969] %v1440
          %v1442 = vld [vmem:[%s976 + $0x390] sm:%s969]
          %1443 = vst [vmem:[%s977 + $0x3a0] sm:%s969] %v1442
          %v1444 = vld [vmem:[%s976 + $0x3ac] sm:%s969]
          %1445 = vst [vmem:[%s977 + $0x3a4] sm:%s969] %v1444
          %v1446 = vld [vmem:[%s976 + $0x394] sm:%s969]
          %1447 = vst [vmem:[%s977 + $0x3a8] sm:%s969] %v1446
          %v1448 = vld [vmem:[%s976 + $0x3b0] sm:%s969]
          %1449 = vst [vmem:[%s977 + $0x3ac] sm:%s969] %v1448
          %v1450 = vld [vmem:[%s976 + $0x398] sm:%s969]
          %1451 = vst [vmem:[%s977 + $0x3b0] sm:%s969] %v1450
          %v1452 = vld [vmem:[%s976 + $0x3b4] sm:%s969]
          %1453 = vst [vmem:[%s977 + $0x3b4] sm:%s969] %v1452
          %v1454 = vld [vmem:[%s976 + $0x3b8] sm:%s969]
          %1455 = vst [vmem:[%s977 + $0x3b8] sm:%s969] %v1454
          %v1456 = vld [vmem:[%s976 + $0x3d4] sm:%s969]
          %1457 = vst [vmem:[%s977 + $0x3bc] sm:%s969] %v1456
          %v1458 = vld [vmem:[%s976 + $0x3bc] sm:%s969]
          %1459 = vst [vmem:[%s977 + $0x3c0] sm:%s969] %v1458
          %v1460 = vld [vmem:[%s976 + $0x3d8] sm:%s969]
          %1461 = vst [vmem:[%s977 + $0x3c4] sm:%s969] %v1460
          %v1462 = vld [vmem:[%s976 + $0x3c0] sm:%s969]
          %1463 = vst [vmem:[%s977 + $0x3c8] sm:%s969] %v1462
          %v1464 = vld [vmem:[%s976 + $0x3dc] sm:%s969]
          %1465 = vst [vmem:[%s977 + $0x3cc] sm:%s969] %v1464
          %v1466 = vld [vmem:[%s976 + $0x3c4] sm:%s969]
          %1467 = vst [vmem:[%s977 + $0x3d0] sm:%s969] %v1466
          %v1468 = vld [vmem:[%s976 + $0x3e0] sm:%s969]
          %1469 = vst [vmem:[%s977 + $0x3d4] sm:%s969] %v1468
          %v1470 = vld [vmem:[%s976 + $0x3c8] sm:%s969]
          %1471 = vst [vmem:[%s977 + $0x3d8] sm:%s969] %v1470
          %v1472 = vld [vmem:[%s976 + $0x3e4] sm:%s969]
          %1473 = vst [vmem:[%s977 + $0x3dc] sm:%s969] %v1472
          %v1474 = vld [vmem:[%s976 + $0x3cc] sm:%s969]
          %1475 = vst [vmem:[%s977 + $0x3e0] sm:%s969] %v1474
          %v1476 = vld [vmem:[%s976 + $0x3e8] sm:%s969]
          %1477 = vst [vmem:[%s977 + $0x3e4] sm:%s969] %v1476
          %v1478 = vld [vmem:[%s976 + $0x3d0] sm:%s969]
          %1479 = vst [vmem:[%s977 + $0x3e8] sm:%s969] %v1478
          %v1480 = vld [vmem:[%s976 + $0x3ec] sm:%s969]
          %1481 = vst [vmem:[%s977 + $0x3ec] sm:%s969] %v1480
          %v1482 = vld [vmem:[%s976 + $0x3f0] sm:%s969]
          %1483 = vst [vmem:[%s977 + $0x3f0] sm:%s969] %v1482
          %v1484 = vld [vmem:[%s976 + $0x40c] sm:%s969]
          %1485 = vst [vmem:[%s977 + $0x3f4] sm:%s969] %v1484
          %v1486 = vld [vmem:[%s976 + $0x3f4] sm:%s969]
          %1487 = vst [vmem:[%s977 + $0x3f8] sm:%s969] %v1486
          %v1488 = vld [vmem:[%s976 + $0x410] sm:%s969]
          %1489 = vst [vmem:[%s977 + $0x3fc] sm:%s969] %v1488
          %v1490 = vld [vmem:[%s976 + $0x3f8] sm:%s969]
          %1491 = vst [vmem:[%s977 + $0x400] sm:%s969] %v1490
          %v1492 = vld [vmem:[%s976 + $0x414] sm:%s969]
          %1493 = vst [vmem:[%s977 + $0x404] sm:%s969] %v1492
          %v1494 = vld [vmem:[%s976 + $0x3fc] sm:%s969]
          %1495 = vst [vmem:[%s977 + $0x408] sm:%s969] %v1494
          %v1496 = vld [vmem:[%s976 + $0x418] sm:%s969]
          %1497 = vst [vmem:[%s977 + $0x40c] sm:%s969] %v1496
          %v1498 = vld [vmem:[%s976 + $0x400] sm:%s969]
          %1499 = vst [vmem:[%s977 + $0x410] sm:%s969] %v1498
          %v1500 = vld [vmem:[%s976 + $0x41c] sm:%s969]
          %1501 = vst [vmem:[%s977 + $0x414] sm:%s969] %v1500
          %v1502 = vld [vmem:[%s976 + $0x404] sm:%s969]
          %1503 = vst [vmem:[%s977 + $0x418] sm:%s969] %v1502
          %v1504 = vld [vmem:[%s976 + $0x420] sm:%s969]
          %1505 = vst [vmem:[%s977 + $0x41c] sm:%s969] %v1504
          %v1506 = vld [vmem:[%s976 + $0x408] sm:%s969]
          %1507 = vst [vmem:[%s977 + $0x420] sm:%s969] %v1506
          %v1508 = vld [vmem:[%s976 + $0x424] sm:%s969]
          %1509 = vst [vmem:[%s977 + $0x424] sm:%s969] %v1508
          %v1510 = vld [vmem:[%s976 + $0x428] sm:%s969]
          %1511 = vst [vmem:[%s977 + $0x428] sm:%s969] %v1510
          %v1512 = vld [vmem:[%s976 + $0x444] sm:%s969]
          %1513 = vst [vmem:[%s977 + $0x42c] sm:%s969] %v1512
          %v1514 = vld [vmem:[%s976 + $0x42c] sm:%s969]
          %1515 = vst [vmem:[%s977 + $0x430] sm:%s969] %v1514
          %v1516 = vld [vmem:[%s976 + $0x448] sm:%s969]
          %1517 = vst [vmem:[%s977 + $0x434] sm:%s969] %v1516
          %v1518 = vld [vmem:[%s976 + $0x430] sm:%s969]
          %1519 = vst [vmem:[%s977 + $0x438] sm:%s969] %v1518
          %v1520 = vld [vmem:[%s976 + $0x44c] sm:%s969]
          %1521 = vst [vmem:[%s977 + $0x43c] sm:%s969] %v1520
          %v1522 = vld [vmem:[%s976 + $0x434] sm:%s969]
          %1523 = vst [vmem:[%s977 + $0x440] sm:%s969] %v1522
          %v1524 = vld [vmem:[%s976 + $0x450] sm:%s969]
          %1525 = vst [vmem:[%s977 + $0x444] sm:%s969] %v1524
          %v1526 = vld [vmem:[%s976 + $0x438] sm:%s969]
          %1527 = vst [vmem:[%s977 + $0x448] sm:%s969] %v1526
          %v1528 = vld [vmem:[%s976 + $0x454] sm:%s969]
          %1529 = vst [vmem:[%s977 + $0x44c] sm:%s969] %v1528
          %v1530 = vld [vmem:[%s976 + $0x43c] sm:%s969]
          %1531 = vst [vmem:[%s977 + $0x450] sm:%s969] %v1530
          %v1532 = vld [vmem:[%s976 + $0x458] sm:%s969]
          %1533 = vst [vmem:[%s977 + $0x454] sm:%s969] %v1532
          %v1534 = vld [vmem:[%s976 + $0x440] sm:%s969]
          %1535 = vst [vmem:[%s977 + $0x458] sm:%s969] %v1534
          %v1536 = vld [vmem:[%s976 + $0x45c] sm:%s969]
          %1537 = vst [vmem:[%s977 + $0x45c] sm:%s969] %v1536
          %v1538 = vld [vmem:[%s976 + $0x460] sm:%s969]
          %1539 = vst [vmem:[%s977 + $0x460] sm:%s969] %v1538
          %v1540 = vld [vmem:[%s976 + $0x47c] sm:%s969]
          %1541 = vst [vmem:[%s977 + $0x464] sm:%s969] %v1540
          %v1542 = vld [vmem:[%s976 + $0x464] sm:%s969]
          %1543 = vst [vmem:[%s977 + $0x468] sm:%s969] %v1542
          %v1544 = vld [vmem:[%s976 + $0x480] sm:%s969]
          %1545 = vst [vmem:[%s977 + $0x46c] sm:%s969] %v1544
          %v1546 = vld [vmem:[%s976 + $0x468] sm:%s969]
          %1547 = vst [vmem:[%s977 + $0x470] sm:%s969] %v1546
          %v1548 = vld [vmem:[%s976 + $0x484] sm:%s969]
          %1549 = vst [vmem:[%s977 + $0x474] sm:%s969] %v1548
          %v1550 = vld [vmem:[%s976 + $0x46c] sm:%s969]
          %1551 = vst [vmem:[%s977 + $0x478] sm:%s969] %v1550
          %v1552 = vld [vmem:[%s976 + $0x488] sm:%s969]
          %1553 = vst [vmem:[%s977 + $0x47c] sm:%s969] %v1552
          %v1554 = vld [vmem:[%s976 + $0x470] sm:%s969]
          %1555 = vst [vmem:[%s977 + $0x480] sm:%s969] %v1554
          %v1556 = vld [vmem:[%s976 + $0x48c] sm:%s969]
          %1557 = vst [vmem:[%s977 + $0x484] sm:%s969] %v1556
          %v1558 = vld [vmem:[%s976 + $0x474] sm:%s969]
          %1559 = vst [vmem:[%s977 + $0x488] sm:%s969] %v1558
          %v1560 = vld [vmem:[%s976 + $0x490] sm:%s969]
          %1561 = vst [vmem:[%s977 + $0x48c] sm:%s969] %v1560
          %v1562 = vld [vmem:[%s976 + $0x478] sm:%s969]
          %1563 = vst [vmem:[%s977 + $0x490] sm:%s969] %v1562
          %v1564 = vld [vmem:[%s976 + $0x494] sm:%s969]
          %1565 = vst [vmem:[%s977 + $0x494] sm:%s969] %v1564
          %v1566 = vld [vmem:[%s976 + $0x498] sm:%s969]
          %1567 = vst [vmem:[%s977 + $0x498] sm:%s969] %v1566
          %v1568 = vld [vmem:[%s976 + $0x4b4] sm:%s969]
          %1569 = vst [vmem:[%s977 + $0x49c] sm:%s969] %v1568
          %v1570 = vld [vmem:[%s976 + $0x49c] sm:%s969]
          %1571 = vst [vmem:[%s977 + $0x4a0] sm:%s969] %v1570
          %v1572 = vld [vmem:[%s976 + $0x4b8] sm:%s969]
          %1573 = vst [vmem:[%s977 + $0x4a4] sm:%s969] %v1572
          %v1574 = vld [vmem:[%s976 + $0x4a0] sm:%s969]
          %1575 = vst [vmem:[%s977 + $0x4a8] sm:%s969] %v1574
          %v1576 = vld [vmem:[%s976 + $0x4bc] sm:%s969]
          %1577 = vst [vmem:[%s977 + $0x4ac] sm:%s969] %v1576
          %v1578 = vld [vmem:[%s976 + $0x4a4] sm:%s969]
          %1579 = vst [vmem:[%s977 + $0x4b0] sm:%s969] %v1578
          %v1580 = vld [vmem:[%s976 + $0x4c0] sm:%s969]
          %1581 = vst [vmem:[%s977 + $0x4b4] sm:%s969] %v1580
          %v1582 = vld [vmem:[%s976 + $0x4a8] sm:%s969]
          %1583 = vst [vmem:[%s977 + $0x4b8] sm:%s969] %v1582
          %v1584 = vld [vmem:[%s976 + $0x4c4] sm:%s969]
          %1585 = vst [vmem:[%s977 + $0x4bc] sm:%s969] %v1584
          %v1586 = vld [vmem:[%s976 + $0x4ac] sm:%s969]
          %1587 = vst [vmem:[%s977 + $0x4c0] sm:%s969] %v1586
          %v1588 = vld [vmem:[%s976 + $0x4c8] sm:%s969]
          %1589 = vst [vmem:[%s977 + $0x4c4] sm:%s969] %v1588
          %v1590 = vld [vmem:[%s976 + $0x4b0] sm:%s969]
          %1591 = vst [vmem:[%s977 + $0x4c8] sm:%s969] %v1590
          %v1592 = vld [vmem:[%s976 + $0x4cc] sm:%s969]
          %1593 = vst [vmem:[%s977 + $0x4cc] sm:%s969] %v1592
          %v1594 = vld [vmem:[%s976 + $0x4d0] sm:%s969]
          %1595 = vst [vmem:[%s977 + $0x4d0] sm:%s969] %v1594
          %v1596 = vld [vmem:[%s976 + $0x4ec] sm:%s969]
          %1597 = vst [vmem:[%s977 + $0x4d4] sm:%s969] %v1596
          %v1598 = vld [vmem:[%s976 + $0x4d4] sm:%s969]
          %1599 = vst [vmem:[%s977 + $0x4d8] sm:%s969] %v1598
          %v1600 = vld [vmem:[%s976 + $0x4f0] sm:%s969]
          %1601 = vst [vmem:[%s977 + $0x4dc] sm:%s969] %v1600
          %v1602 = vld [vmem:[%s976 + $0x4d8] sm:%s969]
          %1603 = vst [vmem:[%s977 + $0x4e0] sm:%s969] %v1602
          %v1604 = vld [vmem:[%s976 + $0x4f4] sm:%s969]
          %1605 = vst [vmem:[%s977 + $0x4e4] sm:%s969] %v1604
          %v1606 = vld [vmem:[%s976 + $0x4dc] sm:%s969]
          %1607 = vst [vmem:[%s977 + $0x4e8] sm:%s969] %v1606
          %v1608 = vld [vmem:[%s976 + $0x4f8] sm:%s969]
          %1609 = vst [vmem:[%s977 + $0x4ec] sm:%s969] %v1608
          %v1610 = vld [vmem:[%s976 + $0x4e0] sm:%s969]
          %1611 = vst [vmem:[%s977 + $0x4f0] sm:%s969] %v1610
          %v1612 = vld [vmem:[%s976 + $0x4fc] sm:%s969]
          %1613 = vst [vmem:[%s977 + $0x4f4] sm:%s969] %v1612
          %v1614 = vld [vmem:[%s976 + $0x4e4] sm:%s969]
          %1615 = vst [vmem:[%s977 + $0x4f8] sm:%s969] %v1614
          %v1616 = vld [vmem:[%s976 + $0x500] sm:%s969]
          %1617 = vst [vmem:[%s977 + $0x4fc] sm:%s969] %v1616
          %v1618 = vld [vmem:[%s976 + $0x4e8] sm:%s969]
          %1619 = vst [vmem:[%s977 + $0x500] sm:%s969] %v1618
          %v1620 = vld [vmem:[%s976 + $0x504] sm:%s969]
          %1621 = vst [vmem:[%s977 + $0x504] sm:%s969] %v1620
          %v1622 = vld [vmem:[%s976 + $0x508] sm:%s969]
          %1623 = vst [vmem:[%s977 + $0x508] sm:%s969] %v1622
          %v1624 = vld [vmem:[%s976 + $0x524] sm:%s969]
          %1625 = vst [vmem:[%s977 + $0x50c] sm:%s969] %v1624
          %v1626 = vld [vmem:[%s976 + $0x50c] sm:%s969]
          %1627 = vst [vmem:[%s977 + $0x510] sm:%s969] %v1626
          %v1628 = vld [vmem:[%s976 + $0x528] sm:%s969]
          %1629 = vst [vmem:[%s977 + $0x514] sm:%s969] %v1628
          %v1630 = vld [vmem:[%s976 + $0x510] sm:%s969]
          %1631 = vst [vmem:[%s977 + $0x518] sm:%s969] %v1630
          %v1632 = vld [vmem:[%s976 + $0x52c] sm:%s969]
          %1633 = vst [vmem:[%s977 + $0x51c] sm:%s969] %v1632
          %v1634 = vld [vmem:[%s976 + $0x514] sm:%s969]
          %1635 = vst [vmem:[%s977 + $0x520] sm:%s969] %v1634
          %v1636 = vld [vmem:[%s976 + $0x530] sm:%s969]
          %1637 = vst [vmem:[%s977 + $0x524] sm:%s969] %v1636
          %v1638 = vld [vmem:[%s976 + $0x518] sm:%s969]
          %1639 = vst [vmem:[%s977 + $0x528] sm:%s969] %v1638
          %v1640 = vld [vmem:[%s976 + $0x534] sm:%s969]
          %1641 = vst [vmem:[%s977 + $0x52c] sm:%s969] %v1640
          %v1642 = vld [vmem:[%s976 + $0x51c] sm:%s969]
          %1643 = vst [vmem:[%s977 + $0x530] sm:%s969] %v1642
          %v1644 = vld [vmem:[%s976 + $0x538] sm:%s969]
          %1645 = vst [vmem:[%s977 + $0x534] sm:%s969] %v1644
          %v1646 = vld [vmem:[%s976 + $0x520] sm:%s969]
          %1647 = vst [vmem:[%s977 + $0x538] sm:%s969] %v1646
          %v1648 = vld [vmem:[%s976 + $0x53c] sm:%s969]
          %1649 = vst [vmem:[%s977 + $0x53c] sm:%s969] %v1648
          %v1650 = vld [vmem:[%s976 + $0x540] sm:%s969]
          %1651 = vst [vmem:[%s977 + $0x540] sm:%s969] %v1650
          %v1652 = vld [vmem:[%s976 + $0x55c] sm:%s969]
          %1653 = vst [vmem:[%s977 + $0x544] sm:%s969] %v1652
          %v1654 = vld [vmem:[%s976 + $0x544] sm:%s969]
          %1655 = vst [vmem:[%s977 + $0x548] sm:%s969] %v1654
          %v1656 = vld [vmem:[%s976 + $0x560] sm:%s969]
          %1657 = vst [vmem:[%s977 + $0x54c] sm:%s969] %v1656
          %v1658 = vld [vmem:[%s976 + $0x548] sm:%s969]
          %1659 = vst [vmem:[%s977 + $0x550] sm:%s969] %v1658
          %v1660 = vld [vmem:[%s976 + $0x564] sm:%s969]
          %1661 = vst [vmem:[%s977 + $0x554] sm:%s969] %v1660
          %v1662 = vld [vmem:[%s976 + $0x54c] sm:%s969]
          %1663 = vst [vmem:[%s977 + $0x558] sm:%s969] %v1662
          %v1664 = vld [vmem:[%s976 + $0x568] sm:%s969]
          %1665 = vst [vmem:[%s977 + $0x55c] sm:%s969] %v1664
          %v1666 = vld [vmem:[%s976 + $0x550] sm:%s969]
          %1667 = vst [vmem:[%s977 + $0x560] sm:%s969] %v1666
          %v1668 = vld [vmem:[%s976 + $0x56c] sm:%s969]
          %1669 = vst [vmem:[%s977 + $0x564] sm:%s969] %v1668
          %v1670 = vld [vmem:[%s976 + $0x554] sm:%s969]
          %1671 = vst [vmem:[%s977 + $0x568] sm:%s969] %v1670
          %v1672 = vld [vmem:[%s976 + $0x570] sm:%s969]
          %1673 = vst [vmem:[%s977 + $0x56c] sm:%s969] %v1672
          %v1674 = vld [vmem:[%s976 + $0x558] sm:%s969]
          %1675 = vst [vmem:[%s977 + $0x570] sm:%s969] %v1674
          %v1676 = vld [vmem:[%s976 + $0x574] sm:%s969]
          %1677 = vst [vmem:[%s977 + $0x574] sm:%s969] %v1676
          %v1678 = vld [vmem:[%s976 + $0x578] sm:%s969]
          %1679 = vst [vmem:[%s977 + $0x578] sm:%s969] %v1678
          %v1680 = vld [vmem:[%s976 + $0x594] sm:%s969]
          %1681 = vst [vmem:[%s977 + $0x57c] sm:%s969] %v1680
          %v1682 = vld [vmem:[%s976 + $0x57c] sm:%s969]
          %1683 = vst [vmem:[%s977 + $0x580] sm:%s969] %v1682
          %v1684 = vld [vmem:[%s976 + $0x598] sm:%s969]
          %1685 = vst [vmem:[%s977 + $0x584] sm:%s969] %v1684
          %v1686 = vld [vmem:[%s976 + $0x580] sm:%s969]
          %1687 = vst [vmem:[%s977 + $0x588] sm:%s969] %v1686
          %v1688 = vld [vmem:[%s976 + $0x59c] sm:%s969]
          %1689 = vst [vmem:[%s977 + $0x58c] sm:%s969] %v1688
          %v1690 = vld [vmem:[%s976 + $0x584] sm:%s969]
          %1691 = vst [vmem:[%s977 + $0x590] sm:%s969] %v1690
          %v1692 = vld [vmem:[%s976 + $0x5a0] sm:%s969]
          %1693 = vst [vmem:[%s977 + $0x594] sm:%s969] %v1692
          %v1694 = vld [vmem:[%s976 + $0x588] sm:%s969]
          %1695 = vst [vmem:[%s977 + $0x598] sm:%s969] %v1694
          %v1696 = vld [vmem:[%s976 + $0x5a4] sm:%s969]
          %1697 = vst [vmem:[%s977 + $0x59c] sm:%s969] %v1696
          %v1698 = vld [vmem:[%s976 + $0x58c] sm:%s969]
          %1699 = vst [vmem:[%s977 + $0x5a0] sm:%s969] %v1698
          %v1700 = vld [vmem:[%s976 + $0x5a8] sm:%s969]
          %1701 = vst [vmem:[%s977 + $0x5a4] sm:%s969] %v1700
          %v1702 = vld [vmem:[%s976 + $0x590] sm:%s969]
          %1703 = vst [vmem:[%s977 + $0x5a8] sm:%s969] %v1702
          %v1704 = vld [vmem:[%s976 + $0x5ac] sm:%s969]
          %1705 = vst [vmem:[%s977 + $0x5ac] sm:%s969] %v1704
          %v1706 = vld [vmem:[%s976 + $0x5b0] sm:%s969]
          %1707 = vst [vmem:[%s977 + $0x5b0] sm:%s969] %v1706
          %v1708 = vld [vmem:[%s976 + $0x5cc] sm:%s969]
          %1709 = vst [vmem:[%s977 + $0x5b4] sm:%s969] %v1708
          %v1710 = vld [vmem:[%s976 + $0x5b4] sm:%s969]
          %1711 = vst [vmem:[%s977 + $0x5b8] sm:%s969] %v1710
          %v1712 = vld [vmem:[%s976 + $0x5d0] sm:%s969]
          %1713 = vst [vmem:[%s977 + $0x5bc] sm:%s969] %v1712
          %v1714 = vld [vmem:[%s976 + $0x5b8] sm:%s969]
          %1715 = vst [vmem:[%s977 + $0x5c0] sm:%s969] %v1714
          %v1716 = vld [vmem:[%s976 + $0x5d4] sm:%s969]
          %1717 = vst [vmem:[%s977 + $0x5c4] sm:%s969] %v1716
          %v1718 = vld [vmem:[%s976 + $0x5bc] sm:%s969]
          %1719 = vst [vmem:[%s977 + $0x5c8] sm:%s969] %v1718
          %v1720 = vld [vmem:[%s976 + $0x5d8] sm:%s969]
          %1721 = vst [vmem:[%s977 + $0x5cc] sm:%s969] %v1720
          %v1722 = vld [vmem:[%s976 + $0x5c0] sm:%s969]
          %1723 = vst [vmem:[%s977 + $0x5d0] sm:%s969] %v1722
          %v1724 = vld [vmem:[%s976 + $0x5dc] sm:%s969]
          %1725 = vst [vmem:[%s977 + $0x5d4] sm:%s969] %v1724
          %v1726 = vld [vmem:[%s976 + $0x5c4] sm:%s969]
          %1727 = vst [vmem:[%s977 + $0x5d8] sm:%s969] %v1726
          %v1728 = vld [vmem:[%s976 + $0x5e0] sm:%s969]
          %1729 = vst [vmem:[%s977 + $0x5dc] sm:%s969] %v1728
          %v1730 = vld [vmem:[%s976 + $0x5c8] sm:%s969]
          %1731 = vst [vmem:[%s977 + $0x5e0] sm:%s969] %v1730
          %v1732 = vld [vmem:[%s976 + $0x5e4] sm:%s969]
          %1733 = vst [vmem:[%s977 + $0x5e4] sm:%s969] %v1732
          %v1734 = vld [vmem:[%s976 + $0x5e8] sm:%s969]
          %1735 = vst [vmem:[%s977 + $0x5e8] sm:%s969] %v1734
          %v1736 = vld [vmem:[%s976 + $0x604] sm:%s969]
          %1737 = vst [vmem:[%s977 + $0x5ec] sm:%s969] %v1736
          %v1738 = vld [vmem:[%s976 + $0x5ec] sm:%s969]
          %1739 = vst [vmem:[%s977 + $0x5f0] sm:%s969] %v1738
          %v1740 = vld [vmem:[%s976 + $0x608] sm:%s969]
          %1741 = vst [vmem:[%s977 + $0x5f4] sm:%s969] %v1740
          %v1742 = vld [vmem:[%s976 + $0x5f0] sm:%s969]
          %1743 = vst [vmem:[%s977 + $0x5f8] sm:%s969] %v1742
          %v1744 = vld [vmem:[%s976 + $0x60c] sm:%s969]
          %1745 = vst [vmem:[%s977 + $0x5fc] sm:%s969] %v1744
          %v1746 = vld [vmem:[%s976 + $0x5f4] sm:%s969]
          %1747 = vst [vmem:[%s977 + $0x600] sm:%s969] %v1746
          %v1748 = vld [vmem:[%s976 + $0x610] sm:%s969]
          %1749 = vst [vmem:[%s977 + $0x604] sm:%s969] %v1748
          %v1750 = vld [vmem:[%s976 + $0x5f8] sm:%s969]
          %1751 = vst [vmem:[%s977 + $0x608] sm:%s969] %v1750
          %v1752 = vld [vmem:[%s976 + $0x614] sm:%s969]
          %1753 = vst [vmem:[%s977 + $0x60c] sm:%s969] %v1752
          %v1754 = vld [vmem:[%s976 + $0x5fc] sm:%s969]
          %1755 = vst [vmem:[%s977 + $0x610] sm:%s969] %v1754
          %v1756 = vld [vmem:[%s976 + $0x618] sm:%s969]
          %1757 = vst [vmem:[%s977 + $0x614] sm:%s969] %v1756
          %v1758 = vld [vmem:[%s976 + $0x600] sm:%s969]
          %1759 = vst [vmem:[%s977 + $0x618] sm:%s969] %v1758
          %v1760 = vld [vmem:[%s976 + $0x61c] sm:%s969]
          %1761 = vst [vmem:[%s977 + $0x61c] sm:%s969] %v1760
          %v1762 = vld [vmem:[%s976 + $0x620] sm:%s969]
          %1763 = vst [vmem:[%s977 + $0x620] sm:%s969] %v1762
          %v1764 = vld [vmem:[%s976 + $0x63c] sm:%s969]
          %1765 = vst [vmem:[%s977 + $0x624] sm:%s969] %v1764
          %v1766 = vld [vmem:[%s976 + $0x624] sm:%s969]
          %1767 = vst [vmem:[%s977 + $0x628] sm:%s969] %v1766
          %v1768 = vld [vmem:[%s976 + $0x640] sm:%s969]
          %1769 = vst [vmem:[%s977 + $0x62c] sm:%s969] %v1768
          %v1770 = vld [vmem:[%s976 + $0x628] sm:%s969]
          %1771 = vst [vmem:[%s977 + $0x630] sm:%s969] %v1770
          %v1772 = vld [vmem:[%s976 + $0x644] sm:%s969]
          %1773 = vst [vmem:[%s977 + $0x634] sm:%s969] %v1772
          %v1774 = vld [vmem:[%s976 + $0x62c] sm:%s969]
          %1775 = vst [vmem:[%s977 + $0x638] sm:%s969] %v1774
          %v1776 = vld [vmem:[%s976 + $0x648] sm:%s969]
          %1777 = vst [vmem:[%s977 + $0x63c] sm:%s969] %v1776
          %v1778 = vld [vmem:[%s976 + $0x630] sm:%s969]
          %1779 = vst [vmem:[%s977 + $0x640] sm:%s969] %v1778
          %v1780 = vld [vmem:[%s976 + $0x64c] sm:%s969]
          %1781 = vst [vmem:[%s977 + $0x644] sm:%s969] %v1780
          %v1782 = vld [vmem:[%s976 + $0x634] sm:%s969]
          %1783 = vst [vmem:[%s977 + $0x648] sm:%s969] %v1782
          %v1784 = vld [vmem:[%s976 + $0x650] sm:%s969]
          %1785 = vst [vmem:[%s977 + $0x64c] sm:%s969] %v1784
          %v1786 = vld [vmem:[%s976 + $0x638] sm:%s969]
          %1787 = vst [vmem:[%s977 + $0x650] sm:%s969] %v1786
          %v1788 = vld [vmem:[%s976 + $0x654] sm:%s969]
          %1789 = vst [vmem:[%s977 + $0x654] sm:%s969] %v1788
          %v1790 = vld [vmem:[%s976 + $0x658] sm:%s969]
          %1791 = vst [vmem:[%s977 + $0x658] sm:%s969] %v1790
          %v1792 = vld [vmem:[%s976 + $0x674] sm:%s969]
          %1793 = vst [vmem:[%s977 + $0x65c] sm:%s969] %v1792
          %v1794 = vld [vmem:[%s976 + $0x65c] sm:%s969]
          %1795 = vst [vmem:[%s977 + $0x660] sm:%s969] %v1794
          %v1796 = vld [vmem:[%s976 + $0x678] sm:%s969]
          %1797 = vst [vmem:[%s977 + $0x664] sm:%s969] %v1796
          %v1798 = vld [vmem:[%s976 + $0x660] sm:%s969]
          %1799 = vst [vmem:[%s977 + $0x668] sm:%s969] %v1798
          %v1800 = vld [vmem:[%s976 + $0x67c] sm:%s969]
          %1801 = vst [vmem:[%s977 + $0x66c] sm:%s969] %v1800
          %v1802 = vld [vmem:[%s976 + $0x664] sm:%s969]
          %1803 = vst [vmem:[%s977 + $0x670] sm:%s969] %v1802
          %v1804 = vld [vmem:[%s976 + $0x680] sm:%s969]
          %1805 = vst [vmem:[%s977 + $0x674] sm:%s969] %v1804
          %v1806 = vld [vmem:[%s976 + $0x668] sm:%s969]
          %1807 = vst [vmem:[%s977 + $0x678] sm:%s969] %v1806
          %v1808 = vld [vmem:[%s976 + $0x684] sm:%s969]
          %1809 = vst [vmem:[%s977 + $0x67c] sm:%s969] %v1808
          %v1810 = vld [vmem:[%s976 + $0x66c] sm:%s969]
          %1811 = vst [vmem:[%s977 + $0x680] sm:%s969] %v1810
          %v1812 = vld [vmem:[%s976 + $0x688] sm:%s969]
          %1813 = vst [vmem:[%s977 + $0x684] sm:%s969] %v1812
          %v1814 = vld [vmem:[%s976 + $0x670] sm:%s969]
          %1815 = vst [vmem:[%s977 + $0x688] sm:%s969] %v1814
          %v1816 = vld [vmem:[%s976 + $0x68c] sm:%s969]
          %1817 = vst [vmem:[%s977 + $0x68c] sm:%s969] %v1816
          %v1818 = vld [vmem:[%s976 + $0x690] sm:%s969]
          %1819 = vst [vmem:[%s977 + $0x690] sm:%s969] %v1818
          %v1820 = vld [vmem:[%s976 + $0x6ac] sm:%s969]
          %1821 = vst [vmem:[%s977 + $0x694] sm:%s969] %v1820
          %v1822 = vld [vmem:[%s976 + $0x694] sm:%s969]
          %1823 = vst [vmem:[%s977 + $0x698] sm:%s969] %v1822
          %v1824 = vld [vmem:[%s976 + $0x6b0] sm:%s969]
          %1825 = vst [vmem:[%s977 + $0x69c] sm:%s969] %v1824
          %v1826 = vld [vmem:[%s976 + $0x698] sm:%s969]
          %1827 = vst [vmem:[%s977 + $0x6a0] sm:%s969] %v1826
          %v1828 = vld [vmem:[%s976 + $0x6b4] sm:%s969]
          %1829 = vst [vmem:[%s977 + $0x6a4] sm:%s969] %v1828
          %v1830 = vld [vmem:[%s976 + $0x69c] sm:%s969]
          %1831 = vst [vmem:[%s977 + $0x6a8] sm:%s969] %v1830
          %v1832 = vld [vmem:[%s976 + $0x6b8] sm:%s969]
          %1833 = vst [vmem:[%s977 + $0x6ac] sm:%s969] %v1832
          %v1834 = vld [vmem:[%s976 + $0x6a0] sm:%s969]
          %1835 = vst [vmem:[%s977 + $0x6b0] sm:%s969] %v1834
          %v1836 = vld [vmem:[%s976 + $0x6bc] sm:%s969]
          %1837 = vst [vmem:[%s977 + $0x6b4] sm:%s969] %v1836
          %v1838 = vld [vmem:[%s976 + $0x6a4] sm:%s969]
          %1839 = vst [vmem:[%s977 + $0x6b8] sm:%s969] %v1838
          %v1840 = vld [vmem:[%s976 + $0x6c0] sm:%s969]
          %1841 = vst [vmem:[%s977 + $0x6bc] sm:%s969] %v1840
          %v1842 = vld [vmem:[%s976 + $0x6a8] sm:%s969]
          %1843 = vst [vmem:[%s977 + $0x6c0] sm:%s969] %v1842
          %v1844 = vld [vmem:[%s976 + $0x6c4] sm:%s969]
          %1845 = vst [vmem:[%s977 + $0x6c4] sm:%s969] %v1844
          %v1846 = vld [vmem:[%s976 + $0x6c8] sm:%s969]
          %1847 = vst [vmem:[%s977 + $0x6c8] sm:%s969] %v1846
          %v1848 = vld [vmem:[%s976 + $0x6e4] sm:%s969]
          %1849 = vst [vmem:[%s977 + $0x6cc] sm:%s969] %v1848
          %v1850 = vld [vmem:[%s976 + $0x6cc] sm:%s969]
          %1851 = vst [vmem:[%s977 + $0x6d0] sm:%s969] %v1850
          %v1852 = vld [vmem:[%s976 + $0x6e8] sm:%s969]
          %1853 = vst [vmem:[%s977 + $0x6d4] sm:%s969] %v1852
          %v1854 = vld [vmem:[%s976 + $0x6d0] sm:%s969]
          %1855 = vst [vmem:[%s977 + $0x6d8] sm:%s969] %v1854
          %v1856 = vld [vmem:[%s976 + $0x6ec] sm:%s969]
          %1857 = vst [vmem:[%s977 + $0x6dc] sm:%s969] %v1856
          %v1858 = vld [vmem:[%s976 + $0x6d4] sm:%s969]
          %1859 = vst [vmem:[%s977 + $0x6e0] sm:%s969] %v1858
          %v1860 = vld [vmem:[%s976 + $0x6f0] sm:%s969]
          %1861 = vst [vmem:[%s977 + $0x6e4] sm:%s969] %v1860
          %v1862 = vld [vmem:[%s976 + $0x6d8] sm:%s969]
          %1863 = vst [vmem:[%s977 + $0x6e8] sm:%s969] %v1862
          %v1864 = vld [vmem:[%s976 + $0x6f4] sm:%s969]
          %1865 = vst [vmem:[%s977 + $0x6ec] sm:%s969] %v1864
          %v1866 = vld [vmem:[%s976 + $0x6dc] sm:%s969]
          %1867 = vst [vmem:[%s977 + $0x6f0] sm:%s969] %v1866
          %v1868 = vld [vmem:[%s976 + $0x6f8] sm:%s969]
          %1869 = vst [vmem:[%s977 + $0x6f4] sm:%s969] %v1868
          %v1870 = vld [vmem:[%s976 + $0x6e0] sm:%s969]
          %1871 = vst [vmem:[%s977 + $0x6f8] sm:%s969] %v1870
          %v1872 = vld [vmem:[%s976 + $0x6fc] sm:%s969]
          %1873 = vst [vmem:[%s977 + $0x6fc] sm:%s969] %v1872
        $region72: #{tpu_custom_call.1} parent=59 // loop_footer
          %s975 = sadd.s32 1, %s971
        $region73: #{tpu_custom_call.1} parent=59 // loop_footer_branch
          %970 = sbr.rel target = $region69
        $region74: #{tpu_custom_call.1} parent=59 // loop_exit
          _
      $region60: #{tpu_custom_call.1} parent=44 // pred_fallthru
        _
    $region45: #{tpu_custom_call.1} parent=1 // pred_fallthru
      _
    // Predicated region
    $region46: #{tpu_custom_call.1} parent=1 // pred_check
      %p43 = pneg %p39
    $region47: #{tpu_custom_call.1} parent=1 // pred_check_branch
      %45 = sbr.rel (%p43) target = $region49
    $region48: #{tpu_custom_call.1} parent=1 // pred_region
      %s46 = sshllo.u32 0, 4
      loop: start=0, step=1, limit=1
      $region50: #{tpu_custom_call.1} parent=48 // loop_pre_header
        _
      $region51: #{tpu_custom_call.1} parent=48 // loop_header
        %s48 = sphi 0, %s52
        %p49 = scmp.ge.s32.totalorder %s48, 1
        %s53 = sphi %s9, %s9
        %s54 = sphi [#allocation2], [#allocation2]
      $region52: #{tpu_custom_call.1} parent=48 // loop_header_branch
        %51 = sbr.rel (%p49) target = $region56
      $region53: #{tpu_custom_call.1} parent=48 // loop_body
        %v55 = vld [vmem:[%s53] sm:%s46]
        %56 = vst [vmem:[%s54] sm:%s46] %v55
        %v57 = vld [vmem:[%s53 + $0x1c] sm:%s46]
        %58 = vst [vmem:[%s54 + $0x4] sm:%s46] %v57
        %v59 = vld [vmem:[%s53 + $0x4] sm:%s46]
        %60 = vst [vmem:[%s54 + $0x8] sm:%s46] %v59
        %v61 = vld [vmem:[%s53 + $0x20] sm:%s46]
        %62 = vst [vmem:[%s54 + $0xc] sm:%s46] %v61
        %v63 = vld [vmem:[%s53 + $0x8] sm:%s46]
        %64 = vst [vmem:[%s54 + $0x10] sm:%s46] %v63
        %v65 = vld [vmem:[%s53 + $0x24] sm:%s46]
        %66 = vst [vmem:[%s54 + $0x14] sm:%s46] %v65
        %v67 = vld [vmem:[%s53 + $0xc] sm:%s46]
        %68 = vst [vmem:[%s54 + $0x18] sm:%s46] %v67
        %v69 = vld [vmem:[%s53 + $0x28] sm:%s46]
        %70 = vst [vmem:[%s54 + $0x1c] sm:%s46] %v69
        %v71 = vld [vmem:[%s53 + $0x10] sm:%s46]
        %72 = vst [vmem:[%s54 + $0x20] sm:%s46] %v71
        %v73 = vld [vmem:[%s53 + $0x2c] sm:%s46]
        %74 = vst [vmem:[%s54 + $0x24] sm:%s46] %v73
        %v75 = vld [vmem:[%s53 + $0x14] sm:%s46]
        %76 = vst [vmem:[%s54 + $0x28] sm:%s46] %v75
        %v77 = vld [vmem:[%s53 + $0x30] sm:%s46]
        %78 = vst [vmem:[%s54 + $0x2c] sm:%s46] %v77
        %v79 = vld [vmem:[%s53 + $0x18] sm:%s46]
        %80 = vst [vmem:[%s54 + $0x30] sm:%s46] %v79
        %v81 = vld [vmem:[%s53 + $0x34] sm:%s46]
        %82 = vst [vmem:[%s54 + $0x34] sm:%s46] %v81
        %v83 = vld [vmem:[%s53 + $0x38] sm:%s46]
        %84 = vst [vmem:[%s54 + $0x38] sm:%s46] %v83
        %v85 = vld [vmem:[%s53 + $0x54] sm:%s46]
        %86 = vst [vmem:[%s54 + $0x3c] sm:%s46] %v85
        %v87 = vld [vmem:[%s53 + $0x3c] sm:%s46]
        %88 = vst [vmem:[%s54 + $0x40] sm:%s46] %v87
        %v89 = vld [vmem:[%s53 + $0x58] sm:%s46]
        %90 = vst [vmem:[%s54 + $0x44] sm:%s46] %v89
        %v91 = vld [vmem:[%s53 + $0x40] sm:%s46]
        %92 = vst [vmem:[%s54 + $0x48] sm:%s46] %v91
        %v93 = vld [vmem:[%s53 + $0x5c] sm:%s46]
        %94 = vst [vmem:[%s54 + $0x4c] sm:%s46] %v93
        %v95 = vld [vmem:[%s53 + $0x44] sm:%s46]
        %96 = vst [vmem:[%s54 + $0x50] sm:%s46] %v95
        %v97 = vld [vmem:[%s53 + $0x60] sm:%s46]
        %98 = vst [vmem:[%s54 + $0x54] sm:%s46] %v97
        %v99 = vld [vmem:[%s53 + $0x48] sm:%s46]
        %100 = vst [vmem:[%s54 + $0x58] sm:%s46] %v99
        %v101 = vld [vmem:[%s53 + $0x64] sm:%s46]
        %102 = vst [vmem:[%s54 + $0x5c] sm:%s46] %v101
        %v103 = vld [vmem:[%s53 + $0x4c] sm:%s46]
        %104 = vst [vmem:[%s54 + $0x60] sm:%s46] %v103
        %v105 = vld [vmem:[%s53 + $0x68] sm:%s46]
        %106 = vst [vmem:[%s54 + $0x64] sm:%s46] %v105
        %v107 = vld [vmem:[%s53 + $0x50] sm:%s46]
        %108 = vst [vmem:[%s54 + $0x68] sm:%s46] %v107
        %v109 = vld [vmem:[%s53 + $0x6c] sm:%s46]
        %110 = vst [vmem:[%s54 + $0x6c] sm:%s46] %v109
        %v111 = vld [vmem:[%s53 + $0x70] sm:%s46]
        %112 = vst [vmem:[%s54 + $0x70] sm:%s46] %v111
        %v113 = vld [vmem:[%s53 + $0x8c] sm:%s46]
        %114 = vst [vmem:[%s54 + $0x74] sm:%s46] %v113
        %v115 = vld [vmem:[%s53 + $0x74] sm:%s46]
        %116 = vst [vmem:[%s54 + $0x78] sm:%s46] %v115
        %v117 = vld [vmem:[%s53 + $0x90] sm:%s46]
        %118 = vst [vmem:[%s54 + $0x7c] sm:%s46] %v117
        %v119 = vld [vmem:[%s53 + $0x78] sm:%s46]
        %120 = vst [vmem:[%s54 + $0x80] sm:%s46] %v119
        %v121 = vld [vmem:[%s53 + $0x94] sm:%s46]
        %122 = vst [vmem:[%s54 + $0x84] sm:%s46] %v121
        %v123 = vld [vmem:[%s53 + $0x7c] sm:%s46]
        %124 = vst [vmem:[%s54 + $0x88] sm:%s46] %v123
        %v125 = vld [vmem:[%s53 + $0x98] sm:%s46]
        %126 = vst [vmem:[%s54 + $0x8c] sm:%s46] %v125
        %v127 = vld [vmem:[%s53 + $0x80] sm:%s46]
        %128 = vst [vmem:[%s54 + $0x90] sm:%s46] %v127
        %v129 = vld [vmem:[%s53 + $0x9c] sm:%s46]
        %130 = vst [vmem:[%s54 + $0x94] sm:%s46] %v129
        %v131 = vld [vmem:[%s53 + $0x84] sm:%s46]
        %132 = vst [vmem:[%s54 + $0x98] sm:%s46] %v131
        %v133 = vld [vmem:[%s53 + $0xa0] sm:%s46]
        %134 = vst [vmem:[%s54 + $0x9c] sm:%s46] %v133
        %v135 = vld [vmem:[%s53 + $0x88] sm:%s46]
        %136 = vst [vmem:[%s54 + $0xa0] sm:%s46] %v135
        %v137 = vld [vmem:[%s53 + $0xa4] sm:%s46]
        %138 = vst [vmem:[%s54 + $0xa4] sm:%s46] %v137
        %v139 = vld [vmem:[%s53 + $0xa8] sm:%s46]
        %140 = vst [vmem:[%s54 + $0xa8] sm:%s46] %v139
        %v141 = vld [vmem:[%s53 + $0xc4] sm:%s46]
        %142 = vst [vmem:[%s54 + $0xac] sm:%s46] %v141
        %v143 = vld [vmem:[%s53 + $0xac] sm:%s46]
        %144 = vst [vmem:[%s54 + $0xb0] sm:%s46] %v143
        %v145 = vld [vmem:[%s53 + $0xc8] sm:%s46]
        %146 = vst [vmem:[%s54 + $0xb4] sm:%s46] %v145
        %v147 = vld [vmem:[%s53 + $0xb0] sm:%s46]
        %148 = vst [vmem:[%s54 + $0xb8] sm:%s46] %v147
        %v149 = vld [vmem:[%s53 + $0xcc] sm:%s46]
        %150 = vst [vmem:[%s54 + $0xbc] sm:%s46] %v149
        %v151 = vld [vmem:[%s53 + $0xb4] sm:%s46]
        %152 = vst [vmem:[%s54 + $0xc0] sm:%s46] %v151
        %v153 = vld [vmem:[%s53 + $0xd0] sm:%s46]
        %154 = vst [vmem:[%s54 + $0xc4] sm:%s46] %v153
        %v155 = vld [vmem:[%s53 + $0xb8] sm:%s46]
        %156 = vst [vmem:[%s54 + $0xc8] sm:%s46] %v155
        %v157 = vld [vmem:[%s53 + $0xd4] sm:%s46]
        %158 = vst [vmem:[%s54 + $0xcc] sm:%s46] %v157
        %v159 = vld [vmem:[%s53 + $0xbc] sm:%s46]
        %160 = vst [vmem:[%s54 + $0xd0] sm:%s46] %v159
        %v161 = vld [vmem:[%s53 + $0xd8] sm:%s46]
        %162 = vst [vmem:[%s54 + $0xd4] sm:%s46] %v161
        %v163 = vld [vmem:[%s53 + $0xc0] sm:%s46]
        %164 = vst [vmem:[%s54 + $0xd8] sm:%s46] %v163
        %v165 = vld [vmem:[%s53 + $0xdc] sm:%s46]
        %166 = vst [vmem:[%s54 + $0xdc] sm:%s46] %v165
        %v167 = vld [vmem:[%s53 + $0xe0] sm:%s46]
        %168 = vst [vmem:[%s54 + $0xe0] sm:%s46] %v167
        %v169 = vld [vmem:[%s53 + $0xfc] sm:%s46]
        %170 = vst [vmem:[%s54 + $0xe4] sm:%s46] %v169
        %v171 = vld [vmem:[%s53 + $0xe4] sm:%s46]
        %172 = vst [vmem:[%s54 + $0xe8] sm:%s46] %v171
        %v173 = vld [vmem:[%s53 + $0x100] sm:%s46]
        %174 = vst [vmem:[%s54 + $0xec] sm:%s46] %v173
        %v175 = vld [vmem:[%s53 + $0xe8] sm:%s46]
        %176 = vst [vmem:[%s54 + $0xf0] sm:%s46] %v175
        %v177 = vld [vmem:[%s53 + $0x104] sm:%s46]
        %178 = vst [vmem:[%s54 + $0xf4] sm:%s46] %v177
        %v179 = vld [vmem:[%s53 + $0xec] sm:%s46]
        %180 = vst [vmem:[%s54 + $0xf8] sm:%s46] %v179
        %v181 = vld [vmem:[%s53 + $0x108] sm:%s46]
        %182 = vst [vmem:[%s54 + $0xfc] sm:%s46] %v181
        %v183 = vld [vmem:[%s53 + $0xf0] sm:%s46]
        %184 = vst [vmem:[%s54 + $0x100] sm:%s46] %v183
        %v185 = vld [vmem:[%s53 + $0x10c] sm:%s46]
        %186 = vst [vmem:[%s54 + $0x104] sm:%s46] %v185
        %v187 = vld [vmem:[%s53 + $0xf4] sm:%s46]
        %188 = vst [vmem:[%s54 + $0x108] sm:%s46] %v187
        %v189 = vld [vmem:[%s53 + $0x110] sm:%s46]
        %190 = vst [vmem:[%s54 + $0x10c] sm:%s46] %v189
        %v191 = vld [vmem:[%s53 + $0xf8] sm:%s46]
        %192 = vst [vmem:[%s54 + $0x110] sm:%s46] %v191
        %v193 = vld [vmem:[%s53 + $0x114] sm:%s46]
        %194 = vst [vmem:[%s54 + $0x114] sm:%s46] %v193
        %v195 = vld [vmem:[%s53 + $0x118] sm:%s46]
        %196 = vst [vmem:[%s54 + $0x118] sm:%s46] %v195
        %v197 = vld [vmem:[%s53 + $0x134] sm:%s46]
        %198 = vst [vmem:[%s54 + $0x11c] sm:%s46] %v197
        %v199 = vld [vmem:[%s53 + $0x11c] sm:%s46]
        %200 = vst [vmem:[%s54 + $0x120] sm:%s46] %v199
        %v201 = vld [vmem:[%s53 + $0x138] sm:%s46]
        %202 = vst [vmem:[%s54 + $0x124] sm:%s46] %v201
        %v203 = vld [vmem:[%s53 + $0x120] sm:%s46]
        %204 = vst [vmem:[%s54 + $0x128] sm:%s46] %v203
        %v205 = vld [vmem:[%s53 + $0x13c] sm:%s46]
        %206 = vst [vmem:[%s54 + $0x12c] sm:%s46] %v205
        %v207 = vld [vmem:[%s53 + $0x124] sm:%s46]
        %208 = vst [vmem:[%s54 + $0x130] sm:%s46] %v207
        %v209 = vld [vmem:[%s53 + $0x140] sm:%s46]
        %210 = vst [vmem:[%s54 + $0x134] sm:%s46] %v209
        %v211 = vld [vmem:[%s53 + $0x128] sm:%s46]
        %212 = vst [vmem:[%s54 + $0x138] sm:%s46] %v211
        %v213 = vld [vmem:[%s53 + $0x144] sm:%s46]
        %214 = vst [vmem:[%s54 + $0x13c] sm:%s46] %v213
        %v215 = vld [vmem:[%s53 + $0x12c] sm:%s46]
        %216 = vst [vmem:[%s54 + $0x140] sm:%s46] %v215
        %v217 = vld [vmem:[%s53 + $0x148] sm:%s46]
        %218 = vst [vmem:[%s54 + $0x144] sm:%s46] %v217
        %v219 = vld [vmem:[%s53 + $0x130] sm:%s46]
        %220 = vst [vmem:[%s54 + $0x148] sm:%s46] %v219
        %v221 = vld [vmem:[%s53 + $0x14c] sm:%s46]
        %222 = vst [vmem:[%s54 + $0x14c] sm:%s46] %v221
        %v223 = vld [vmem:[%s53 + $0x150] sm:%s46]
        %224 = vst [vmem:[%s54 + $0x150] sm:%s46] %v223
        %v225 = vld [vmem:[%s53 + $0x16c] sm:%s46]
        %226 = vst [vmem:[%s54 + $0x154] sm:%s46] %v225
        %v227 = vld [vmem:[%s53 + $0x154] sm:%s46]
        %228 = vst [vmem:[%s54 + $0x158] sm:%s46] %v227
        %v229 = vld [vmem:[%s53 + $0x170] sm:%s46]
        %230 = vst [vmem:[%s54 + $0x15c] sm:%s46] %v229
        %v231 = vld [vmem:[%s53 + $0x158] sm:%s46]
        %232 = vst [vmem:[%s54 + $0x160] sm:%s46] %v231
        %v233 = vld [vmem:[%s53 + $0x174] sm:%s46]
        %234 = vst [vmem:[%s54 + $0x164] sm:%s46] %v233
        %v235 = vld [vmem:[%s53 + $0x15c] sm:%s46]
        %236 = vst [vmem:[%s54 + $0x168] sm:%s46] %v235
        %v237 = vld [vmem:[%s53 + $0x178] sm:%s46]
        %238 = vst [vmem:[%s54 + $0x16c] sm:%s46] %v237
        %v239 = vld [vmem:[%s53 + $0x160] sm:%s46]
        %240 = vst [vmem:[%s54 + $0x170] sm:%s46] %v239
        %v241 = vld [vmem:[%s53 + $0x17c] sm:%s46]
        %242 = vst [vmem:[%s54 + $0x174] sm:%s46] %v241
        %v243 = vld [vmem:[%s53 + $0x164] sm:%s46]
        %244 = vst [vmem:[%s54 + $0x178] sm:%s46] %v243
        %v245 = vld [vmem:[%s53 + $0x180] sm:%s46]
        %246 = vst [vmem:[%s54 + $0x17c] sm:%s46] %v245
        %v247 = vld [vmem:[%s53 + $0x168] sm:%s46]
        %248 = vst [vmem:[%s54 + $0x180] sm:%s46] %v247
        %v249 = vld [vmem:[%s53 + $0x184] sm:%s46]
        %250 = vst [vmem:[%s54 + $0x184] sm:%s46] %v249
        %v251 = vld [vmem:[%s53 + $0x188] sm:%s46]
        %252 = vst [vmem:[%s54 + $0x188] sm:%s46] %v251
        %v253 = vld [vmem:[%s53 + $0x1a4] sm:%s46]
        %254 = vst [vmem:[%s54 + $0x18c] sm:%s46] %v253
        %v255 = vld [vmem:[%s53 + $0x18c] sm:%s46]
        %256 = vst [vmem:[%s54 + $0x190] sm:%s46] %v255
        %v257 = vld [vmem:[%s53 + $0x1a8] sm:%s46]
        %258 = vst [vmem:[%s54 + $0x194] sm:%s46] %v257
        %v259 = vld [vmem:[%s53 + $0x190] sm:%s46]
        %260 = vst [vmem:[%s54 + $0x198] sm:%s46] %v259
        %v261 = vld [vmem:[%s53 + $0x1ac] sm:%s46]
        %262 = vst [vmem:[%s54 + $0x19c] sm:%s46] %v261
        %v263 = vld [vmem:[%s53 + $0x194] sm:%s46]
        %264 = vst [vmem:[%s54 + $0x1a0] sm:%s46] %v263
        %v265 = vld [vmem:[%s53 + $0x1b0] sm:%s46]
        %266 = vst [vmem:[%s54 + $0x1a4] sm:%s46] %v265
        %v267 = vld [vmem:[%s53 + $0x198] sm:%s46]
        %268 = vst [vmem:[%s54 + $0x1a8] sm:%s46] %v267
        %v269 = vld [vmem:[%s53 + $0x1b4] sm:%s46]
        %270 = vst [vmem:[%s54 + $0x1ac] sm:%s46] %v269
        %v271 = vld [vmem:[%s53 + $0x19c] sm:%s46]
        %272 = vst [vmem:[%s54 + $0x1b0] sm:%s46] %v271
        %v273 = vld [vmem:[%s53 + $0x1b8] sm:%s46]
        %274 = vst [vmem:[%s54 + $0x1b4] sm:%s46] %v273
        %v275 = vld [vmem:[%s53 + $0x1a0] sm:%s46]
        %276 = vst [vmem:[%s54 + $0x1b8] sm:%s46] %v275
        %v277 = vld [vmem:[%s53 + $0x1bc] sm:%s46]
        %278 = vst [vmem:[%s54 + $0x1bc] sm:%s46] %v277
        %v279 = vld [vmem:[%s53 + $0x1c0] sm:%s46]
        %280 = vst [vmem:[%s54 + $0x1c0] sm:%s46] %v279
        %v281 = vld [vmem:[%s53 + $0x1dc] sm:%s46]
        %282 = vst [vmem:[%s54 + $0x1c4] sm:%s46] %v281
        %v283 = vld [vmem:[%s53 + $0x1c4] sm:%s46]
        %284 = vst [vmem:[%s54 + $0x1c8] sm:%s46] %v283
        %v285 = vld [vmem:[%s53 + $0x1e0] sm:%s46]
        %286 = vst [vmem:[%s54 + $0x1cc] sm:%s46] %v285
        %v287 = vld [vmem:[%s53 + $0x1c8] sm:%s46]
        %288 = vst [vmem:[%s54 + $0x1d0] sm:%s46] %v287
        %v289 = vld [vmem:[%s53 + $0x1e4] sm:%s46]
        %290 = vst [vmem:[%s54 + $0x1d4] sm:%s46] %v289
        %v291 = vld [vmem:[%s53 + $0x1cc] sm:%s46]
        %292 = vst [vmem:[%s54 + $0x1d8] sm:%s46] %v291
        %v293 = vld [vmem:[%s53 + $0x1e8] sm:%s46]
        %294 = vst [vmem:[%s54 + $0x1dc] sm:%s46] %v293
        %v295 = vld [vmem:[%s53 + $0x1d0] sm:%s46]
        %296 = vst [vmem:[%s54 + $0x1e0] sm:%s46] %v295
        %v297 = vld [vmem:[%s53 + $0x1ec] sm:%s46]
        %298 = vst [vmem:[%s54 + $0x1e4] sm:%s46] %v297
        %v299 = vld [vmem:[%s53 + $0x1d4] sm:%s46]
        %300 = vst [vmem:[%s54 + $0x1e8] sm:%s46] %v299
        %v301 = vld [vmem:[%s53 + $0x1f0] sm:%s46]
        %302 = vst [vmem:[%s54 + $0x1ec] sm:%s46] %v301
        %v303 = vld [vmem:[%s53 + $0x1d8] sm:%s46]
        %304 = vst [vmem:[%s54 + $0x1f0] sm:%s46] %v303
        %v305 = vld [vmem:[%s53 + $0x1f4] sm:%s46]
        %306 = vst [vmem:[%s54 + $0x1f4] sm:%s46] %v305
        %v307 = vld [vmem:[%s53 + $0x1f8] sm:%s46]
        %308 = vst [vmem:[%s54 + $0x1f8] sm:%s46] %v307
        %v309 = vld [vmem:[%s53 + $0x214] sm:%s46]
        %310 = vst [vmem:[%s54 + $0x1fc] sm:%s46] %v309
        %v311 = vld [vmem:[%s53 + $0x1fc] sm:%s46]
        %312 = vst [vmem:[%s54 + $0x200] sm:%s46] %v311
        %v313 = vld [vmem:[%s53 + $0x218] sm:%s46]
        %314 = vst [vmem:[%s54 + $0x204] sm:%s46] %v313
        %v315 = vld [vmem:[%s53 + $0x200] sm:%s46]
        %316 = vst [vmem:[%s54 + $0x208] sm:%s46] %v315
        %v317 = vld [vmem:[%s53 + $0x21c] sm:%s46]
        %318 = vst [vmem:[%s54 + $0x20c] sm:%s46] %v317
        %v319 = vld [vmem:[%s53 + $0x204] sm:%s46]
        %320 = vst [vmem:[%s54 + $0x210] sm:%s46] %v319
        %v321 = vld [vmem:[%s53 + $0x220] sm:%s46]
        %322 = vst [vmem:[%s54 + $0x214] sm:%s46] %v321
        %v323 = vld [vmem:[%s53 + $0x208] sm:%s46]
        %324 = vst [vmem:[%s54 + $0x218] sm:%s46] %v323
        %v325 = vld [vmem:[%s53 + $0x224] sm:%s46]
        %326 = vst [vmem:[%s54 + $0x21c] sm:%s46] %v325
        %v327 = vld [vmem:[%s53 + $0x20c] sm:%s46]
        %328 = vst [vmem:[%s54 + $0x220] sm:%s46] %v327
        %v329 = vld [vmem:[%s53 + $0x228] sm:%s46]
        %330 = vst [vmem:[%s54 + $0x224] sm:%s46] %v329
        %v331 = vld [vmem:[%s53 + $0x210] sm:%s46]
        %332 = vst [vmem:[%s54 + $0x228] sm:%s46] %v331
        %v333 = vld [vmem:[%s53 + $0x22c] sm:%s46]
        %334 = vst [vmem:[%s54 + $0x22c] sm:%s46] %v333
        %v335 = vld [vmem:[%s53 + $0x230] sm:%s46]
        %336 = vst [vmem:[%s54 + $0x230] sm:%s46] %v335
        %v337 = vld [vmem:[%s53 + $0x24c] sm:%s46]
        %338 = vst [vmem:[%s54 + $0x234] sm:%s46] %v337
        %v339 = vld [vmem:[%s53 + $0x234] sm:%s46]
        %340 = vst [vmem:[%s54 + $0x238] sm:%s46] %v339
        %v341 = vld [vmem:[%s53 + $0x250] sm:%s46]
        %342 = vst [vmem:[%s54 + $0x23c] sm:%s46] %v341
        %v343 = vld [vmem:[%s53 + $0x238] sm:%s46]
        %344 = vst [vmem:[%s54 + $0x240] sm:%s46] %v343
        %v345 = vld [vmem:[%s53 + $0x254] sm:%s46]
        %346 = vst [vmem:[%s54 + $0x244] sm:%s46] %v345
        %v347 = vld [vmem:[%s53 + $0x23c] sm:%s46]
        %348 = vst [vmem:[%s54 + $0x248] sm:%s46] %v347
        %v349 = vld [vmem:[%s53 + $0x258] sm:%s46]
        %350 = vst [vmem:[%s54 + $0x24c] sm:%s46] %v349
        %v351 = vld [vmem:[%s53 + $0x240] sm:%s46]
        %352 = vst [vmem:[%s54 + $0x250] sm:%s46] %v351
        %v353 = vld [vmem:[%s53 + $0x25c] sm:%s46]
        %354 = vst [vmem:[%s54 + $0x254] sm:%s46] %v353
        %v355 = vld [vmem:[%s53 + $0x244] sm:%s46]
        %356 = vst [vmem:[%s54 + $0x258] sm:%s46] %v355
        %v357 = vld [vmem:[%s53 + $0x260] sm:%s46]
        %358 = vst [vmem:[%s54 + $0x25c] sm:%s46] %v357
        %v359 = vld [vmem:[%s53 + $0x248] sm:%s46]
        %360 = vst [vmem:[%s54 + $0x260] sm:%s46] %v359
        %v361 = vld [vmem:[%s53 + $0x264] sm:%s46]
        %362 = vst [vmem:[%s54 + $0x264] sm:%s46] %v361
        %v363 = vld [vmem:[%s53 + $0x268] sm:%s46]
        %364 = vst [vmem:[%s54 + $0x268] sm:%s46] %v363
        %v365 = vld [vmem:[%s53 + $0x284] sm:%s46]
        %366 = vst [vmem:[%s54 + $0x26c] sm:%s46] %v365
        %v367 = vld [vmem:[%s53 + $0x26c] sm:%s46]
        %368 = vst [vmem:[%s54 + $0x270] sm:%s46] %v367
        %v369 = vld [vmem:[%s53 + $0x288] sm:%s46]
        %370 = vst [vmem:[%s54 + $0x274] sm:%s46] %v369
        %v371 = vld [vmem:[%s53 + $0x270] sm:%s46]
        %372 = vst [vmem:[%s54 + $0x278] sm:%s46] %v371
        %v373 = vld [vmem:[%s53 + $0x28c] sm:%s46]
        %374 = vst [vmem:[%s54 + $0x27c] sm:%s46] %v373
        %v375 = vld [vmem:[%s53 + $0x274] sm:%s46]
        %376 = vst [vmem:[%s54 + $0x280] sm:%s46] %v375
        %v377 = vld [vmem:[%s53 + $0x290] sm:%s46]
        %378 = vst [vmem:[%s54 + $0x284] sm:%s46] %v377
        %v379 = vld [vmem:[%s53 + $0x278] sm:%s46]
        %380 = vst [vmem:[%s54 + $0x288] sm:%s46] %v379
        %v381 = vld [vmem:[%s53 + $0x294] sm:%s46]
        %382 = vst [vmem:[%s54 + $0x28c] sm:%s46] %v381
        %v383 = vld [vmem:[%s53 + $0x27c] sm:%s46]
        %384 = vst [vmem:[%s54 + $0x290] sm:%s46] %v383
        %v385 = vld [vmem:[%s53 + $0x298] sm:%s46]
        %386 = vst [vmem:[%s54 + $0x294] sm:%s46] %v385
        %v387 = vld [vmem:[%s53 + $0x280] sm:%s46]
        %388 = vst [vmem:[%s54 + $0x298] sm:%s46] %v387
        %v389 = vld [vmem:[%s53 + $0x29c] sm:%s46]
        %390 = vst [vmem:[%s54 + $0x29c] sm:%s46] %v389
        %v391 = vld [vmem:[%s53 + $0x2a0] sm:%s46]
        %392 = vst [vmem:[%s54 + $0x2a0] sm:%s46] %v391
        %v393 = vld [vmem:[%s53 + $0x2bc] sm:%s46]
        %394 = vst [vmem:[%s54 + $0x2a4] sm:%s46] %v393
        %v395 = vld [vmem:[%s53 + $0x2a4] sm:%s46]
        %396 = vst [vmem:[%s54 + $0x2a8] sm:%s46] %v395
        %v397 = vld [vmem:[%s53 + $0x2c0] sm:%s46]
        %398 = vst [vmem:[%s54 + $0x2ac] sm:%s46] %v397
        %v399 = vld [vmem:[%s53 + $0x2a8] sm:%s46]
        %400 = vst [vmem:[%s54 + $0x2b0] sm:%s46] %v399
        %v401 = vld [vmem:[%s53 + $0x2c4] sm:%s46]
        %402 = vst [vmem:[%s54 + $0x2b4] sm:%s46] %v401
        %v403 = vld [vmem:[%s53 + $0x2ac] sm:%s46]
        %404 = vst [vmem:[%s54 + $0x2b8] sm:%s46] %v403
        %v405 = vld [vmem:[%s53 + $0x2c8] sm:%s46]
        %406 = vst [vmem:[%s54 + $0x2bc] sm:%s46] %v405
        %v407 = vld [vmem:[%s53 + $0x2b0] sm:%s46]
        %408 = vst [vmem:[%s54 + $0x2c0] sm:%s46] %v407
        %v409 = vld [vmem:[%s53 + $0x2cc] sm:%s46]
        %410 = vst [vmem:[%s54 + $0x2c4] sm:%s46] %v409
        %v411 = vld [vmem:[%s53 + $0x2b4] sm:%s46]
        %412 = vst [vmem:[%s54 + $0x2c8] sm:%s46] %v411
        %v413 = vld [vmem:[%s53 + $0x2d0] sm:%s46]
        %414 = vst [vmem:[%s54 + $0x2cc] sm:%s46] %v413
        %v415 = vld [vmem:[%s53 + $0x2b8] sm:%s46]
        %416 = vst [vmem:[%s54 + $0x2d0] sm:%s46] %v415
        %v417 = vld [vmem:[%s53 + $0x2d4] sm:%s46]
        %418 = vst [vmem:[%s54 + $0x2d4] sm:%s46] %v417
        %v419 = vld [vmem:[%s53 + $0x2d8] sm:%s46]
        %420 = vst [vmem:[%s54 + $0x2d8] sm:%s46] %v419
        %v421 = vld [vmem:[%s53 + $0x2f4] sm:%s46]
        %422 = vst [vmem:[%s54 + $0x2dc] sm:%s46] %v421
        %v423 = vld [vmem:[%s53 + $0x2dc] sm:%s46]
        %424 = vst [vmem:[%s54 + $0x2e0] sm:%s46] %v423
        %v425 = vld [vmem:[%s53 + $0x2f8] sm:%s46]
        %426 = vst [vmem:[%s54 + $0x2e4] sm:%s46] %v425
        %v427 = vld [vmem:[%s53 + $0x2e0] sm:%s46]
        %428 = vst [vmem:[%s54 + $0x2e8] sm:%s46] %v427
        %v429 = vld [vmem:[%s53 + $0x2fc] sm:%s46]
        %430 = vst [vmem:[%s54 + $0x2ec] sm:%s46] %v429
        %v431 = vld [vmem:[%s53 + $0x2e4] sm:%s46]
        %432 = vst [vmem:[%s54 + $0x2f0] sm:%s46] %v431
        %v433 = vld [vmem:[%s53 + $0x300] sm:%s46]
        %434 = vst [vmem:[%s54 + $0x2f4] sm:%s46] %v433
        %v435 = vld [vmem:[%s53 + $0x2e8] sm:%s46]
        %436 = vst [vmem:[%s54 + $0x2f8] sm:%s46] %v435
        %v437 = vld [vmem:[%s53 + $0x304] sm:%s46]
        %438 = vst [vmem:[%s54 + $0x2fc] sm:%s46] %v437
        %v439 = vld [vmem:[%s53 + $0x2ec] sm:%s46]
        %440 = vst [vmem:[%s54 + $0x300] sm:%s46] %v439
        %v441 = vld [vmem:[%s53 + $0x308] sm:%s46]
        %442 = vst [vmem:[%s54 + $0x304] sm:%s46] %v441
        %v443 = vld [vmem:[%s53 + $0x2f0] sm:%s46]
        %444 = vst [vmem:[%s54 + $0x308] sm:%s46] %v443
        %v445 = vld [vmem:[%s53 + $0x30c] sm:%s46]
        %446 = vst [vmem:[%s54 + $0x30c] sm:%s46] %v445
        %v447 = vld [vmem:[%s53 + $0x310] sm:%s46]
        %448 = vst [vmem:[%s54 + $0x310] sm:%s46] %v447
        %v449 = vld [vmem:[%s53 + $0x32c] sm:%s46]
        %450 = vst [vmem:[%s54 + $0x314] sm:%s46] %v449
        %v451 = vld [vmem:[%s53 + $0x314] sm:%s46]
        %452 = vst [vmem:[%s54 + $0x318] sm:%s46] %v451
        %v453 = vld [vmem:[%s53 + $0x330] sm:%s46]
        %454 = vst [vmem:[%s54 + $0x31c] sm:%s46] %v453
        %v455 = vld [vmem:[%s53 + $0x318] sm:%s46]
        %456 = vst [vmem:[%s54 + $0x320] sm:%s46] %v455
        %v457 = vld [vmem:[%s53 + $0x334] sm:%s46]
        %458 = vst [vmem:[%s54 + $0x324] sm:%s46] %v457
        %v459 = vld [vmem:[%s53 + $0x31c] sm:%s46]
        %460 = vst [vmem:[%s54 + $0x328] sm:%s46] %v459
        %v461 = vld [vmem:[%s53 + $0x338] sm:%s46]
        %462 = vst [vmem:[%s54 + $0x32c] sm:%s46] %v461
        %v463 = vld [vmem:[%s53 + $0x320] sm:%s46]
        %464 = vst [vmem:[%s54 + $0x330] sm:%s46] %v463
        %v465 = vld [vmem:[%s53 + $0x33c] sm:%s46]
        %466 = vst [vmem:[%s54 + $0x334] sm:%s46] %v465
        %v467 = vld [vmem:[%s53 + $0x324] sm:%s46]
        %468 = vst [vmem:[%s54 + $0x338] sm:%s46] %v467
        %v469 = vld [vmem:[%s53 + $0x340] sm:%s46]
        %470 = vst [vmem:[%s54 + $0x33c] sm:%s46] %v469
        %v471 = vld [vmem:[%s53 + $0x328] sm:%s46]
        %472 = vst [vmem:[%s54 + $0x340] sm:%s46] %v471
        %v473 = vld [vmem:[%s53 + $0x344] sm:%s46]
        %474 = vst [vmem:[%s54 + $0x344] sm:%s46] %v473
        %v475 = vld [vmem:[%s53 + $0x348] sm:%s46]
        %476 = vst [vmem:[%s54 + $0x348] sm:%s46] %v475
        %v477 = vld [vmem:[%s53 + $0x364] sm:%s46]
        %478 = vst [vmem:[%s54 + $0x34c] sm:%s46] %v477
        %v479 = vld [vmem:[%s53 + $0x34c] sm:%s46]
        %480 = vst [vmem:[%s54 + $0x350] sm:%s46] %v479
        %v481 = vld [vmem:[%s53 + $0x368] sm:%s46]
        %482 = vst [vmem:[%s54 + $0x354] sm:%s46] %v481
        %v483 = vld [vmem:[%s53 + $0x350] sm:%s46]
        %484 = vst [vmem:[%s54 + $0x358] sm:%s46] %v483
        %v485 = vld [vmem:[%s53 + $0x36c] sm:%s46]
        %486 = vst [vmem:[%s54 + $0x35c] sm:%s46] %v485
        %v487 = vld [vmem:[%s53 + $0x354] sm:%s46]
        %488 = vst [vmem:[%s54 + $0x360] sm:%s46] %v487
        %v489 = vld [vmem:[%s53 + $0x370] sm:%s46]
        %490 = vst [vmem:[%s54 + $0x364] sm:%s46] %v489
        %v491 = vld [vmem:[%s53 + $0x358] sm:%s46]
        %492 = vst [vmem:[%s54 + $0x368] sm:%s46] %v491
        %v493 = vld [vmem:[%s53 + $0x374] sm:%s46]
        %494 = vst [vmem:[%s54 + $0x36c] sm:%s46] %v493
        %v495 = vld [vmem:[%s53 + $0x35c] sm:%s46]
        %496 = vst [vmem:[%s54 + $0x370] sm:%s46] %v495
        %v497 = vld [vmem:[%s53 + $0x378] sm:%s46]
        %498 = vst [vmem:[%s54 + $0x374] sm:%s46] %v497
        %v499 = vld [vmem:[%s53 + $0x360] sm:%s46]
        %500 = vst [vmem:[%s54 + $0x378] sm:%s46] %v499
        %v501 = vld [vmem:[%s53 + $0x37c] sm:%s46]
        %502 = vst [vmem:[%s54 + $0x37c] sm:%s46] %v501
        %v503 = vld [vmem:[%s53 + $0x380] sm:%s46]
        %504 = vst [vmem:[%s54 + $0x380] sm:%s46] %v503
        %v505 = vld [vmem:[%s53 + $0x39c] sm:%s46]
        %506 = vst [vmem:[%s54 + $0x384] sm:%s46] %v505
        %v507 = vld [vmem:[%s53 + $0x384] sm:%s46]
        %508 = vst [vmem:[%s54 + $0x388] sm:%s46] %v507
        %v509 = vld [vmem:[%s53 + $0x3a0] sm:%s46]
        %510 = vst [vmem:[%s54 + $0x38c] sm:%s46] %v509
        %v511 = vld [vmem:[%s53 + $0x388] sm:%s46]
        %512 = vst [vmem:[%s54 + $0x390] sm:%s46] %v511
        %v513 = vld [vmem:[%s53 + $0x3a4] sm:%s46]
        %514 = vst [vmem:[%s54 + $0x394] sm:%s46] %v513
        %v515 = vld [vmem:[%s53 + $0x38c] sm:%s46]
        %516 = vst [vmem:[%s54 + $0x398] sm:%s46] %v515
        %v517 = vld [vmem:[%s53 + $0x3a8] sm:%s46]
        %518 = vst [vmem:[%s54 + $0x39c] sm:%s46] %v517
        %v519 = vld [vmem:[%s53 + $0x390] sm:%s46]
        %520 = vst [vmem:[%s54 + $0x3a0] sm:%s46] %v519
        %v521 = vld [vmem:[%s53 + $0x3ac] sm:%s46]
        %522 = vst [vmem:[%s54 + $0x3a4] sm:%s46] %v521
        %v523 = vld [vmem:[%s53 + $0x394] sm:%s46]
        %524 = vst [vmem:[%s54 + $0x3a8] sm:%s46] %v523
        %v525 = vld [vmem:[%s53 + $0x3b0] sm:%s46]
        %526 = vst [vmem:[%s54 + $0x3ac] sm:%s46] %v525
        %v527 = vld [vmem:[%s53 + $0x398] sm:%s46]
        %528 = vst [vmem:[%s54 + $0x3b0] sm:%s46] %v527
        %v529 = vld [vmem:[%s53 + $0x3b4] sm:%s46]
        %530 = vst [vmem:[%s54 + $0x3b4] sm:%s46] %v529
        %v531 = vld [vmem:[%s53 + $0x3b8] sm:%s46]
        %532 = vst [vmem:[%s54 + $0x3b8] sm:%s46] %v531
        %v533 = vld [vmem:[%s53 + $0x3d4] sm:%s46]
        %534 = vst [vmem:[%s54 + $0x3bc] sm:%s46] %v533
        %v535 = vld [vmem:[%s53 + $0x3bc] sm:%s46]
        %536 = vst [vmem:[%s54 + $0x3c0] sm:%s46] %v535
        %v537 = vld [vmem:[%s53 + $0x3d8] sm:%s46]
        %538 = vst [vmem:[%s54 + $0x3c4] sm:%s46] %v537
        %v539 = vld [vmem:[%s53 + $0x3c0] sm:%s46]
        %540 = vst [vmem:[%s54 + $0x3c8] sm:%s46] %v539
        %v541 = vld [vmem:[%s53 + $0x3dc] sm:%s46]
        %542 = vst [vmem:[%s54 + $0x3cc] sm:%s46] %v541
        %v543 = vld [vmem:[%s53 + $0x3c4] sm:%s46]
        %544 = vst [vmem:[%s54 + $0x3d0] sm:%s46] %v543
        %v545 = vld [vmem:[%s53 + $0x3e0] sm:%s46]
        %546 = vst [vmem:[%s54 + $0x3d4] sm:%s46] %v545
        %v547 = vld [vmem:[%s53 + $0x3c8] sm:%s46]
        %548 = vst [vmem:[%s54 + $0x3d8] sm:%s46] %v547
        %v549 = vld [vmem:[%s53 + $0x3e4] sm:%s46]
        %550 = vst [vmem:[%s54 + $0x3dc] sm:%s46] %v549
        %v551 = vld [vmem:[%s53 + $0x3cc] sm:%s46]
        %552 = vst [vmem:[%s54 + $0x3e0] sm:%s46] %v551
        %v553 = vld [vmem:[%s53 + $0x3e8] sm:%s46]
        %554 = vst [vmem:[%s54 + $0x3e4] sm:%s46] %v553
        %v555 = vld [vmem:[%s53 + $0x3d0] sm:%s46]
        %556 = vst [vmem:[%s54 + $0x3e8] sm:%s46] %v555
        %v557 = vld [vmem:[%s53 + $0x3ec] sm:%s46]
        %558 = vst [vmem:[%s54 + $0x3ec] sm:%s46] %v557
        %v559 = vld [vmem:[%s53 + $0x3f0] sm:%s46]
        %560 = vst [vmem:[%s54 + $0x3f0] sm:%s46] %v559
        %v561 = vld [vmem:[%s53 + $0x40c] sm:%s46]
        %562 = vst [vmem:[%s54 + $0x3f4] sm:%s46] %v561
        %v563 = vld [vmem:[%s53 + $0x3f4] sm:%s46]
        %564 = vst [vmem:[%s54 + $0x3f8] sm:%s46] %v563
        %v565 = vld [vmem:[%s53 + $0x410] sm:%s46]
        %566 = vst [vmem:[%s54 + $0x3fc] sm:%s46] %v565
        %v567 = vld [vmem:[%s53 + $0x3f8] sm:%s46]
        %568 = vst [vmem:[%s54 + $0x400] sm:%s46] %v567
        %v569 = vld [vmem:[%s53 + $0x414] sm:%s46]
        %570 = vst [vmem:[%s54 + $0x404] sm:%s46] %v569
        %v571 = vld [vmem:[%s53 + $0x3fc] sm:%s46]
        %572 = vst [vmem:[%s54 + $0x408] sm:%s46] %v571
        %v573 = vld [vmem:[%s53 + $0x418] sm:%s46]
        %574 = vst [vmem:[%s54 + $0x40c] sm:%s46] %v573
        %v575 = vld [vmem:[%s53 + $0x400] sm:%s46]
        %576 = vst [vmem:[%s54 + $0x410] sm:%s46] %v575
        %v577 = vld [vmem:[%s53 + $0x41c] sm:%s46]
        %578 = vst [vmem:[%s54 + $0x414] sm:%s46] %v577
        %v579 = vld [vmem:[%s53 + $0x404] sm:%s46]
        %580 = vst [vmem:[%s54 + $0x418] sm:%s46] %v579
        %v581 = vld [vmem:[%s53 + $0x420] sm:%s46]
        %582 = vst [vmem:[%s54 + $0x41c] sm:%s46] %v581
        %v583 = vld [vmem:[%s53 + $0x408] sm:%s46]
        %584 = vst [vmem:[%s54 + $0x420] sm:%s46] %v583
        %v585 = vld [vmem:[%s53 + $0x424] sm:%s46]
        %586 = vst [vmem:[%s54 + $0x424] sm:%s46] %v585
        %v587 = vld [vmem:[%s53 + $0x428] sm:%s46]
        %588 = vst [vmem:[%s54 + $0x428] sm:%s46] %v587
        %v589 = vld [vmem:[%s53 + $0x444] sm:%s46]
        %590 = vst [vmem:[%s54 + $0x42c] sm:%s46] %v589
        %v591 = vld [vmem:[%s53 + $0x42c] sm:%s46]
        %592 = vst [vmem:[%s54 + $0x430] sm:%s46] %v591
        %v593 = vld [vmem:[%s53 + $0x448] sm:%s46]
        %594 = vst [vmem:[%s54 + $0x434] sm:%s46] %v593
        %v595 = vld [vmem:[%s53 + $0x430] sm:%s46]
        %596 = vst [vmem:[%s54 + $0x438] sm:%s46] %v595
        %v597 = vld [vmem:[%s53 + $0x44c] sm:%s46]
        %598 = vst [vmem:[%s54 + $0x43c] sm:%s46] %v597
        %v599 = vld [vmem:[%s53 + $0x434] sm:%s46]
        %600 = vst [vmem:[%s54 + $0x440] sm:%s46] %v599
        %v601 = vld [vmem:[%s53 + $0x450] sm:%s46]
        %602 = vst [vmem:[%s54 + $0x444] sm:%s46] %v601
        %v603 = vld [vmem:[%s53 + $0x438] sm:%s46]
        %604 = vst [vmem:[%s54 + $0x448] sm:%s46] %v603
        %v605 = vld [vmem:[%s53 + $0x454] sm:%s46]
        %606 = vst [vmem:[%s54 + $0x44c] sm:%s46] %v605
        %v607 = vld [vmem:[%s53 + $0x43c] sm:%s46]
        %608 = vst [vmem:[%s54 + $0x450] sm:%s46] %v607
        %v609 = vld [vmem:[%s53 + $0x458] sm:%s46]
        %610 = vst [vmem:[%s54 + $0x454] sm:%s46] %v609
        %v611 = vld [vmem:[%s53 + $0x440] sm:%s46]
        %612 = vst [vmem:[%s54 + $0x458] sm:%s46] %v611
        %v613 = vld [vmem:[%s53 + $0x45c] sm:%s46]
        %614 = vst [vmem:[%s54 + $0x45c] sm:%s46] %v613
        %v615 = vld [vmem:[%s53 + $0x460] sm:%s46]
        %616 = vst [vmem:[%s54 + $0x460] sm:%s46] %v615
        %v617 = vld [vmem:[%s53 + $0x47c] sm:%s46]
        %618 = vst [vmem:[%s54 + $0x464] sm:%s46] %v617
        %v619 = vld [vmem:[%s53 + $0x464] sm:%s46]
        %620 = vst [vmem:[%s54 + $0x468] sm:%s46] %v619
        %v621 = vld [vmem:[%s53 + $0x480] sm:%s46]
        %622 = vst [vmem:[%s54 + $0x46c] sm:%s46] %v621
        %v623 = vld [vmem:[%s53 + $0x468] sm:%s46]
        %624 = vst [vmem:[%s54 + $0x470] sm:%s46] %v623
        %v625 = vld [vmem:[%s53 + $0x484] sm:%s46]
        %626 = vst [vmem:[%s54 + $0x474] sm:%s46] %v625
        %v627 = vld [vmem:[%s53 + $0x46c] sm:%s46]
        %628 = vst [vmem:[%s54 + $0x478] sm:%s46] %v627
        %v629 = vld [vmem:[%s53 + $0x488] sm:%s46]
        %630 = vst [vmem:[%s54 + $0x47c] sm:%s46] %v629
        %v631 = vld [vmem:[%s53 + $0x470] sm:%s46]
        %632 = vst [vmem:[%s54 + $0x480] sm:%s46] %v631
        %v633 = vld [vmem:[%s53 + $0x48c] sm:%s46]
        %634 = vst [vmem:[%s54 + $0x484] sm:%s46] %v633
        %v635 = vld [vmem:[%s53 + $0x474] sm:%s46]
        %636 = vst [vmem:[%s54 + $0x488] sm:%s46] %v635
        %v637 = vld [vmem:[%s53 + $0x490] sm:%s46]
        %638 = vst [vmem:[%s54 + $0x48c] sm:%s46] %v637
        %v639 = vld [vmem:[%s53 + $0x478] sm:%s46]
        %640 = vst [vmem:[%s54 + $0x490] sm:%s46] %v639
        %v641 = vld [vmem:[%s53 + $0x494] sm:%s46]
        %642 = vst [vmem:[%s54 + $0x494] sm:%s46] %v641
        %v643 = vld [vmem:[%s53 + $0x498] sm:%s46]
        %644 = vst [vmem:[%s54 + $0x498] sm:%s46] %v643
        %v645 = vld [vmem:[%s53 + $0x4b4] sm:%s46]
        %646 = vst [vmem:[%s54 + $0x49c] sm:%s46] %v645
        %v647 = vld [vmem:[%s53 + $0x49c] sm:%s46]
        %648 = vst [vmem:[%s54 + $0x4a0] sm:%s46] %v647
        %v649 = vld [vmem:[%s53 + $0x4b8] sm:%s46]
        %650 = vst [vmem:[%s54 + $0x4a4] sm:%s46] %v649
        %v651 = vld [vmem:[%s53 + $0x4a0] sm:%s46]
        %652 = vst [vmem:[%s54 + $0x4a8] sm:%s46] %v651
        %v653 = vld [vmem:[%s53 + $0x4bc] sm:%s46]
        %654 = vst [vmem:[%s54 + $0x4ac] sm:%s46] %v653
        %v655 = vld [vmem:[%s53 + $0x4a4] sm:%s46]
        %656 = vst [vmem:[%s54 + $0x4b0] sm:%s46] %v655
        %v657 = vld [vmem:[%s53 + $0x4c0] sm:%s46]
        %658 = vst [vmem:[%s54 + $0x4b4] sm:%s46] %v657
        %v659 = vld [vmem:[%s53 + $0x4a8] sm:%s46]
        %660 = vst [vmem:[%s54 + $0x4b8] sm:%s46] %v659
        %v661 = vld [vmem:[%s53 + $0x4c4] sm:%s46]
        %662 = vst [vmem:[%s54 + $0x4bc] sm:%s46] %v661
        %v663 = vld [vmem:[%s53 + $0x4ac] sm:%s46]
        %664 = vst [vmem:[%s54 + $0x4c0] sm:%s46] %v663
        %v665 = vld [vmem:[%s53 + $0x4c8] sm:%s46]
        %666 = vst [vmem:[%s54 + $0x4c4] sm:%s46] %v665
        %v667 = vld [vmem:[%s53 + $0x4b0] sm:%s46]
        %668 = vst [vmem:[%s54 + $0x4c8] sm:%s46] %v667
        %v669 = vld [vmem:[%s53 + $0x4cc] sm:%s46]
        %670 = vst [vmem:[%s54 + $0x4cc] sm:%s46] %v669
        %v671 = vld [vmem:[%s53 + $0x4d0] sm:%s46]
        %672 = vst [vmem:[%s54 + $0x4d0] sm:%s46] %v671
        %v673 = vld [vmem:[%s53 + $0x4ec] sm:%s46]
        %674 = vst [vmem:[%s54 + $0x4d4] sm:%s46] %v673
        %v675 = vld [vmem:[%s53 + $0x4d4] sm:%s46]
        %676 = vst [vmem:[%s54 + $0x4d8] sm:%s46] %v675
        %v677 = vld [vmem:[%s53 + $0x4f0] sm:%s46]
        %678 = vst [vmem:[%s54 + $0x4dc] sm:%s46] %v677
        %v679 = vld [vmem:[%s53 + $0x4d8] sm:%s46]
        %680 = vst [vmem:[%s54 + $0x4e0] sm:%s46] %v679
        %v681 = vld [vmem:[%s53 + $0x4f4] sm:%s46]
        %682 = vst [vmem:[%s54 + $0x4e4] sm:%s46] %v681
        %v683 = vld [vmem:[%s53 + $0x4dc] sm:%s46]
        %684 = vst [vmem:[%s54 + $0x4e8] sm:%s46] %v683
        %v685 = vld [vmem:[%s53 + $0x4f8] sm:%s46]
        %686 = vst [vmem:[%s54 + $0x4ec] sm:%s46] %v685
        %v687 = vld [vmem:[%s53 + $0x4e0] sm:%s46]
        %688 = vst [vmem:[%s54 + $0x4f0] sm:%s46] %v687
        %v689 = vld [vmem:[%s53 + $0x4fc] sm:%s46]
        %690 = vst [vmem:[%s54 + $0x4f4] sm:%s46] %v689
        %v691 = vld [vmem:[%s53 + $0x4e4] sm:%s46]
        %692 = vst [vmem:[%s54 + $0x4f8] sm:%s46] %v691
        %v693 = vld [vmem:[%s53 + $0x500] sm:%s46]
        %694 = vst [vmem:[%s54 + $0x4fc] sm:%s46] %v693
        %v695 = vld [vmem:[%s53 + $0x4e8] sm:%s46]
        %696 = vst [vmem:[%s54 + $0x500] sm:%s46] %v695
        %v697 = vld [vmem:[%s53 + $0x504] sm:%s46]
        %698 = vst [vmem:[%s54 + $0x504] sm:%s46] %v697
        %v699 = vld [vmem:[%s53 + $0x508] sm:%s46]
        %700 = vst [vmem:[%s54 + $0x508] sm:%s46] %v699
        %v701 = vld [vmem:[%s53 + $0x524] sm:%s46]
        %702 = vst [vmem:[%s54 + $0x50c] sm:%s46] %v701
        %v703 = vld [vmem:[%s53 + $0x50c] sm:%s46]
        %704 = vst [vmem:[%s54 + $0x510] sm:%s46] %v703
        %v705 = vld [vmem:[%s53 + $0x528] sm:%s46]
        %706 = vst [vmem:[%s54 + $0x514] sm:%s46] %v705
        %v707 = vld [vmem:[%s53 + $0x510] sm:%s46]
        %708 = vst [vmem:[%s54 + $0x518] sm:%s46] %v707
        %v709 = vld [vmem:[%s53 + $0x52c] sm:%s46]
        %710 = vst [vmem:[%s54 + $0x51c] sm:%s46] %v709
        %v711 = vld [vmem:[%s53 + $0x514] sm:%s46]
        %712 = vst [vmem:[%s54 + $0x520] sm:%s46] %v711
        %v713 = vld [vmem:[%s53 + $0x530] sm:%s46]
        %714 = vst [vmem:[%s54 + $0x524] sm:%s46] %v713
        %v715 = vld [vmem:[%s53 + $0x518] sm:%s46]
        %716 = vst [vmem:[%s54 + $0x528] sm:%s46] %v715
        %v717 = vld [vmem:[%s53 + $0x534] sm:%s46]
        %718 = vst [vmem:[%s54 + $0x52c] sm:%s46] %v717
        %v719 = vld [vmem:[%s53 + $0x51c] sm:%s46]
        %720 = vst [vmem:[%s54 + $0x530] sm:%s46] %v719
        %v721 = vld [vmem:[%s53 + $0x538] sm:%s46]
        %722 = vst [vmem:[%s54 + $0x534] sm:%s46] %v721
        %v723 = vld [vmem:[%s53 + $0x520] sm:%s46]
        %724 = vst [vmem:[%s54 + $0x538] sm:%s46] %v723
        %v725 = vld [vmem:[%s53 + $0x53c] sm:%s46]
        %726 = vst [vmem:[%s54 + $0x53c] sm:%s46] %v725
        %v727 = vld [vmem:[%s53 + $0x540] sm:%s46]
        %728 = vst [vmem:[%s54 + $0x540] sm:%s46] %v727
        %v729 = vld [vmem:[%s53 + $0x55c] sm:%s46]
        %730 = vst [vmem:[%s54 + $0x544] sm:%s46] %v729
        %v731 = vld [vmem:[%s53 + $0x544] sm:%s46]
        %732 = vst [vmem:[%s54 + $0x548] sm:%s46] %v731
        %v733 = vld [vmem:[%s53 + $0x560] sm:%s46]
        %734 = vst [vmem:[%s54 + $0x54c] sm:%s46] %v733
        %v735 = vld [vmem:[%s53 + $0x548] sm:%s46]
        %736 = vst [vmem:[%s54 + $0x550] sm:%s46] %v735
        %v737 = vld [vmem:[%s53 + $0x564] sm:%s46]
        %738 = vst [vmem:[%s54 + $0x554] sm:%s46] %v737
        %v739 = vld [vmem:[%s53 + $0x54c] sm:%s46]
        %740 = vst [vmem:[%s54 + $0x558] sm:%s46] %v739
        %v741 = vld [vmem:[%s53 + $0x568] sm:%s46]
        %742 = vst [vmem:[%s54 + $0x55c] sm:%s46] %v741
        %v743 = vld [vmem:[%s53 + $0x550] sm:%s46]
        %744 = vst [vmem:[%s54 + $0x560] sm:%s46] %v743
        %v745 = vld [vmem:[%s53 + $0x56c] sm:%s46]
        %746 = vst [vmem:[%s54 + $0x564] sm:%s46] %v745
        %v747 = vld [vmem:[%s53 + $0x554] sm:%s46]
        %748 = vst [vmem:[%s54 + $0x568] sm:%s46] %v747
        %v749 = vld [vmem:[%s53 + $0x570] sm:%s46]
        %750 = vst [vmem:[%s54 + $0x56c] sm:%s46] %v749
        %v751 = vld [vmem:[%s53 + $0x558] sm:%s46]
        %752 = vst [vmem:[%s54 + $0x570] sm:%s46] %v751
        %v753 = vld [vmem:[%s53 + $0x574] sm:%s46]
        %754 = vst [vmem:[%s54 + $0x574] sm:%s46] %v753
        %v755 = vld [vmem:[%s53 + $0x578] sm:%s46]
        %756 = vst [vmem:[%s54 + $0x578] sm:%s46] %v755
        %v757 = vld [vmem:[%s53 + $0x594] sm:%s46]
        %758 = vst [vmem:[%s54 + $0x57c] sm:%s46] %v757
        %v759 = vld [vmem:[%s53 + $0x57c] sm:%s46]
        %760 = vst [vmem:[%s54 + $0x580] sm:%s46] %v759
        %v761 = vld [vmem:[%s53 + $0x598] sm:%s46]
        %762 = vst [vmem:[%s54 + $0x584] sm:%s46] %v761
        %v763 = vld [vmem:[%s53 + $0x580] sm:%s46]
        %764 = vst [vmem:[%s54 + $0x588] sm:%s46] %v763
        %v765 = vld [vmem:[%s53 + $0x59c] sm:%s46]
        %766 = vst [vmem:[%s54 + $0x58c] sm:%s46] %v765
        %v767 = vld [vmem:[%s53 + $0x584] sm:%s46]
        %768 = vst [vmem:[%s54 + $0x590] sm:%s46] %v767
        %v769 = vld [vmem:[%s53 + $0x5a0] sm:%s46]
        %770 = vst [vmem:[%s54 + $0x594] sm:%s46] %v769
        %v771 = vld [vmem:[%s53 + $0x588] sm:%s46]
        %772 = vst [vmem:[%s54 + $0x598] sm:%s46] %v771
        %v773 = vld [vmem:[%s53 + $0x5a4] sm:%s46]
        %774 = vst [vmem:[%s54 + $0x59c] sm:%s46] %v773
        %v775 = vld [vmem:[%s53 + $0x58c] sm:%s46]
        %776 = vst [vmem:[%s54 + $0x5a0] sm:%s46] %v775
        %v777 = vld [vmem:[%s53 + $0x5a8] sm:%s46]
        %778 = vst [vmem:[%s54 + $0x5a4] sm:%s46] %v777
        %v779 = vld [vmem:[%s53 + $0x590] sm:%s46]
        %780 = vst [vmem:[%s54 + $0x5a8] sm:%s46] %v779
        %v781 = vld [vmem:[%s53 + $0x5ac] sm:%s46]
        %782 = vst [vmem:[%s54 + $0x5ac] sm:%s46] %v781
        %v783 = vld [vmem:[%s53 + $0x5b0] sm:%s46]
        %784 = vst [vmem:[%s54 + $0x5b0] sm:%s46] %v783
        %v785 = vld [vmem:[%s53 + $0x5cc] sm:%s46]
        %786 = vst [vmem:[%s54 + $0x5b4] sm:%s46] %v785
        %v787 = vld [vmem:[%s53 + $0x5b4] sm:%s46]
        %788 = vst [vmem:[%s54 + $0x5b8] sm:%s46] %v787
        %v789 = vld [vmem:[%s53 + $0x5d0] sm:%s46]
        %790 = vst [vmem:[%s54 + $0x5bc] sm:%s46] %v789
        %v791 = vld [vmem:[%s53 + $0x5b8] sm:%s46]
        %792 = vst [vmem:[%s54 + $0x5c0] sm:%s46] %v791
        %v793 = vld [vmem:[%s53 + $0x5d4] sm:%s46]
        %794 = vst [vmem:[%s54 + $0x5c4] sm:%s46] %v793
        %v795 = vld [vmem:[%s53 + $0x5bc] sm:%s46]
        %796 = vst [vmem:[%s54 + $0x5c8] sm:%s46] %v795
        %v797 = vld [vmem:[%s53 + $0x5d8] sm:%s46]
        %798 = vst [vmem:[%s54 + $0x5cc] sm:%s46] %v797
        %v799 = vld [vmem:[%s53 + $0x5c0] sm:%s46]
        %800 = vst [vmem:[%s54 + $0x5d0] sm:%s46] %v799
        %v801 = vld [vmem:[%s53 + $0x5dc] sm:%s46]
        %802 = vst [vmem:[%s54 + $0x5d4] sm:%s46] %v801
        %v803 = vld [vmem:[%s53 + $0x5c4] sm:%s46]
        %804 = vst [vmem:[%s54 + $0x5d8] sm:%s46] %v803
        %v805 = vld [vmem:[%s53 + $0x5e0] sm:%s46]
        %806 = vst [vmem:[%s54 + $0x5dc] sm:%s46] %v805
        %v807 = vld [vmem:[%s53 + $0x5c8] sm:%s46]
        %808 = vst [vmem:[%s54 + $0x5e0] sm:%s46] %v807
        %v809 = vld [vmem:[%s53 + $0x5e4] sm:%s46]
        %810 = vst [vmem:[%s54 + $0x5e4] sm:%s46] %v809
        %v811 = vld [vmem:[%s53 + $0x5e8] sm:%s46]
        %812 = vst [vmem:[%s54 + $0x5e8] sm:%s46] %v811
        %v813 = vld [vmem:[%s53 + $0x604] sm:%s46]
        %814 = vst [vmem:[%s54 + $0x5ec] sm:%s46] %v813
        %v815 = vld [vmem:[%s53 + $0x5ec] sm:%s46]
        %816 = vst [vmem:[%s54 + $0x5f0] sm:%s46] %v815
        %v817 = vld [vmem:[%s53 + $0x608] sm:%s46]
        %818 = vst [vmem:[%s54 + $0x5f4] sm:%s46] %v817
        %v819 = vld [vmem:[%s53 + $0x5f0] sm:%s46]
        %820 = vst [vmem:[%s54 + $0x5f8] sm:%s46] %v819
        %v821 = vld [vmem:[%s53 + $0x60c] sm:%s46]
        %822 = vst [vmem:[%s54 + $0x5fc] sm:%s46] %v821
        %v823 = vld [vmem:[%s53 + $0x5f4] sm:%s46]
        %824 = vst [vmem:[%s54 + $0x600] sm:%s46] %v823
        %v825 = vld [vmem:[%s53 + $0x610] sm:%s46]
        %826 = vst [vmem:[%s54 + $0x604] sm:%s46] %v825
        %v827 = vld [vmem:[%s53 + $0x5f8] sm:%s46]
        %828 = vst [vmem:[%s54 + $0x608] sm:%s46] %v827
        %v829 = vld [vmem:[%s53 + $0x614] sm:%s46]
        %830 = vst [vmem:[%s54 + $0x60c] sm:%s46] %v829
        %v831 = vld [vmem:[%s53 + $0x5fc] sm:%s46]
        %832 = vst [vmem:[%s54 + $0x610] sm:%s46] %v831
        %v833 = vld [vmem:[%s53 + $0x618] sm:%s46]
        %834 = vst [vmem:[%s54 + $0x614] sm:%s46] %v833
        %v835 = vld [vmem:[%s53 + $0x600] sm:%s46]
        %836 = vst [vmem:[%s54 + $0x618] sm:%s46] %v835
        %v837 = vld [vmem:[%s53 + $0x61c] sm:%s46]
        %838 = vst [vmem:[%s54 + $0x61c] sm:%s46] %v837
        %v839 = vld [vmem:[%s53 + $0x620] sm:%s46]
        %840 = vst [vmem:[%s54 + $0x620] sm:%s46] %v839
        %v841 = vld [vmem:[%s53 + $0x63c] sm:%s46]
        %842 = vst [vmem:[%s54 + $0x624] sm:%s46] %v841
        %v843 = vld [vmem:[%s53 + $0x624] sm:%s46]
        %844 = vst [vmem:[%s54 + $0x628] sm:%s46] %v843
        %v845 = vld [vmem:[%s53 + $0x640] sm:%s46]
        %846 = vst [vmem:[%s54 + $0x62c] sm:%s46] %v845
        %v847 = vld [vmem:[%s53 + $0x628] sm:%s46]
        %848 = vst [vmem:[%s54 + $0x630] sm:%s46] %v847
        %v849 = vld [vmem:[%s53 + $0x644] sm:%s46]
        %850 = vst [vmem:[%s54 + $0x634] sm:%s46] %v849
        %v851 = vld [vmem:[%s53 + $0x62c] sm:%s46]
        %852 = vst [vmem:[%s54 + $0x638] sm:%s46] %v851
        %v853 = vld [vmem:[%s53 + $0x648] sm:%s46]
        %854 = vst [vmem:[%s54 + $0x63c] sm:%s46] %v853
        %v855 = vld [vmem:[%s53 + $0x630] sm:%s46]
        %856 = vst [vmem:[%s54 + $0x640] sm:%s46] %v855
        %v857 = vld [vmem:[%s53 + $0x64c] sm:%s46]
        %858 = vst [vmem:[%s54 + $0x644] sm:%s46] %v857
        %v859 = vld [vmem:[%s53 + $0x634] sm:%s46]
        %860 = vst [vmem:[%s54 + $0x648] sm:%s46] %v859
        %v861 = vld [vmem:[%s53 + $0x650] sm:%s46]
        %862 = vst [vmem:[%s54 + $0x64c] sm:%s46] %v861
        %v863 = vld [vmem:[%s53 + $0x638] sm:%s46]
        %864 = vst [vmem:[%s54 + $0x650] sm:%s46] %v863
        %v865 = vld [vmem:[%s53 + $0x654] sm:%s46]
        %866 = vst [vmem:[%s54 + $0x654] sm:%s46] %v865
        %v867 = vld [vmem:[%s53 + $0x658] sm:%s46]
        %868 = vst [vmem:[%s54 + $0x658] sm:%s46] %v867
        %v869 = vld [vmem:[%s53 + $0x674] sm:%s46]
        %870 = vst [vmem:[%s54 + $0x65c] sm:%s46] %v869
        %v871 = vld [vmem:[%s53 + $0x65c] sm:%s46]
        %872 = vst [vmem:[%s54 + $0x660] sm:%s46] %v871
        %v873 = vld [vmem:[%s53 + $0x678] sm:%s46]
        %874 = vst [vmem:[%s54 + $0x664] sm:%s46] %v873
        %v875 = vld [vmem:[%s53 + $0x660] sm:%s46]
        %876 = vst [vmem:[%s54 + $0x668] sm:%s46] %v875
        %v877 = vld [vmem:[%s53 + $0x67c] sm:%s46]
        %878 = vst [vmem:[%s54 + $0x66c] sm:%s46] %v877
        %v879 = vld [vmem:[%s53 + $0x664] sm:%s46]
        %880 = vst [vmem:[%s54 + $0x670] sm:%s46] %v879
        %v881 = vld [vmem:[%s53 + $0x680] sm:%s46]
        %882 = vst [vmem:[%s54 + $0x674] sm:%s46] %v881
        %v883 = vld [vmem:[%s53 + $0x668] sm:%s46]
        %884 = vst [vmem:[%s54 + $0x678] sm:%s46] %v883
        %v885 = vld [vmem:[%s53 + $0x684] sm:%s46]
        %886 = vst [vmem:[%s54 + $0x67c] sm:%s46] %v885
        %v887 = vld [vmem:[%s53 + $0x66c] sm:%s46]
        %888 = vst [vmem:[%s54 + $0x680] sm:%s46] %v887
        %v889 = vld [vmem:[%s53 + $0x688] sm:%s46]
        %890 = vst [vmem:[%s54 + $0x684] sm:%s46] %v889
        %v891 = vld [vmem:[%s53 + $0x670] sm:%s46]
        %892 = vst [vmem:[%s54 + $0x688] sm:%s46] %v891
        %v893 = vld [vmem:[%s53 + $0x68c] sm:%s46]
        %894 = vst [vmem:[%s54 + $0x68c] sm:%s46] %v893
        %v895 = vld [vmem:[%s53 + $0x690] sm:%s46]
        %896 = vst [vmem:[%s54 + $0x690] sm:%s46] %v895
        %v897 = vld [vmem:[%s53 + $0x6ac] sm:%s46]
        %898 = vst [vmem:[%s54 + $0x694] sm:%s46] %v897
        %v899 = vld [vmem:[%s53 + $0x694] sm:%s46]
        %900 = vst [vmem:[%s54 + $0x698] sm:%s46] %v899
        %v901 = vld [vmem:[%s53 + $0x6b0] sm:%s46]
        %902 = vst [vmem:[%s54 + $0x69c] sm:%s46] %v901
        %v903 = vld [vmem:[%s53 + $0x698] sm:%s46]
        %904 = vst [vmem:[%s54 + $0x6a0] sm:%s46] %v903
        %v905 = vld [vmem:[%s53 + $0x6b4] sm:%s46]
        %906 = vst [vmem:[%s54 + $0x6a4] sm:%s46] %v905
        %v907 = vld [vmem:[%s53 + $0x69c] sm:%s46]
        %908 = vst [vmem:[%s54 + $0x6a8] sm:%s46] %v907
        %v909 = vld [vmem:[%s53 + $0x6b8] sm:%s46]
        %910 = vst [vmem:[%s54 + $0x6ac] sm:%s46] %v909
        %v911 = vld [vmem:[%s53 + $0x6a0] sm:%s46]
        %912 = vst [vmem:[%s54 + $0x6b0] sm:%s46] %v911
        %v913 = vld [vmem:[%s53 + $0x6bc] sm:%s46]
        %914 = vst [vmem:[%s54 + $0x6b4] sm:%s46] %v913
        %v915 = vld [vmem:[%s53 + $0x6a4] sm:%s46]
        %916 = vst [vmem:[%s54 + $0x6b8] sm:%s46] %v915
        %v917 = vld [vmem:[%s53 + $0x6c0] sm:%s46]
        %918 = vst [vmem:[%s54 + $0x6bc] sm:%s46] %v917
        %v919 = vld [vmem:[%s53 + $0x6a8] sm:%s46]
        %920 = vst [vmem:[%s54 + $0x6c0] sm:%s46] %v919
        %v921 = vld [vmem:[%s53 + $0x6c4] sm:%s46]
        %922 = vst [vmem:[%s54 + $0x6c4] sm:%s46] %v921
        %v923 = vld [vmem:[%s53 + $0x6c8] sm:%s46]
        %924 = vst [vmem:[%s54 + $0x6c8] sm:%s46] %v923
        %v925 = vld [vmem:[%s53 + $0x6e4] sm:%s46]
        %926 = vst [vmem:[%s54 + $0x6cc] sm:%s46] %v925
        %v927 = vld [vmem:[%s53 + $0x6cc] sm:%s46]
        %928 = vst [vmem:[%s54 + $0x6d0] sm:%s46] %v927
        %v929 = vld [vmem:[%s53 + $0x6e8] sm:%s46]
        %930 = vst [vmem:[%s54 + $0x6d4] sm:%s46] %v929
        %v931 = vld [vmem:[%s53 + $0x6d0] sm:%s46]
        %932 = vst [vmem:[%s54 + $0x6d8] sm:%s46] %v931
        %v933 = vld [vmem:[%s53 + $0x6ec] sm:%s46]
        %934 = vst [vmem:[%s54 + $0x6dc] sm:%s46] %v933
        %v935 = vld [vmem:[%s53 + $0x6d4] sm:%s46]
        %936 = vst [vmem:[%s54 + $0x6e0] sm:%s46] %v935
        %v937 = vld [vmem:[%s53 + $0x6f0] sm:%s46]
        %938 = vst [vmem:[%s54 + $0x6e4] sm:%s46] %v937
        %v939 = vld [vmem:[%s53 + $0x6d8] sm:%s46]
        %940 = vst [vmem:[%s54 + $0x6e8] sm:%s46] %v939
        %v941 = vld [vmem:[%s53 + $0x6f4] sm:%s46]
        %942 = vst [vmem:[%s54 + $0x6ec] sm:%s46] %v941
        %v943 = vld [vmem:[%s53 + $0x6dc] sm:%s46]
        %944 = vst [vmem:[%s54 + $0x6f0] sm:%s46] %v943
        %v945 = vld [vmem:[%s53 + $0x6f8] sm:%s46]
        %946 = vst [vmem:[%s54 + $0x6f4] sm:%s46] %v945
        %v947 = vld [vmem:[%s53 + $0x6e0] sm:%s46]
        %948 = vst [vmem:[%s54 + $0x6f8] sm:%s46] %v947
        %v949 = vld [vmem:[%s53 + $0x6fc] sm:%s46]
        %950 = vst [vmem:[%s54 + $0x6fc] sm:%s46] %v949
      $region54: #{tpu_custom_call.1} parent=48 // loop_footer
        %s52 = sadd.s32 1, %s48
      $region55: #{tpu_custom_call.1} parent=48 // loop_footer_branch
        %47 = sbr.rel target = $region51
      $region56: #{tpu_custom_call.1} parent=48 // loop_exit
        _
    $region49: #{tpu_custom_call.1} parent=1 // pred_fallthru
      _
    // Predicated region
    $region75: #{tpu_custom_call.1} parent=1 // pred_check
      _
    $region76: #{tpu_custom_call.1} parent=1 // pred_check_branch
      %1876 = sbr.rel (0) target = $region78
    $region77: #{tpu_custom_call.1} parent=1 // pred_region
      %1877 = vsyncadd [#allocation3], 28672
    $region78: #{tpu_custom_call.1} parent=1 // pred_fallthru
      _
    %v1878 = vld [vmem:[%s0] sm:$0xff]
    %v1879 = vpack.c.bf16 %v1878, %v1878
    %v1880 = vld [vmem:[%s1] sm:$0xf]
    %v1881 = vld [vmem:[%s1 + $0x4] sm:$0xf]
    %v1882 = vld [vmem:[%s1 + $0x8] sm:$0xf]
    %v1883 = vld [vmem:[%s1 + $0xc] sm:$0xf]
    %v1884 = vld [vmem:[%s1 + $0x10] sm:$0xf]
    %v1885 = vld [vmem:[%s1 + $0x14] sm:$0xf]
    %v1886 = vld [vmem:[%s1 + $0x18] sm:$0xf]
    %v1887 = vld [vmem:[%s1 + $0x1c] sm:$0xf]
    %v1888 = vld [vmem:[%s1 + $0x20] sm:$0xf]
    %v1889 = vld [vmem:[%s1 + $0x24] sm:$0xf]
    %v1890 = vld [vmem:[%s1 + $0x28] sm:$0xf]
    %v1891 = vld [vmem:[%s1 + $0x2c] sm:$0xf]
    %v1892 = vld [vmem:[%s1 + $0x30] sm:$0xf]
    %v1893 = vld [vmem:[%s1 + $0x34] sm:$0xf]
    %v1894 = vld [vmem:[%s1 + $0x38] sm:$0xf]
    %v1895 = vld [vmem:[%s1 + $0x3c] sm:$0xf]
    %v1896 = vld [vmem:[%s2] sm:$0x1]
    %v1898 = vlaneseq
    %v1899 = vshrl.u32 %v1898, 7
    %v1900 = vsub.s32 0, %v1899
    %v1901 = vrot.slane %v1896, %v1900
    %v1919 = vunpack.c.l.b16 %v1880
    %v1920 = vunpack.c.l.b16 %v1881
    %v1921 = vunpack.c.l.b16 %v1882
    %v1922 = vunpack.c.l.b16 %v1883
    %v1923 = vunpack.c.l.b16 %v1884
    %v1924 = vunpack.c.l.b16 %v1885
    %v1925 = vunpack.c.l.b16 %v1886
    %v1926 = vunpack.c.l.b16 %v1887
    %v1927 = vunpack.c.l.b16 %v1888
    %v1928 = vunpack.c.l.b16 %v1889
    %v1929 = vunpack.c.l.b16 %v1890
    %v1930 = vunpack.c.l.b16 %v1891
    %v1931 = vunpack.c.l.b16 %v1892
    %v1932 = vunpack.c.l.b16 %v1893
    %v1933 = vunpack.c.l.b16 %v1894
    %v1934 = vunpack.c.l.b16 %v1895
    %v1935 = vpack.c.b16 %v1920, %v1919
    %v1936 = vpack.c.b16 %v1922, %v1921
    %v1937 = vpack.c.b16 %v1924, %v1923
    %v1938 = vpack.c.b16 %v1926, %v1925
    %v1939 = vpack.c.b16 %v1928, %v1927
    %v1940 = vpack.c.b16 %v1930, %v1929
    %v1941 = vpack.c.b16 %v1932, %v1931
    %v1942 = vpack.c.b16 %v1934, %v1933
    %1951 = vmatprep.subr.bf16.mxu0 0
    %1952 = vmatpush1.bf16.msra.mxu0 %v1935
    %1953 = vmatprep.subr.bf16.mxu0 0
    %1954 = vmatpush1.bf16.msra.mxu0 %v1936
    %1955 = vmatprep.subr.bf16.mxu0 0
    %1956 = vmatpush1.bf16.msra.mxu0 %v1937
    %1957 = vmatprep.subr.bf16.mxu0 0
    %1958 = vmatpush1.bf16.msra.mxu0 %v1938
    %1959 = vmatprep.subr.bf16.mxu0 0
    %1960 = vmatpush1.bf16.msra.mxu0 %v1939
    %1961 = vmatprep.subr.bf16.mxu0 0
    %1962 = vmatpush1.bf16.msra.mxu0 %v1940
    %1963 = vmatprep.subr.bf16.mxu0 0
    %1964 = vmatpush1.bf16.msra.mxu0 %v1941
    %1965 = vmatprep.subr.bf16.mxu0 0
    %1966 = vmatpush1.bf16.msra.mxu0 %v1942
    %1967 = vmatprep.subr.bf16.mxu0 0
    %1968 = vmatpush1.bf16.msra.mxu0 0
    %1969 = vmatprep.subr.bf16.mxu0 0
    %1970 = vmatpush1.bf16.msra.mxu0 0
    %1971 = vmatprep.subr.bf16.mxu0 0
    %1972 = vmatpush1.bf16.msra.mxu0 0
    %1973 = vmatprep.subr.bf16.mxu0 0
    %1974 = vmatpush1.bf16.msra.mxu0 0
    %1975 = vmatprep.subr.bf16.mxu0 0
    %1976 = vmatpush1.bf16.msra.mxu0 0
    %1977 = vmatprep.subr.bf16.mxu0 0
    %1978 = vmatpush1.bf16.msra.mxu0 0
    %1979 = vmatprep.subr.bf16.mxu0 0
    %1980 = vmatpush1.bf16.msra.mxu0 0
    %1981 = vmatprep.subr.bf16.mxu0 0
    %1982 = vmatpush1.bf16.msra.mxu0 0
    %1983 = vmatprep.mubr.bf16.mxu0 0
    %1984 = vmatmul.mubr.bf16.gmra.mrb[0].mxu0 %v1879
    %v1985 = vpop.f32.mrb[0].mxu0
    %v1986 = vadd.f32 %v1901, %v1985
    %v1987 = vpop.f32.mrb[0].mxu0
    %v1988 = vpop.f32.mrb[0].mxu0
    %v1989 = vpop.f32.mrb[0].mxu0
    %1990 = vdwg.mxu0
    %v1991 = vmax.f32 %v1986, 0.0
    %v1992 = vpack.c.bf16 %v1991, %v1991
    %v1993 = vld [vmem:[%s3] sm:$0xff]
    %v1994 = vld [vmem:[%s3 + $0x8] sm:$0xff]
    %v1995 = vld [vmem:[%s3 + $0x10] sm:$0xff]
    %v1996 = vld [vmem:[%s3 + $0x18] sm:$0xff]
    %v1997 = vld [vmem:[%s3 + $0x20] sm:$0xff]
    %v1998 = vld [vmem:[%s3 + $0x28] sm:$0xff]
    %v1999 = vld [vmem:[%s3 + $0x30] sm:$0xff]
    %v2000 = vld [vmem:[%s3 + $0x38] sm:$0xff]
    %v2001 = vld [vmem:[%s3 + $0x40] sm:$0xff]
    %v2002 = vld [vmem:[%s3 + $0x48] sm:$0xff]
    %v2003 = vld [vmem:[%s3 + $0x50] sm:$0xff]
    %v2004 = vld [vmem:[%s3 + $0x58] sm:$0xff]
    %v2005 = vld [vmem:[%s3 + $0x60] sm:$0xff]
    %v2006 = vld [vmem:[%s3 + $0x68] sm:$0xff]
    %v2007 = vld [vmem:[%s3 + $0x70] sm:$0xff]
    %v2008 = vld [vmem:[%s3 + $0x78] sm:$0xff]
    %v2025 = vunpack.c.l.b16 %v1993
    %v2026 = vunpack.c.h.b16 %v1993
    %v2027 = vunpack.c.l.b16 %v1994
    %v2028 = vunpack.c.h.b16 %v1994
    %v2029 = vunpack.c.l.b16 %v1995
    %v2030 = vunpack.c.h.b16 %v1995
    %v2031 = vunpack.c.l.b16 %v1996
    %v2032 = vunpack.c.h.b16 %v1996
    %v2033 = vunpack.c.l.b16 %v1997
    %v2034 = vunpack.c.h.b16 %v1997
    %v2035 = vunpack.c.l.b16 %v1998
    %v2036 = vunpack.c.h.b16 %v1998
    %v2037 = vunpack.c.l.b16 %v1999
    %v2038 = vunpack.c.h.b16 %v1999
    %v2039 = vunpack.c.l.b16 %v2000
    %v2040 = vunpack.c.h.b16 %v2000
    %v2041 = vunpack.c.l.b16 %v2001
    %v2042 = vunpack.c.h.b16 %v2001
    %v2043 = vunpack.c.l.b16 %v2002
    %v2044 = vunpack.c.h.b16 %v2002
    %v2045 = vunpack.c.l.b16 %v2003
    %v2046 = vunpack.c.h.b16 %v2003
    %v2047 = vunpack.c.l.b16 %v2004
    %v2048 = vunpack.c.h.b16 %v2004
    %v2049 = vunpack.c.l.b16 %v2005
    %v2050 = vunpack.c.h.b16 %v2005
    %v2051 = vunpack.c.l.b16 %v2006
    %v2052 = vunpack.c.h.b16 %v2006
    %v2053 = vunpack.c.l.b16 %v2007
    %v2054 = vunpack.c.h.b16 %v2007
    %v2055 = vunpack.c.l.b16 %v2008
    %v2056 = vunpack.c.h.b16 %v2008
    %v2057 = vpack.c.b16 %v2027, %v2025
    %v2058 = vpack.c.b16 %v2028, %v2026
    %v2059 = vpack.c.b16 %v2031, %v2029
    %v2060 = vpack.c.b16 %v2032, %v2030
    %v2061 = vpack.c.b16 %v2035, %v2033
    %v2062 = vpack.c.b16 %v2036, %v2034
    %v2063 = vpack.c.b16 %v2039, %v2037
    %v2064 = vpack.c.b16 %v2040, %v2038
    %v2065 = vpack.c.b16 %v2043, %v2041
    %v2066 = vpack.c.b16 %v2044, %v2042
    %v2067 = vpack.c.b16 %v2047, %v2045
    %v2068 = vpack.c.b16 %v2048, %v2046
    %v2069 = vpack.c.b16 %v2051, %v2049
    %v2070 = vpack.c.b16 %v2052, %v2050
    %v2071 = vpack.c.b16 %v2055, %v2053
    %v2072 = vpack.c.b16 %v2056, %v2054
    %2089 = vmatprep.subr.bf16.mxu0 %v2058
    %2090 = vmatpush1.bf16.msra.mxu0 %v2057
    %2091 = vmatprep.subr.bf16.mxu0 %v2060
    %2092 = vmatpush1.bf16.msra.mxu0 %v2059
    %2093 = vmatprep.subr.bf16.mxu0 %v2062
    %2094 = vmatpush1.bf16.msra.mxu0 %v2061
    %2095 = vmatprep.subr.bf16.mxu0 %v2064
    %2096 = vmatpush1.bf16.msra.mxu0 %v2063
    %2097 = vmatprep.subr.bf16.mxu0 %v2066
    %2098 = vmatpush1.bf16.msra.mxu0 %v2065
    %2099 = vmatprep.subr.bf16.mxu0 %v2068
    %2100 = vmatpush1.bf16.msra.mxu0 %v2067
    %2101 = vmatprep.subr.bf16.mxu0 %v2070
    %2102 = vmatpush1.bf16.msra.mxu0 %v2069
    %2103 = vmatprep.subr.bf16.mxu0 %v2072
    %2104 = vmatpush1.bf16.msra.mxu0 %v2071
    %2105 = vmatprep.subr.bf16.mxu0 0
    %2106 = vmatpush1.bf16.msra.mxu0 0
    %2107 = vmatprep.subr.bf16.mxu0 0
    %2108 = vmatpush1.bf16.msra.mxu0 0
    %2109 = vmatprep.subr.bf16.mxu0 0
    %2110 = vmatpush1.bf16.msra.mxu0 0
    %2111 = vmatprep.subr.bf16.mxu0 0
    %2112 = vmatpush1.bf16.msra.mxu0 0
    %2113 = vmatprep.subr.bf16.mxu0 0
    %2114 = vmatpush1.bf16.msra.mxu0 0
    %2115 = vmatprep.subr.bf16.mxu0 0
    %2116 = vmatpush1.bf16.msra.mxu0 0
    %2117 = vmatprep.subr.bf16.mxu0 0
    %2118 = vmatpush1.bf16.msra.mxu0 0
    %2119 = vmatprep.subr.bf16.mxu0 0
    %2120 = vmatpush1.bf16.msra.mxu0 0
    %2121 = vmatprep.mubr.bf16.mxu0 0
    %2122 = vmatmul.mubr.bf16.gmra.mrb[0].mxu0 %v1992
    %v2123 = vpop.f32.mrb[0].mxu0
    %v2124 = vadd.f32 0.0, %v2123
    %v2125 = vpop.f32.mrb[0].mxu0
    %v2126 = vadd.f32 0.0, %v2125
    %v2127 = vpop.f32.mrb[0].mxu0
    %v2128 = vpop.f32.mrb[0].mxu0
    %2129 = vdwg.mxu0
    %v2130 = vrot.slane %v2124, 4
    %v2131 = vadd.f32 %v2124, %v2130
    %v2132 = vrot.slane %v2131, 2
    %v2133 = vadd.f32 %v2131, %v2132
    %v2134 = vrot.slane %v2133, 1
    %v2135 = vadd.f32 %v2133, %v2134
    %v2136 = vrot.slane %v2126, 4
    %v2137 = vadd.f32 %v2126, %v2136
    %v2138 = vrot.slane %v2137, 2
    %v2139 = vadd.f32 %v2137, %v2138
    %v2140 = vrot.slane %v2139, 1
    %v2141 = vadd.f32 %v2139, %v2140
    %v2142 = vrcp.pop 8.0
    %v2143 = vmul.f32 %v2135, %v2142
    %v2144 = vmul.f32 %v2141, %v2142
    %v2145 = vsub.f32 %v2124, %v2143
    %v2146 = vsub.f32 %v2126, %v2144
    %v2147 = vmul.f32 %v2145, %v2145
    %v2148 = vmul.f32 %v2146, %v2146
    %v2149 = vrot.slane %v2147, 4
    %v2150 = vadd.f32 %v2147, %v2149
    %v2151 = vrot.slane %v2150, 2
    %v2152 = vadd.f32 %v2150, %v2151
    %v2153 = vrot.slane %v2152, 1
    %v2154 = vadd.f32 %v2152, %v2153
    %v2155 = vrot.slane %v2148, 4
    %v2156 = vadd.f32 %v2148, %v2155
    %v2157 = vrot.slane %v2156, 2
    %v2158 = vadd.f32 %v2156, %v2157
    %v2159 = vrot.slane %v2158, 1
    %v2160 = vadd.f32 %v2158, %v2159
    %v2161 = vmul.f32 %v2154, %v2142
    %v2162 = vmul.f32 %v2160, %v2142
    %v2163 = vadd.f32 %v2161, 1e-05
    %v2164 = vadd.f32 %v2162, 1e-05
    %v2165 = vrsqrt.pop %v2163
    %v2166 = vrsqrt.pop %v2164
    %v2167 = vmul.f32 %v2145, %v2165
    %v2168 = vmul.f32 %v2146, %v2166
    %v2169 = vld [vmem:[%s4] sm:$0x3]
    %v2171 = vlaneseq
    %v2172 = vshrl.u32 %v2171, 7
    %v2173 = vsub.s32 0, %v2172
    %v2174 = vrot.slane %v2169, %v2173
    %v2175 = vlaneseq
    %v2176 = vshrl.u32 %v2175, 7
    %v2177 = vsub.s32 1, %v2176
    %v2178 = vrot.slane %v2169, %v2177
    %v2181 = vmul.f32 %v2167, %v2174
    %v2182 = vmul.f32 %v2168, %v2178
    %v2183 = vld [vmem:[%s5] sm:$0x3]
    %v2185 = vlaneseq
    %v2186 = vshrl.u32 %v2185, 7
    %v2187 = vsub.s32 0, %v2186
    %v2188 = vrot.slane %v2183, %v2187
    %v2189 = vlaneseq
    %v2190 = vshrl.u32 %v2189, 7
    %v2191 = vsub.s32 1, %v2190
    %v2192 = vrot.slane %v2183, %v2191
    %v2195 = vadd.f32 %v2181, %v2188
    %v2196 = vadd.f32 %v2182, %v2192
    %v2197 = vmax.f32 %v2195, 0.0
    %v2198 = vmax.f32 %v2196, 0.0
    %v2199 = vpack.c.bf16 %v2197, %v2197
    %v2200 = vpack.c.bf16 %v2198, %v2198
    %v2201 = vld [vmem:[%s6] sm:$0xff]
    %v2202 = vld [vmem:[%s6 + $0x8] sm:$0xff]
    %v2203 = vld [vmem:[%s6 + $0x10] sm:$0xff]
    %v2204 = vld [vmem:[%s6 + $0x18] sm:$0xff]
    %v2205 = vld [vmem:[%s6 + $0x20] sm:$0xff]
    %v2206 = vld [vmem:[%s6 + $0x28] sm:$0xff]
    %v2207 = vld [vmem:[%s6 + $0x30] sm:$0xff]
    %v2208 = vld [vmem:[%s6 + $0x38] sm:$0xff]
    %v2209 = vld [vmem:[%s6 + $0x40] sm:$0xff]
    %v2210 = vld [vmem:[%s6 + $0x48] sm:$0xff]
    %v2211 = vld [vmem:[%s6 + $0x50] sm:$0xff]
    %v2212 = vld [vmem:[%s6 + $0x58] sm:$0xff]
    %v2213 = vld [vmem:[%s6 + $0x60] sm:$0xff]
    %v2214 = vld [vmem:[%s6 + $0x68] sm:$0xff]
    %v2215 = vld [vmem:[%s6 + $0x70] sm:$0xff]
    %v2216 = vld [vmem:[%s6 + $0x78] sm:$0xff]
    %v2217 = vld [vmem:[%s6 + $0x80] sm:$0xff]
    %v2218 = vld [vmem:[%s6 + $0x88] sm:$0xff]
    %v2219 = vld [vmem:[%s6 + $0x90] sm:$0xff]
    %v2220 = vld [vmem:[%s6 + $0x98] sm:$0xff]
    %v2221 = vld [vmem:[%s6 + $0xa0] sm:$0xff]
    %v2222 = vld [vmem:[%s6 + $0xa8] sm:$0xff]
    %v2223 = vld [vmem:[%s6 + $0xb0] sm:$0xff]
    %v2224 = vld [vmem:[%s6 + $0xb8] sm:$0xff]
    %v2225 = vld [vmem:[%s6 + $0xc0] sm:$0xff]
    %v2226 = vld [vmem:[%s6 + $0xc8] sm:$0xff]
    %v2227 = vld [vmem:[%s6 + $0xd0] sm:$0xff]
    %v2228 = vld [vmem:[%s6 + $0xd8] sm:$0xff]
    %v2229 = vld [vmem:[%s6 + $0xe0] sm:$0xff]
    %v2230 = vld [vmem:[%s6 + $0xe8] sm:$0xff]
    %v2231 = vld [vmem:[%s6 + $0xf0] sm:$0xff]
    %v2232 = vld [vmem:[%s6 + $0xf8] sm:$0xff]
    %v2233 = vld [vmem:[%s6 + $0x100] sm:$0xff]
    %v2234 = vld [vmem:[%s6 + $0x108] sm:$0xff]
    %v2235 = vld [vmem:[%s6 + $0x110] sm:$0xff]
    %v2236 = vld [vmem:[%s6 + $0x118] sm:$0xff]
    %v2237 = vld [vmem:[%s6 + $0x120] sm:$0xff]
    %v2238 = vld [vmem:[%s6 + $0x128] sm:$0xff]
    %v2239 = vld [vmem:[%s6 + $0x130] sm:$0xff]
    %v2240 = vld [vmem:[%s6 + $0x138] sm:$0xff]
    %v2241 = vld [vmem:[%s6 + $0x140] sm:$0xff]
    %v2242 = vld [vmem:[%s6 + $0x148] sm:$0xff]
    %v2243 = vld [vmem:[%s6 + $0x150] sm:$0xff]
    %v2244 = vld [vmem:[%s6 + $0x158] sm:$0xff]
    %v2245 = vld [vmem:[%s6 + $0x160] sm:$0xff]
    %v2246 = vld [vmem:[%s6 + $0x168] sm:$0xff]
    %v2247 = vld [vmem:[%s6 + $0x170] sm:$0xff]
    %v2248 = vld [vmem:[%s6 + $0x178] sm:$0xff]
    %v2249 = vld [vmem:[%s6 + $0x180] sm:$0xff]
    %v2250 = vld [vmem:[%s6 + $0x188] sm:$0xff]
    %v2251 = vld [vmem:[%s6 + $0x190] sm:$0xff]
    %v2252 = vld [vmem:[%s6 + $0x198] sm:$0xff]
    %v2253 = vld [vmem:[%s6 + $0x1a0] sm:$0xff]
    %v2254 = vld [vmem:[%s6 + $0x1a8] sm:$0xff]
    %v2255 = vld [vmem:[%s6 + $0x1b0] sm:$0xff]
    %v2256 = vld [vmem:[%s6 + $0x1b8] sm:$0xff]
    %v2257 = vld [vmem:[%s6 + $0x1c0] sm:$0xff]
    %v2258 = vld [vmem:[%s6 + $0x1c8] sm:$0xff]
    %v2259 = vld [vmem:[%s6 + $0x1d0] sm:$0xff]
    %v2260 = vld [vmem:[%s6 + $0x1d8] sm:$0xff]
    %v2261 = vld [vmem:[%s6 + $0x1e0] sm:$0xff]
    %v2262 = vld [vmem:[%s6 + $0x1e8] sm:$0xff]
    %v2263 = vld [vmem:[%s6 + $0x1f0] sm:$0xff]
    %v2264 = vld [vmem:[%s6 + $0x1f8] sm:$0xff]
    %v2329 = vunpack.c.l.b16 %v2201
    %v2330 = vunpack.c.h.b16 %v2201
    %v2331 = vunpack.c.l.b16 %v2202
    %v2332 = vunpack.c.h.b16 %v2202
    %v2333 = vunpack.c.l.b16 %v2203
    %v2334 = vunpack.c.h.b16 %v2203
    %v2335 = vunpack.c.l.b16 %v2204
    %v2336 = vunpack.c.h.b16 %v2204
    %v2337 = vunpack.c.l.b16 %v2205
    %v2338 = vunpack.c.h.b16 %v2205
    %v2339 = vunpack.c.l.b16 %v2206
    %v2340 = vunpack.c.h.b16 %v2206
    %v2341 = vunpack.c.l.b16 %v2207
    %v2342 = vunpack.c.h.b16 %v2207
    %v2343 = vunpack.c.l.b16 %v2208
    %v2344 = vunpack.c.h.b16 %v2208
    %v2345 = vunpack.c.l.b16 %v2209
    %v2346 = vunpack.c.h.b16 %v2209
    %v2347 = vunpack.c.l.b16 %v2210
    %v2348 = vunpack.c.h.b16 %v2210
    %v2349 = vunpack.c.l.b16 %v2211
    %v2350 = vunpack.c.h.b16 %v2211
    %v2351 = vunpack.c.l.b16 %v2212
    %v2352 = vunpack.c.h.b16 %v2212
    %v2353 = vunpack.c.l.b16 %v2213
    %v2354 = vunpack.c.h.b16 %v2213
    %v2355 = vunpack.c.l.b16 %v2214
    %v2356 = vunpack.c.h.b16 %v2214
    %v2357 = vunpack.c.l.b16 %v2215
    %v2358 = vunpack.c.h.b16 %v2215
    %v2359 = vunpack.c.l.b16 %v2216
    %v2360 = vunpack.c.h.b16 %v2216
    %v2361 = vunpack.c.l.b16 %v2217
    %v2362 = vunpack.c.h.b16 %v2217
    %v2363 = vunpack.c.l.b16 %v2218
    %v2364 = vunpack.c.h.b16 %v2218
    %v2365 = vunpack.c.l.b16 %v2219
    %v2366 = vunpack.c.h.b16 %v2219
    %v2367 = vunpack.c.l.b16 %v2220
    %v2368 = vunpack.c.h.b16 %v2220
    %v2369 = vunpack.c.l.b16 %v2221
    %v2370 = vunpack.c.h.b16 %v2221
    %v2371 = vunpack.c.l.b16 %v2222
    %v2372 = vunpack.c.h.b16 %v2222
    %v2373 = vunpack.c.l.b16 %v2223
    %v2374 = vunpack.c.h.b16 %v2223
    %v2375 = vunpack.c.l.b16 %v2224
    %v2376 = vunpack.c.h.b16 %v2224
    %v2377 = vunpack.c.l.b16 %v2225
    %v2378 = vunpack.c.h.b16 %v2225
    %v2379 = vunpack.c.l.b16 %v2226
    %v2380 = vunpack.c.h.b16 %v2226
    %v2381 = vunpack.c.l.b16 %v2227
    %v2382 = vunpack.c.h.b16 %v2227
    %v2383 = vunpack.c.l.b16 %v2228
    %v2384 = vunpack.c.h.b16 %v2228
    %v2385 = vunpack.c.l.b16 %v2229
    %v2386 = vunpack.c.h.b16 %v2229
    %v2387 = vunpack.c.l.b16 %v2230
    %v2388 = vunpack.c.h.b16 %v2230
    %v2389 = vunpack.c.l.b16 %v2231
    %v2390 = vunpack.c.h.b16 %v2231
    %v2391 = vunpack.c.l.b16 %v2232
    %v2392 = vunpack.c.h.b16 %v2232
    %v2393 = vunpack.c.l.b16 %v2233
    %v2394 = vunpack.c.h.b16 %v2233
    %v2395 = vunpack.c.l.b16 %v2234
    %v2396 = vunpack.c.h.b16 %v2234
    %v2397 = vunpack.c.l.b16 %v2235
    %v2398 = vunpack.c.h.b16 %v2235
    %v2399 = vunpack.c.l.b16 %v2236
    %v2400 = vunpack.c.h.b16 %v2236
    %v2401 = vunpack.c.l.b16 %v2237
    %v2402 = vunpack.c.h.b16 %v2237
    %v2403 = vunpack.c.l.b16 %v2238
    %v2404 = vunpack.c.h.b16 %v2238
    %v2405 = vunpack.c.l.b16 %v2239
    %v2406 = vunpack.c.h.b16 %v2239
    %v2407 = vunpack.c.l.b16 %v2240
    %v2408 = vunpack.c.h.b16 %v2240
    %v2409 = vunpack.c.l.b16 %v2241
    %v2410 = vunpack.c.h.b16 %v2241
    %v2411 = vunpack.c.l.b16 %v2242
    %v2412 = vunpack.c.h.b16 %v2242
    %v2413 = vunpack.c.l.b16 %v2243
    %v2414 = vunpack.c.h.b16 %v2243
    %v2415 = vunpack.c.l.b16 %v2244
    %v2416 = vunpack.c.h.b16 %v2244
    %v2417 = vunpack.c.l.b16 %v2245
    %v2418 = vunpack.c.h.b16 %v2245
    %v2419 = vunpack.c.l.b16 %v2246
    %v2420 = vunpack.c.h.b16 %v2246
    %v2421 = vunpack.c.l.b16 %v2247
    %v2422 = vunpack.c.h.b16 %v2247
    %v2423 = vunpack.c.l.b16 %v2248
    %v2424 = vunpack.c.h.b16 %v2248
    %v2425 = vunpack.c.l.b16 %v2249
    %v2426 = vunpack.c.h.b16 %v2249
    %v2427 = vunpack.c.l.b16 %v2250
    %v2428 = vunpack.c.h.b16 %v2250
    %v2429 = vunpack.c.l.b16 %v2251
    %v2430 = vunpack.c.h.b16 %v2251
    %v2431 = vunpack.c.l.b16 %v2252
    %v2432 = vunpack.c.h.b16 %v2252
    %v2433 = vunpack.c.l.b16 %v2253
    %v2434 = vunpack.c.h.b16 %v2253
    %v2435 = vunpack.c.l.b16 %v2254
    %v2436 = vunpack.c.h.b16 %v2254
    %v2437 = vunpack.c.l.b16 %v2255
    %v2438 = vunpack.c.h.b16 %v2255
    %v2439 = vunpack.c.l.b16 %v2256
    %v2440 = vunpack.c.h.b16 %v2256
    %v2441 = vunpack.c.l.b16 %v2257
    %v2442 = vunpack.c.h.b16 %v2257
    %v2443 = vunpack.c.l.b16 %v2258
    %v2444 = vunpack.c.h.b16 %v2258
    %v2445 = vunpack.c.l.b16 %v2259
    %v2446 = vunpack.c.h.b16 %v2259
    %v2447 = vunpack.c.l.b16 %v2260
    %v2448 = vunpack.c.h.b16 %v2260
    %v2449 = vunpack.c.l.b16 %v2261
    %v2450 = vunpack.c.h.b16 %v2261
    %v2451 = vunpack.c.l.b16 %v2262
    %v2452 = vunpack.c.h.b16 %v2262
    %v2453 = vunpack.c.l.b16 %v2263
    %v2454 = vunpack.c.h.b16 %v2263
    %v2455 = vunpack.c.l.b16 %v2264
    %v2456 = vunpack.c.h.b16 %v2264
    %v2457 = vpack.c.b16 %v2333, %v2329
    %v2458 = vpack.c.b16 %v2334, %v2330
    %v2459 = vpack.c.b16 %v2335, %v2331
    %v2460 = vpack.c.b16 %v2336, %v2332
    %v2461 = vpack.c.b16 %v2341, %v2337
    %v2462 = vpack.c.b16 %v2342, %v2338
    %v2463 = vpack.c.b16 %v2343, %v2339
    %v2464 = vpack.c.b16 %v2344, %v2340
    %v2465 = vpack.c.b16 %v2349, %v2345
    %v2466 = vpack.c.b16 %v2350, %v2346
    %v2467 = vpack.c.b16 %v2351, %v2347
    %v2468 = vpack.c.b16 %v2352, %v2348
    %v2469 = vpack.c.b16 %v2357, %v2353
    %v2470 = vpack.c.b16 %v2358, %v2354
    %v2471 = vpack.c.b16 %v2359, %v2355
    %v2472 = vpack.c.b16 %v2360, %v2356
    %v2473 = vpack.c.b16 %v2365, %v2361
    %v2474 = vpack.c.b16 %v2366, %v2362
    %v2475 = vpack.c.b16 %v2367, %v2363
    %v2476 = vpack.c.b16 %v2368, %v2364
    %v2477 = vpack.c.b16 %v2373, %v2369
    %v2478 = vpack.c.b16 %v2374, %v2370
    %v2479 = vpack.c.b16 %v2375, %v2371
    %v2480 = vpack.c.b16 %v2376, %v2372
    %v2481 = vpack.c.b16 %v2381, %v2377
    %v2482 = vpack.c.b16 %v2382, %v2378
    %v2483 = vpack.c.b16 %v2383, %v2379
    %v2484 = vpack.c.b16 %v2384, %v2380
    %v2485 = vpack.c.b16 %v2389, %v2385
    %v2486 = vpack.c.b16 %v2390, %v2386
    %v2487 = vpack.c.b16 %v2391, %v2387
    %v2488 = vpack.c.b16 %v2392, %v2388
    %v2489 = vpack.c.b16 %v2397, %v2393
    %v2490 = vpack.c.b16 %v2398, %v2394
    %v2491 = vpack.c.b16 %v2399, %v2395
    %v2492 = vpack.c.b16 %v2400, %v2396
    %v2493 = vpack.c.b16 %v2405, %v2401
    %v2494 = vpack.c.b16 %v2406, %v2402
    %v2495 = vpack.c.b16 %v2407, %v2403
    %v2496 = vpack.c.b16 %v2408, %v2404
    %v2497 = vpack.c.b16 %v2413, %v2409
    %v2498 = vpack.c.b16 %v2414, %v2410
    %v2499 = vpack.c.b16 %v2415, %v2411
    %v2500 = vpack.c.b16 %v2416, %v2412
    %v2501 = vpack.c.b16 %v2421, %v2417
    %v2502 = vpack.c.b16 %v2422, %v2418
    %v2503 = vpack.c.b16 %v2423, %v2419
    %v2504 = vpack.c.b16 %v2424, %v2420
    %v2505 = vpack.c.b16 %v2429, %v2425
    %v2506 = vpack.c.b16 %v2430, %v2426
    %v2507 = vpack.c.b16 %v2431, %v2427
    %v2508 = vpack.c.b16 %v2432, %v2428
    %v2509 = vpack.c.b16 %v2437, %v2433
    %v2510 = vpack.c.b16 %v2438, %v2434
    %v2511 = vpack.c.b16 %v2439, %v2435
    %v2512 = vpack.c.b16 %v2440, %v2436
    %v2513 = vpack.c.b16 %v2445, %v2441
    %v2514 = vpack.c.b16 %v2446, %v2442
    %v2515 = vpack.c.b16 %v2447, %v2443
    %v2516 = vpack.c.b16 %v2448, %v2444
    %v2517 = vpack.c.b16 %v2453, %v2449
    %v2518 = vpack.c.b16 %v2454, %v2450
    %v2519 = vpack.c.b16 %v2455, %v2451
    %v2520 = vpack.c.b16 %v2456, %v2452
    %2585 = vmatprep.subr.bf16.mxu0 %v2458
    %2586 = vmatpush1.bf16.msra.mxu0 %v2457
    %2587 = vmatprep.subr.bf16.mxu0 %v2462
    %2588 = vmatpush1.bf16.msra.mxu0 %v2461
    %2589 = vmatprep.subr.bf16.mxu0 %v2466
    %2590 = vmatpush1.bf16.msra.mxu0 %v2465
    %2591 = vmatprep.subr.bf16.mxu0 %v2470
    %2592 = vmatpush1.bf16.msra.mxu0 %v2469
    %2593 = vmatprep.subr.bf16.mxu0 %v2474
    %2594 = vmatpush1.bf16.msra.mxu0 %v2473
    %2595 = vmatprep.subr.bf16.mxu0 %v2478
    %2596 = vmatpush1.bf16.msra.mxu0 %v2477
    %2597 = vmatprep.subr.bf16.mxu0 %v2482
    %2598 = vmatpush1.bf16.msra.mxu0 %v2481
    %2599 = vmatprep.subr.bf16.mxu0 %v2486
    %2600 = vmatpush1.bf16.msra.mxu0 %v2485
    %2601 = vmatprep.subr.bf16.mxu0 %v2490
    %2602 = vmatpush1.bf16.msra.mxu0 %v2489
    %2603 = vmatprep.subr.bf16.mxu0 %v2494
    %2604 = vmatpush1.bf16.msra.mxu0 %v2493
    %2605 = vmatprep.subr.bf16.mxu0 %v2498
    %2606 = vmatpush1.bf16.msra.mxu0 %v2497
    %2607 = vmatprep.subr.bf16.mxu0 %v2502
    %2608 = vmatpush1.bf16.msra.mxu0 %v2501
    %2609 = vmatprep.subr.bf16.mxu0 %v2506
    %2610 = vmatpush1.bf16.msra.mxu0 %v2505
    %2611 = vmatprep.subr.bf16.mxu0 %v2510
    %2612 = vmatpush1.bf16.msra.mxu0 %v2509
    %2613 = vmatprep.subr.bf16.mxu0 %v2514
    %2614 = vmatpush1.bf16.msra.mxu0 %v2513
    %2615 = vmatprep.subr.bf16.mxu0 %v2518
    %2616 = vmatpush1.bf16.msra.mxu0 %v2517
    %2617 = vmatprep.mubr.bf16.mxu0 %v2200
    %2618 = vmatmul.mubr.bf16.gmra.mrb[0].mxu0 %v2199
    %v2619 = vpop.f32.mrb[0].mxu0
    %v2620 = vadd.f32 0.0, %v2619
    %v2621 = vpop.f32.mrb[0].mxu0
    %v2622 = vadd.f32 0.0, %v2621
    %v2623 = vpop.f32.mrb[0].mxu0
    %v2624 = vpop.f32.mrb[0].mxu0
    %2625 = vdwg.mxu0
    %2626 = vmatprep.subr.bf16.mxu0 %v2460
    %2627 = vmatpush1.bf16.msra.mxu0 %v2459
    %2628 = vmatprep.subr.bf16.mxu0 %v2464
    %2629 = vmatpush1.bf16.msra.mxu0 %v2463
    %2630 = vmatprep.subr.bf16.mxu0 %v2468
    %2631 = vmatpush1.bf16.msra.mxu0 %v2467
    %2632 = vmatprep.subr.bf16.mxu0 %v2472
    %2633 = vmatpush1.bf16.msra.mxu0 %v2471
    %2634 = vmatprep.subr.bf16.mxu0 %v2476
    %2635 = vmatpush1.bf16.msra.mxu0 %v2475
    %2636 = vmatprep.subr.bf16.mxu0 %v2480
    %2637 = vmatpush1.bf16.msra.mxu0 %v2479
    %2638 = vmatprep.subr.bf16.mxu0 %v2484
    %2639 = vmatpush1.bf16.msra.mxu0 %v2483
    %2640 = vmatprep.subr.bf16.mxu0 %v2488
    %2641 = vmatpush1.bf16.msra.mxu0 %v2487
    %2642 = vmatprep.subr.bf16.mxu0 %v2492
    %2643 = vmatpush1.bf16.msra.mxu0 %v2491
    %2644 = vmatprep.subr.bf16.mxu0 %v2496
    %2645 = vmatpush1.bf16.msra.mxu0 %v2495
    %2646 = vmatprep.subr.bf16.mxu0 %v2500
    %2647 = vmatpush1.bf16.msra.mxu0 %v2499
    %2648 = vmatprep.subr.bf16.mxu0 %v2504
    %2649 = vmatpush1.bf16.msra.mxu0 %v2503
    %2650 = vmatprep.subr.bf16.mxu0 %v2508
    %2651 = vmatpush1.bf16.msra.mxu0 %v2507
    %2652 = vmatprep.subr.bf16.mxu0 %v2512
    %2653 = vmatpush1.bf16.msra.mxu0 %v2511
    %2654 = vmatprep.subr.bf16.mxu0 %v2516
    %2655 = vmatpush1.bf16.msra.mxu0 %v2515
    %2656 = vmatprep.subr.bf16.mxu0 %v2520
    %2657 = vmatpush1.bf16.msra.mxu0 %v2519
    %2658 = vmatprep.mubr.bf16.mxu0 %v2200
    %2659 = vmatmul.mubr.bf16.gmra.mrb[0].mxu0 %v2199
    %v2660 = vpop.f32.mrb[0].mxu0
    %v2661 = vadd.f32 0.0, %v2660
    %v2662 = vpop.f32.mrb[0].mxu0
    %v2663 = vadd.f32 0.0, %v2662
    %v2664 = vpop.f32.mrb[0].mxu0
    %v2665 = vpop.f32.mrb[0].mxu0
    %2666 = vdwg.mxu0
    %v2667 = vrot.slane %v2620, 4
    %v2668 = vadd.f32 %v2620, %v2667
    %v2669 = vrot.slane %v2668, 2
    %v2670 = vadd.f32 %v2668, %v2669
    %v2671 = vrot.slane %v2670, 1
    %v2672 = vadd.f32 %v2670, %v2671
    %v2673 = vrot.slane %v2622, 4
    %v2674 = vadd.f32 %v2622, %v2673
    %v2675 = vrot.slane %v2674, 2
    %v2676 = vadd.f32 %v2674, %v2675
    %v2677 = vrot.slane %v2676, 1
    %v2678 = vadd.f32 %v2676, %v2677
    %v2679 = vrot.slane %v2661, 4
    %v2680 = vadd.f32 %v2661, %v2679
    %v2681 = vrot.slane %v2680, 2
    %v2682 = vadd.f32 %v2680, %v2681
    %v2683 = vrot.slane %v2682, 1
    %v2684 = vadd.f32 %v2682, %v2683
    %v2685 = vrot.slane %v2663, 4
    %v2686 = vadd.f32 %v2663, %v2685
    %v2687 = vrot.slane %v2686, 2
    %v2688 = vadd.f32 %v2686, %v2687
    %v2689 = vrot.slane %v2688, 1
    %v2690 = vadd.f32 %v2688, %v2689
    %v2691 = vmul.f32 %v2672, %v2142
    %v2692 = vmul.f32 %v2678, %v2142
    %v2693 = vmul.f32 %v2684, %v2142
    %v2694 = vmul.f32 %v2690, %v2142
    %v2695 = vsub.f32 %v2620, %v2691
    %v2696 = vsub.f32 %v2622, %v2692
    %v2697 = vsub.f32 %v2661, %v2693
    %v2698 = vsub.f32 %v2663, %v2694
    %v2699 = vmul.f32 %v2695, %v2695
    %v2700 = vmul.f32 %v2696, %v2696
    %v2701 = vmul.f32 %v2697, %v2697
    %v2702 = vmul.f32 %v2698, %v2698
    %v2703 = vrot.slane %v2699, 4
    %v2704 = vadd.f32 %v2699, %v2703
    %v2705 = vrot.slane %v2704, 2
    %v2706 = vadd.f32 %v2704, %v2705
    %v2707 = vrot.slane %v2706, 1
    %v2708 = vadd.f32 %v2706, %v2707
    %v2709 = vrot.slane %v2700, 4
    %v2710 = vadd.f32 %v2700, %v2709
    %v2711 = vrot.slane %v2710, 2
    %v2712 = vadd.f32 %v2710, %v2711
    %v2713 = vrot.slane %v2712, 1
    %v2714 = vadd.f32 %v2712, %v2713
    %v2715 = vrot.slane %v2701, 4
    %v2716 = vadd.f32 %v2701, %v2715
    %v2717 = vrot.slane %v2716, 2
    %v2718 = vadd.f32 %v2716, %v2717
    %v2719 = vrot.slane %v2718, 1
    %v2720 = vadd.f32 %v2718, %v2719
    %v2721 = vrot.slane %v2702, 4
    %v2722 = vadd.f32 %v2702, %v2721
    %v2723 = vrot.slane %v2722, 2
    %v2724 = vadd.f32 %v2722, %v2723
    %v2725 = vrot.slane %v2724, 1
    %v2726 = vadd.f32 %v2724, %v2725
    %v2727 = vmul.f32 %v2708, %v2142
    %v2728 = vmul.f32 %v2714, %v2142
    %v2729 = vmul.f32 %v2720, %v2142
    %v2730 = vmul.f32 %v2726, %v2142
    %v2731 = vadd.f32 %v2727, 1e-05
    %v2732 = vadd.f32 %v2728, 1e-05
    %v2733 = vadd.f32 %v2729, 1e-05
    %v2734 = vadd.f32 %v2730, 1e-05
    %v2735 = vrsqrt.pop %v2731
    %v2736 = vrsqrt.pop %v2732
    %v2737 = vrsqrt.pop %v2733
    %v2738 = vrsqrt.pop %v2734
    %v2739 = vmul.f32 %v2695, %v2735
    %v2740 = vmul.f32 %v2696, %v2736
    %v2741 = vmul.f32 %v2697, %v2737
    %v2742 = vmul.f32 %v2698, %v2738
    %v2743 = vld [vmem:[%s7] sm:$0xf]
    %v2745 = vlaneseq
    %v2746 = vshrl.u32 %v2745, 7
    %v2747 = vsub.s32 0, %v2746
    %v2748 = vrot.slane %v2743, %v2747
    %v2749 = vlaneseq
    %v2750 = vshrl.u32 %v2749, 7
    %v2751 = vsub.s32 1, %v2750
    %v2752 = vrot.slane %v2743, %v2751
    %v2753 = vlaneseq
    %v2754 = vshrl.u32 %v2753, 7
    %v2755 = vsub.s32 2, %v2754
    %v2756 = vrot.slane %v2743, %v2755
    %v2757 = vlaneseq
    %v2758 = vshrl.u32 %v2757, 7
    %v2759 = vsub.s32 3, %v2758
    %v2760 = vrot.slane %v2743, %v2759
    %v2765 = vmul.f32 %v2739, %v2748
    %v2766 = vmul.f32 %v2740, %v2752
    %v2767 = vmul.f32 %v2741, %v2756
    %v2768 = vmul.f32 %v2742, %v2760
    %v2769 = vld [vmem:[%s8] sm:$0xf]
    %v2771 = vlaneseq
    %v2772 = vshrl.u32 %v2771, 7
    %v2773 = vsub.s32 0, %v2772
    %v2774 = vrot.slane %v2769, %v2773
    %v2775 = vlaneseq
    %v2776 = vshrl.u32 %v2775, 7
    %v2777 = vsub.s32 1, %v2776
    %v2778 = vrot.slane %v2769, %v2777
    %v2779 = vlaneseq
    %v2780 = vshrl.u32 %v2779, 7
    %v2781 = vsub.s32 2, %v2780
    %v2782 = vrot.slane %v2769, %v2781
    %v2783 = vlaneseq
    %v2784 = vshrl.u32 %v2783, 7
    %v2785 = vsub.s32 3, %v2784
    %v2786 = vrot.slane %v2769, %v2785
    %v2791 = vadd.f32 %v2765, %v2774
    %v2792 = vadd.f32 %v2766, %v2778
    %v2793 = vadd.f32 %v2767, %v2782
    %v2794 = vadd.f32 %v2768, %v2786
    %v2795 = vmax.f32 %v2791, 0.0
    %v2796 = vmax.f32 %v2792, 0.0
    %v2797 = vmax.f32 %v2793, 0.0
    %v2798 = vmax.f32 %v2794, 0.0
    %s2799 = smul.u32 4, 64
    %s2800 = smul.u32 %s2799, 7
    %s2801 = sshll.u32 %s2800, 4
    %2802 = dma.done [#allocation3], %s2801
    %v2803 = vpack.c.bf16 %v2795, %v2795
    %v2804 = vpack.c.bf16 %v2796, %v2796
    %v2805 = vpack.c.bf16 %v2797, %v2797
    %v2806 = vpack.c.bf16 %v2798, %v2798
    %v2807 = vld [vmem:[#allocation2] sm:$0xff]
    %v2808 = vld [vmem:[#allocation2 + $0x8] sm:$0xff]
    %v2809 = vld [vmem:[#allocation2 + $0x10] sm:$0xff]
    %v2810 = vld [vmem:[#allocation2 + $0x18] sm:$0xff]
    %v2811 = vld [vmem:[#allocation2 + $0x20] sm:$0xff]
    %v2812 = vld [vmem:[#allocation2 + $0x28] sm:$0xff]
    %v2813 = vld [vmem:[#allocation2 + $0x30] sm:$0xff]
    %v2814 = vld [vmem:[#allocation2 + $0x38] sm:$0xff]
    %v2815 = vld [vmem:[#allocation2 + $0x40] sm:$0xff]
    %v2816 = vld [vmem:[#allocation2 + $0x48] sm:$0xff]
    %v2817 = vld [vmem:[#allocation2 + $0x50] sm:$0xff]
    %v2818 = vld [vmem:[#allocation2 + $0x58] sm:$0xff]
    %v2819 = vld [vmem:[#allocation2 + $0x60] sm:$0xff]
    %v2820 = vld [vmem:[#allocation2 + $0x68] sm:$0xff]
    %v2821 = vld [vmem:[#allocation2 + $0x70] sm:$0xff]
    %v2822 = vld [vmem:[#allocation2 + $0x78] sm:$0xff]
    %v2823 = vld [vmem:[#allocation2 + $0x80] sm:$0xff]
    %v2824 = vld [vmem:[#allocation2 + $0x88] sm:$0xff]
    %v2825 = vld [vmem:[#allocation2 + $0x90] sm:$0xff]
    %v2826 = vld [vmem:[#allocation2 + $0x98] sm:$0xff]
    %v2827 = vld [vmem:[#allocation2 + $0xa0] sm:$0xff]
    %v2828 = vld [vmem:[#allocation2 + $0xa8] sm:$0xff]
    %v2829 = vld [vmem:[#allocation2 + $0xb0] sm:$0xff]
    %v2830 = vld [vmem:[#allocation2 + $0xb8] sm:$0xff]
    %v2831 = vld [vmem:[#allocation2 + $0xc0] sm:$0xff]
    %v2832 = vld [vmem:[#allocation2 + $0xc8] sm:$0xff]
    %v2833 = vld [vmem:[#allocation2 + $0xd0] sm:$0xff]
    %v2834 = vld [vmem:[#allocation2 + $0xd8] sm:$0xff]
    %v2835 = vld [vmem:[#allocation2 + $0xe0] sm:$0xff]
    %v2836 = vld [vmem:[#allocation2 + $0xe8] sm:$0xff]
    %v2837 = vld [vmem:[#allocation2 + $0xf0] sm:$0xff]
    %v2838 = vld [vmem:[#allocation2 + $0xf8] sm:$0xff]
    %v2839 = vld [vmem:[#allocation2 + $0x100] sm:$0xff]
    %v2840 = vld [vmem:[#allocation2 + $0x108] sm:$0xff]
    %v2841 = vld [vmem:[#allocation2 + $0x110] sm:$0xff]
    %v2842 = vld [vmem:[#allocation2 + $0x118] sm:$0xff]
    %v2843 = vld [vmem:[#allocation2 + $0x120] sm:$0xff]
    %v2844 = vld [vmem:[#allocation2 + $0x128] sm:$0xff]
    %v2845 = vld [vmem:[#allocation2 + $0x130] sm:$0xff]
    %v2846 = vld [vmem:[#allocation2 + $0x138] sm:$0xff]
    %v2847 = vld [vmem:[#allocation2 + $0x140] sm:$0xff]
    %v2848 = vld [vmem:[#allocation2 + $0x148] sm:$0xff]
    %v2849 = vld [vmem:[#allocation2 + $0x150] sm:$0xff]
    %v2850 = vld [vmem:[#allocation2 + $0x158] sm:$0xff]
    %v2851 = vld [vmem:[#allocation2 + $0x160] sm:$0xff]
    %v2852 = vld [vmem:[#allocation2 + $0x168] sm:$0xff]
    %v2853 = vld [vmem:[#allocation2 + $0x170] sm:$0xff]
    %v2854 = vld [vmem:[#allocation2 + $0x178] sm:$0xff]
    %v2855 = vld [vmem:[#allocation2 + $0x180] sm:$0xff]
    %v2856 = vld [vmem:[#allocation2 + $0x188] sm:$0xff]
    %v2857 = vld [vmem:[#allocation2 + $0x190] sm:$0xff]
    %v2858 = vld [vmem:[#allocation2 + $0x198] sm:$0xff]
    %v2859 = vld [vmem:[#allocation2 + $0x1a0] sm:$0xff]
    %v2860 = vld [vmem:[#allocation2 + $0x1a8] sm:$0xff]
    %v2861 = vld [vmem:[#allocation2 + $0x1b0] sm:$0xff]
    %v2862 = vld [vmem:[#allocation2 + $0x1b8] sm:$0xff]
    %v2863 = vld [vmem:[#allocation2 + $0x1c0] sm:$0xff]
    %v2864 = vld [vmem:[#allocation2 + $0x1c8] sm:$0xff]
    %v2865 = vld [vmem:[#allocation2 + $0x1d0] sm:$0xff]
    %v2866 = vld [vmem:[#allocation2 + $0x1d8] sm:$0xff]
    %v2867 = vld [vmem:[#allocation2 + $0x1e0] sm:$0xff]
    %v2868 = vld [vmem:[#allocation2 + $0x1e8] sm:$0xff]
    %v2869 = vld [vmem:[#allocation2 + $0x1f0] sm:$0xff]
    %v2870 = vld [vmem:[#allocation2 + $0x1f8] sm:$0xff]
    %v2871 = vld [vmem:[#allocation2 + $0x200] sm:$0xff]
    %v2872 = vld [vmem:[#allocation2 + $0x208] sm:$0xff]
    %v2873 = vld [vmem:[#allocation2 + $0x210] sm:$0xff]
    %v2874 = vld [vmem:[#allocation2 + $0x218] sm:$0xff]
    %v2875 = vld [vmem:[#allocation2 + $0x220] sm:$0xff]
    %v2876 = vld [vmem:[#allocation2 + $0x228] sm:$0xff]
    %v2877 = vld [vmem:[#allocation2 + $0x230] sm:$0xff]
    %v2878 = vld [vmem:[#allocation2 + $0x238] sm:$0xff]
    %v2879 = vld [vmem:[#allocation2 + $0x240] sm:$0xff]
    %v2880 = vld [vmem:[#allocation2 + $0x248] sm:$0xff]
    %v2881 = vld [vmem:[#allocation2 + $0x250] sm:$0xff]
    %v2882 = vld [vmem:[#allocation2 + $0x258] sm:$0xff]
    %v2883 = vld [vmem:[#allocation2 + $0x260] sm:$0xff]
    %v2884 = vld [vmem:[#allocation2 + $0x268] sm:$0xff]
    %v2885 = vld [vmem:[#allocation2 + $0x270] sm:$0xff]
    %v2886 = vld [vmem:[#allocation2 + $0x278] sm:$0xff]
    %v2887 = vld [vmem:[#allocation2 + $0x280] sm:$0xff]
    %v2888 = vld [vmem:[#allocation2 + $0x288] sm:$0xff]
    %v2889 = vld [vmem:[#allocation2 + $0x290] sm:$0xff]
    %v2890 = vld [vmem:[#allocation2 + $0x298] sm:$0xff]
    %v2891 = vld [vmem:[#allocation2 + $0x2a0] sm:$0xff]
    %v2892 = vld [vmem:[#allocation2 + $0x2a8] sm:$0xff]
    %v2893 = vld [vmem:[#allocation2 + $0x2b0] sm:$0xff]
    %v2894 = vld [vmem:[#allocation2 + $0x2b8] sm:$0xff]
    %v2895 = vld [vmem:[#allocation2 + $0x2c0] sm:$0xff]
    %v2896 = vld [vmem:[#allocation2 + $0x2c8] sm:$0xff]
    %v2897 = vld [vmem:[#allocation2 + $0x2d0] sm:$0xff]
    %v2898 = vld [vmem:[#allocation2 + $0x2d8] sm:$0xff]
    %v2899 = vld [vmem:[#allocation2 + $0x2e0] sm:$0xff]
    %v2900 = vld [vmem:[#allocation2 + $0x2e8] sm:$0xff]
    %v2901 = vld [vmem:[#allocation2 + $0x2f0] sm:$0xff]
    %v2902 = vld [vmem:[#allocation2 + $0x2f8] sm:$0xff]
    %v2903 = vld [vmem:[#allocation2 + $0x300] sm:$0xff]
    %v2904 = vld [vmem:[#allocation2 + $0x308] sm:$0xff]
    %v2905 = vld [vmem:[#allocation2 + $0x310] sm:$0xff]
    %v2906 = vld [vmem:[#allocation2 + $0x318] sm:$0xff]
    %v2907 = vld [vmem:[#allocation2 + $0x320] sm:$0xff]
    %v2908 = vld [vmem:[#allocation2 + $0x328] sm:$0xff]
    %v2909 = vld [vmem:[#allocation2 + $0x330] sm:$0xff]
    %v2910 = vld [vmem:[#allocation2 + $0x338] sm:$0xff]
    %v2911 = vld [vmem:[#allocation2 + $0x340] sm:$0xff]
    %v2912 = vld [vmem:[#allocation2 + $0x348] sm:$0xff]
    %v2913 = vld [vmem:[#allocation2 + $0x350] sm:$0xff]
    %v2914 = vld [vmem:[#allocation2 + $0x358] sm:$0xff]
    %v2915 = vld [vmem:[#allocation2 + $0x360] sm:$0xff]
    %v2916 = vld [vmem:[#allocation2 + $0x368] sm:$0xff]
    %v2917 = vld [vmem:[#allocation2 + $0x370] sm:$0xff]
    %v2918 = vld [vmem:[#allocation2 + $0x378] sm:$0xff]
    %v2919 = vld [vmem:[#allocation2 + $0x380] sm:$0xff]
    %v2920 = vld [vmem:[#allocation2 + $0x388] sm:$0xff]
    %v2921 = vld [vmem:[#allocation2 + $0x390] sm:$0xff]
    %v2922 = vld [vmem:[#allocation2 + $0x398] sm:$0xff]
    %v2923 = vld [vmem:[#allocation2 + $0x3a0] sm:$0xff]
    %v2924 = vld [vmem:[#allocation2 + $0x3a8] sm:$0xff]
    %v2925 = vld [vmem:[#allocation2 + $0x3b0] sm:$0xff]
    %v2926 = vld [vmem:[#allocation2 + $0x3b8] sm:$0xff]
    %v2927 = vld [vmem:[#allocation2 + $0x3c0] sm:$0xff]
    %v2928 = vld [vmem:[#allocation2 + $0x3c8] sm:$0xff]
    %v2929 = vld [vmem:[#allocation2 + $0x3d0] sm:$0xff]
    %v2930 = vld [vmem:[#allocation2 + $0x3d8] sm:$0xff]
    %v2931 = vld [vmem:[#allocation2 + $0x3e0] sm:$0xff]
    %v2932 = vld [vmem:[#allocation2 + $0x3e8] sm:$0xff]
    %v2933 = vld [vmem:[#allocation2 + $0x3f0] sm:$0xff]
    %v2934 = vld [vmem:[#allocation2 + $0x3f8] sm:$0xff]
    %v2935 = vld [vmem:[#allocation2 + $0x400] sm:$0xff]
    %v2936 = vld [vmem:[#allocation2 + $0x408] sm:$0xff]
    %v2937 = vld [vmem:[#allocation2 + $0x410] sm:$0xff]
    %v2938 = vld [vmem:[#allocation2 + $0x418] sm:$0xff]
    %v2939 = vld [vmem:[#allocation2 + $0x420] sm:$0xff]
    %v2940 = vld [vmem:[#allocation2 + $0x428] sm:$0xff]
    %v2941 = vld [vmem:[#allocation2 + $0x430] sm:$0xff]
    %v2942 = vld [vmem:[#allocation2 + $0x438] sm:$0xff]
    %v2943 = vld [vmem:[#allocation2 + $0x440] sm:$0xff]
    %v2944 = vld [vmem:[#allocation2 + $0x448] sm:$0xff]
    %v2945 = vld [vmem:[#allocation2 + $0x450] sm:$0xff]
    %v2946 = vld [vmem:[#allocation2 + $0x458] sm:$0xff]
    %v2947 = vld [vmem:[#allocation2 + $0x460] sm:$0xff]
    %v2948 = vld [vmem:[#allocation2 + $0x468] sm:$0xff]
    %v2949 = vld [vmem:[#allocation2 + $0x470] sm:$0xff]
    %v2950 = vld [vmem:[#allocation2 + $0x478] sm:$0xff]
    %v2951 = vld [vmem:[#allocation2 + $0x480] sm:$0xff]
    %v2952 = vld [vmem:[#allocation2 + $0x488] sm:$0xff]
    %v2953 = vld [vmem:[#allocation2 + $0x490] sm:$0xff]
    %v2954 = vld [vmem:[#allocation2 + $0x498] sm:$0xff]
    %v2955 = vld [vmem:[#allocation2 + $0x4a0] sm:$0xff]
    %v2956 = vld [vmem:[#allocation2 + $0x4a8] sm:$0xff]
    %v2957 = vld [vmem:[#allocation2 + $0x4b0] sm:$0xff]
    %v2958 = vld [vmem:[#allocation2 + $0x4b8] sm:$0xff]
    %v2959 = vld [vmem:[#allocation2 + $0x4c0] sm:$0xff]
    %v2960 = vld [vmem:[#allocation2 + $0x4c8] sm:$0xff]
    %v2961 = vld [vmem:[#allocation2 + $0x4d0] sm:$0xff]
    %v2962 = vld [vmem:[#allocation2 + $0x4d8] sm:$0xff]
    %v2963 = vld [vmem:[#allocation2 + $0x4e0] sm:$0xff]
    %v2964 = vld [vmem:[#allocation2 + $0x4e8] sm:$0xff]
    %v2965 = vld [vmem:[#allocation2 + $0x4f0] sm:$0xff]
    %v2966 = vld [vmem:[#allocation2 + $0x4f8] sm:$0xff]
    %v2967 = vld [vmem:[#allocation2 + $0x500] sm:$0xff]
    %v2968 = vld [vmem:[#allocation2 + $0x508] sm:$0xff]
    %v2969 = vld [vmem:[#allocation2 + $0x510] sm:$0xff]
    %v2970 = vld [vmem:[#allocation2 + $0x518] sm:$0xff]
    %v2971 = vld [vmem:[#allocation2 + $0x520] sm:$0xff]
    %v2972 = vld [vmem:[#allocation2 + $0x528] sm:$0xff]
    %v2973 = vld [vmem:[#allocation2 + $0x530] sm:$0xff]
    %v2974 = vld [vmem:[#allocation2 + $0x538] sm:$0xff]
    %v2975 = vld [vmem:[#allocation2 + $0x540] sm:$0xff]
    %v2976 = vld [vmem:[#allocation2 + $0x548] sm:$0xff]
    %v2977 = vld [vmem:[#allocation2 + $0x550] sm:$0xff]
    %v2978 = vld [vmem:[#allocation2 + $0x558] sm:$0xff]
    %v2979 = vld [vmem:[#allocation2 + $0x560] sm:$0xff]
    %v2980 = vld [vmem:[#allocation2 + $0x568] sm:$0xff]
    %v2981 = vld [vmem:[#allocation2 + $0x570] sm:$0xff]
    %v2982 = vld [vmem:[#allocation2 + $0x578] sm:$0xff]
    %v2983 = vld [vmem:[#allocation2 + $0x580] sm:$0xff]
    %v2984 = vld [vmem:[#allocation2 + $0x588] sm:$0xff]
    %v2985 = vld [vmem:[#allocation2 + $0x590] sm:$0xff]
    %v2986 = vld [vmem:[#allocation2 + $0x598] sm:$0xff]
    %v2987 = vld [vmem:[#allocation2 + $0x5a0] sm:$0xff]
    %v2988 = vld [vmem:[#allocation2 + $0x5a8] sm:$0xff]
    %v2989 = vld [vmem:[#allocation2 + $0x5b0] sm:$0xff]
    %v2990 = vld [vmem:[#allocation2 + $0x5b8] sm:$0xff]
    %v2991 = vld [vmem:[#allocation2 + $0x5c0] sm:$0xff]
    %v2992 = vld [vmem:[#allocation2 + $0x5c8] sm:$0xff]
    %v2993 = vld [vmem:[#allocation2 + $0x5d0] sm:$0xff]
    %v2994 = vld [vmem:[#allocation2 + $0x5d8] sm:$0xff]
    %v2995 = vld [vmem:[#allocation2 + $0x5e0] sm:$0xff]
    %v2996 = vld [vmem:[#allocation2 + $0x5e8] sm:$0xff]
    %v2997 = vld [vmem:[#allocation2 + $0x5f0] sm:$0xff]
    %v2998 = vld [vmem:[#allocation2 + $0x5f8] sm:$0xff]
    %v2999 = vld [vmem:[#allocation2 + $0x600] sm:$0xff]
    %v3000 = vld [vmem:[#allocation2 + $0x608] sm:$0xff]
    %v3001 = vld [vmem:[#allocation2 + $0x610] sm:$0xff]
    %v3002 = vld [vmem:[#allocation2 + $0x618] sm:$0xff]
    %v3003 = vld [vmem:[#allocation2 + $0x620] sm:$0xff]
    %v3004 = vld [vmem:[#allocation2 + $0x628] sm:$0xff]
    %v3005 = vld [vmem:[#allocation2 + $0x630] sm:$0xff]
    %v3006 = vld [vmem:[#allocation2 + $0x638] sm:$0xff]
    %v3007 = vld [vmem:[#allocation2 + $0x640] sm:$0xff]
    %v3008 = vld [vmem:[#allocation2 + $0x648] sm:$0xff]
    %v3009 = vld [vmem:[#allocation2 + $0x650] sm:$0xff]
    %v3010 = vld [vmem:[#allocation2 + $0x658] sm:$0xff]
    %v3011 = vld [vmem:[#allocation2 + $0x660] sm:$0xff]
    %v3012 = vld [vmem:[#allocation2 + $0x668] sm:$0xff]
    %v3013 = vld [vmem:[#allocation2 + $0x670] sm:$0xff]
    %v3014 = vld [vmem:[#allocation2 + $0x678] sm:$0xff]
    %v3015 = vld [vmem:[#allocation2 + $0x680] sm:$0xff]
    %v3016 = vld [vmem:[#allocation2 + $0x688] sm:$0xff]
    %v3017 = vld [vmem:[#allocation2 + $0x690] sm:$0xff]
    %v3018 = vld [vmem:[#allocation2 + $0x698] sm:$0xff]
    %v3019 = vld [vmem:[#allocation2 + $0x6a0] sm:$0xff]
    %v3020 = vld [vmem:[#allocation2 + $0x6a8] sm:$0xff]
    %v3021 = vld [vmem:[#allocation2 + $0x6b0] sm:$0xff]
    %v3022 = vld [vmem:[#allocation2 + $0x6b8] sm:$0xff]
    %v3023 = vld [vmem:[#allocation2 + $0x6c0] sm:$0xff]
    %v3024 = vld [vmem:[#allocation2 + $0x6c8] sm:$0xff]
    %v3025 = vld [vmem:[#allocation2 + $0x6d0] sm:$0xff]
    %v3026 = vld [vmem:[#allocation2 + $0x6d8] sm:$0xff]
    %v3027 = vld [vmem:[#allocation2 + $0x6e0] sm:$0xff]
    %v3028 = vld [vmem:[#allocation2 + $0x6e8] sm:$0xff]
    %v3029 = vld [vmem:[#allocation2 + $0x6f0] sm:$0xff]
    %v3030 = vld [vmem:[#allocation2 + $0x6f8] sm:$0xff]
    %v3031 = vld [vmem:[%s10] sm:$0x7f]
    %v3033 = vlaneseq
    %v3034 = vshrl.u32 %v3033, 7
    %v3035 = vsub.s32 0, %v3034
    %v3036 = vrot.slane %v3031, %v3035
    %v3037 = vlaneseq
    %v3038 = vshrl.u32 %v3037, 7
    %v3039 = vsub.s32 1, %v3038
    %v3040 = vrot.slane %v3031, %v3039
    %v3041 = vlaneseq
    %v3042 = vshrl.u32 %v3041, 7
    %v3043 = vsub.s32 2, %v3042
    %v3044 = vrot.slane %v3031, %v3043
    %v3045 = vlaneseq
    %v3046 = vshrl.u32 %v3045, 7
    %v3047 = vsub.s32 3, %v3046
    %v3048 = vrot.slane %v3031, %v3047
    %v3049 = vlaneseq
    %v3050 = vshrl.u32 %v3049, 7
    %v3051 = vsub.s32 4, %v3050
    %v3052 = vrot.slane %v3031, %v3051
    %v3053 = vlaneseq
    %v3054 = vshrl.u32 %v3053, 7
    %v3055 = vsub.s32 5, %v3054
    %v3056 = vrot.slane %v3031, %v3055
    %v3057 = vlaneseq
    %v3058 = vshrl.u32 %v3057, 7
    %v3059 = vsub.s32 6, %v3058
    %v3060 = vrot.slane %v3031, %v3059
    %3068 = vmatprep.subr.bf16.mxu0 %v2808
    %3069 = vmatpush1.bf16.msra.mxu0 %v2807
    %3070 = vmatprep.subr.bf16.mxu0 %v2815
    %3071 = vmatpush1.bf16.msra.mxu0 %v2814
    %3072 = vmatprep.subr.bf16.mxu0 %v2822
    %3073 = vmatpush1.bf16.msra.mxu0 %v2821
    %3074 = vmatprep.subr.bf16.mxu0 %v2829
    %3075 = vmatpush1.bf16.msra.mxu0 %v2828
    %3076 = vmatprep.subr.bf16.mxu0 %v2836
    %3077 = vmatpush1.bf16.msra.mxu0 %v2835
    %3078 = vmatprep.subr.bf16.mxu0 %v2843
    %3079 = vmatpush1.bf16.msra.mxu0 %v2842
    %3080 = vmatprep.subr.bf16.mxu0 %v2850
    %3081 = vmatpush1.bf16.msra.mxu0 %v2849
    %3082 = vmatprep.subr.bf16.mxu0 %v2857
    %3083 = vmatpush1.bf16.msra.mxu0 %v2856
    %3084 = vmatprep.subr.bf16.mxu0 %v2864
    %3085 = vmatpush1.bf16.msra.mxu0 %v2863
    %3086 = vmatprep.subr.bf16.mxu0 %v2871
    %3087 = vmatpush1.bf16.msra.mxu0 %v2870
    %3088 = vmatprep.subr.bf16.mxu0 %v2878
    %3089 = vmatpush1.bf16.msra.mxu0 %v2877
    %3090 = vmatprep.subr.bf16.mxu0 %v2885
    %3091 = vmatpush1.bf16.msra.mxu0 %v2884
    %3092 = vmatprep.subr.bf16.mxu0 %v2892
    %3093 = vmatpush1.bf16.msra.mxu0 %v2891
    %3094 = vmatprep.subr.bf16.mxu0 %v2899
    %3095 = vmatpush1.bf16.msra.mxu0 %v2898
    %3096 = vmatprep.subr.bf16.mxu0 %v2906
    %3097 = vmatpush1.bf16.msra.mxu0 %v2905
    %3098 = vmatprep.subr.bf16.mxu0 %v2913
    %3099 = vmatpush1.bf16.msra.mxu0 %v2912
    %3100 = vmatprep.mubr.bf16.mxu0 %v2804
    %3101 = vmatmul.mubr.bf16.gmra.mrb[0].mxu0 %v2803
    %v3102 = vpop.f32.mrb[0].mxu0
    %v3103 = vadd.f32 %v3036, %v3102
    %v3104 = vpop.f32.mrb[0].mxu0
    %v3105 = vadd.f32 %v3040, %v3104
    %v3106 = vpop.f32.mrb[0].mxu0
    %v3107 = vpop.f32.mrb[0].mxu0
    %3108 = vdwg.mxu0
    %3109 = vmatprep.subr.bf16.mxu0 %v2920
    %3110 = vmatpush1.bf16.msra.mxu0 %v2919
    %3111 = vmatprep.subr.bf16.mxu0 %v2927
    %3112 = vmatpush1.bf16.msra.mxu0 %v2926
    %3113 = vmatprep.subr.bf16.mxu0 %v2934
    %3114 = vmatpush1.bf16.msra.mxu0 %v2933
    %3115 = vmatprep.subr.bf16.mxu0 %v2941
    %3116 = vmatpush1.bf16.msra.mxu0 %v2940
    %3117 = vmatprep.subr.bf16.mxu0 %v2948
    %3118 = vmatpush1.bf16.msra.mxu0 %v2947
    %3119 = vmatprep.subr.bf16.mxu0 %v2955
    %3120 = vmatpush1.bf16.msra.mxu0 %v2954
    %3121 = vmatprep.subr.bf16.mxu0 %v2962
    %3122 = vmatpush1.bf16.msra.mxu0 %v2961
    %3123 = vmatprep.subr.bf16.mxu0 %v2969
    %3124 = vmatpush1.bf16.msra.mxu0 %v2968
    %3125 = vmatprep.subr.bf16.mxu0 %v2976
    %3126 = vmatpush1.bf16.msra.mxu0 %v2975
    %3127 = vmatprep.subr.bf16.mxu0 %v2983
    %3128 = vmatpush1.bf16.msra.mxu0 %v2982
    %3129 = vmatprep.subr.bf16.mxu0 %v2990
    %3130 = vmatpush1.bf16.msra.mxu0 %v2989
    %3131 = vmatprep.subr.bf16.mxu0 %v2997
    %3132 = vmatpush1.bf16.msra.mxu0 %v2996
    %3133 = vmatprep.subr.bf16.mxu0 %v3004
    %3134 = vmatpush1.bf16.msra.mxu0 %v3003
    %3135 = vmatprep.subr.bf16.mxu0 %v3011
    %3136 = vmatpush1.bf16.msra.mxu0 %v3010
    %3137 = vmatprep.subr.bf16.mxu0 %v3018
    %3138 = vmatpush1.bf16.msra.mxu0 %v3017
    %3139 = vmatprep.subr.bf16.mxu0 %v3025
    %3140 = vmatpush1.bf16.msra.mxu0 %v3024
    %3141 = vmatprep.mubr.bf16.mxu0 %v2806
    %3142 = vmatmul.mubr.bf16.gmra.mrb[0].mxu0 %v2805
    %v3143 = vpop.f32.mrb[0].mxu0
    %v3144 = vadd.f32 %v3103, %v3143
    %v3145 = vpop.f32.mrb[0].mxu0
    %v3146 = vadd.f32 %v3105, %v3145
    %v3147 = vpop.f32.mrb[0].mxu0
    %v3148 = vpop.f32.mrb[0].mxu0
    %3149 = vdwg.mxu0
    %3150 = vmatprep.subr.bf16.mxu0 %v2810
    %3151 = vmatpush1.bf16.msra.mxu0 %v2809
    %3152 = vmatprep.subr.bf16.mxu0 %v2817
    %3153 = vmatpush1.bf16.msra.mxu0 %v2816
    %3154 = vmatprep.subr.bf16.mxu0 %v2824
    %3155 = vmatpush1.bf16.msra.mxu0 %v2823
    %3156 = vmatprep.subr.bf16.mxu0 %v2831
    %3157 = vmatpush1.bf16.msra.mxu0 %v2830
    %3158 = vmatprep.subr.bf16.mxu0 %v2838
    %3159 = vmatpush1.bf16.msra.mxu0 %v2837
    %3160 = vmatprep.subr.bf16.mxu0 %v2845
    %3161 = vmatpush1.bf16.msra.mxu0 %v2844
    %3162 = vmatprep.subr.bf16.mxu0 %v2852
    %3163 = vmatpush1.bf16.msra.mxu0 %v2851
    %3164 = vmatprep.subr.bf16.mxu0 %v2859
    %3165 = vmatpush1.bf16.msra.mxu0 %v2858
    %3166 = vmatprep.subr.bf16.mxu0 %v2866
    %3167 = vmatpush1.bf16.msra.mxu0 %v2865
    %3168 = vmatprep.subr.bf16.mxu0 %v2873
    %3169 = vmatpush1.bf16.msra.mxu0 %v2872
    %3170 = vmatprep.subr.bf16.mxu0 %v2880
    %3171 = vmatpush1.bf16.msra.mxu0 %v2879
    %3172 = vmatprep.subr.bf16.mxu0 %v2887
    %3173 = vmatpush1.bf16.msra.mxu0 %v2886
    %3174 = vmatprep.subr.bf16.mxu0 %v2894
    %3175 = vmatpush1.bf16.msra.mxu0 %v2893
    %3176 = vmatprep.subr.bf16.mxu0 %v2901
    %3177 = vmatpush1.bf16.msra.mxu0 %v2900
    %3178 = vmatprep.subr.bf16.mxu0 %v2908
    %3179 = vmatpush1.bf16.msra.mxu0 %v2907
    %3180 = vmatprep.subr.bf16.mxu0 %v2915
    %3181 = vmatpush1.bf16.msra.mxu0 %v2914
    %3182 = vmatprep.mubr.bf16.mxu0 %v2804
    %3183 = vmatmul.mubr.bf16.gmra.mrb[0].mxu0 %v2803
    %v3184 = vpop.f32.mrb[0].mxu0
    %v3185 = vadd.f32 %v3044, %v3184
    %v3186 = vpop.f32.mrb[0].mxu0
    %v3187 = vadd.f32 %v3048, %v3186
    %v3188 = vpop.f32.mrb[0].mxu0
    %v3189 = vpop.f32.mrb[0].mxu0
    %3190 = vdwg.mxu0
    %3191 = vmatprep.subr.bf16.mxu0 %v2922
    %3192 = vmatpush1.bf16.msra.mxu0 %v2921
    %3193 = vmatprep.subr.bf16.mxu0 %v2929
    %3194 = vmatpush1.bf16.msra.mxu0 %v2928
    %3195 = vmatprep.subr.bf16.mxu0 %v2936
    %3196 = vmatpush1.bf16.msra.mxu0 %v2935
    %3197 = vmatprep.subr.bf16.mxu0 %v2943
    %3198 = vmatpush1.bf16.msra.mxu0 %v2942
    %3199 = vmatprep.subr.bf16.mxu0 %v2950
    %3200 = vmatpush1.bf16.msra.mxu0 %v2949
    %3201 = vmatprep.subr.bf16.mxu0 %v2957
    %3202 = vmatpush1.bf16.msra.mxu0 %v2956
    %3203 = vmatprep.subr.bf16.mxu0 %v2964
    %3204 = vmatpush1.bf16.msra.mxu0 %v2963
    %3205 = vmatprep.subr.bf16.mxu0 %v2971
    %3206 = vmatpush1.bf16.msra.mxu0 %v2970
    %3207 = vmatprep.subr.bf16.mxu0 %v2978
    %3208 = vmatpush1.bf16.msra.mxu0 %v2977
    %3209 = vmatprep.subr.bf16.mxu0 %v2985
    %3210 = vmatpush1.bf16.msra.mxu0 %v2984
    %3211 = vmatprep.subr.bf16.mxu0 %v2992
    %3212 = vmatpush1.bf16.msra.mxu0 %v2991
    %3213 = vmatprep.subr.bf16.mxu0 %v2999
    %3214 = vmatpush1.bf16.msra.mxu0 %v2998
    %3215 = vmatprep.subr.bf16.mxu0 %v3006
    %3216 = vmatpush1.bf16.msra.mxu0 %v3005
    %3217 = vmatprep.subr.bf16.mxu0 %v3013
    %3218 = vmatpush1.bf16.msra.mxu0 %v3012
    %3219 = vmatprep.subr.bf16.mxu0 %v3020
    %3220 = vmatpush1.bf16.msra.mxu0 %v3019
    %3221 = vmatprep.subr.bf16.mxu0 %v3027
    %3222 = vmatpush1.bf16.msra.mxu0 %v3026
    %3223 = vmatprep.mubr.bf16.mxu0 %v2806
    %3224 = vmatmul.mubr.bf16.gmra.mrb[0].mxu0 %v2805
    %v3225 = vpop.f32.mrb[0].mxu0
    %v3226 = vadd.f32 %v3185, %v3225
    %v3227 = vpop.f32.mrb[0].mxu0
    %v3228 = vadd.f32 %v3187, %v3227
    %v3229 = vpop.f32.mrb[0].mxu0
    %v3230 = vpop.f32.mrb[0].mxu0
    %3231 = vdwg.mxu0
    %3232 = vmatprep.subr.bf16.mxu0 %v2812
    %3233 = vmatpush1.bf16.msra.mxu0 %v2811
    %3234 = vmatprep.subr.bf16.mxu0 %v2819
    %3235 = vmatpush1.bf16.msra.mxu0 %v2818
    %3236 = vmatprep.subr.bf16.mxu0 %v2826
    %3237 = vmatpush1.bf16.msra.mxu0 %v2825
    %3238 = vmatprep.subr.bf16.mxu0 %v2833
    %3239 = vmatpush1.bf16.msra.mxu0 %v2832
    %3240 = vmatprep.subr.bf16.mxu0 %v2840
    %3241 = vmatpush1.bf16.msra.mxu0 %v2839
    %3242 = vmatprep.subr.bf16.mxu0 %v2847
    %3243 = vmatpush1.bf16.msra.mxu0 %v2846
    %3244 = vmatprep.subr.bf16.mxu0 %v2854
    %3245 = vmatpush1.bf16.msra.mxu0 %v2853
    %3246 = vmatprep.subr.bf16.mxu0 %v2861
    %3247 = vmatpush1.bf16.msra.mxu0 %v2860
    %3248 = vmatprep.subr.bf16.mxu0 %v2868
    %3249 = vmatpush1.bf16.msra.mxu0 %v2867
    %3250 = vmatprep.subr.bf16.mxu0 %v2875
    %3251 = vmatpush1.bf16.msra.mxu0 %v2874
    %3252 = vmatprep.subr.bf16.mxu0 %v2882
    %3253 = vmatpush1.bf16.msra.mxu0 %v2881
    %3254 = vmatprep.subr.bf16.mxu0 %v2889
    %3255 = vmatpush1.bf16.msra.mxu0 %v2888
    %3256 = vmatprep.subr.bf16.mxu0 %v2896
    %3257 = vmatpush1.bf16.msra.mxu0 %v2895
    %3258 = vmatprep.subr.bf16.mxu0 %v2903
    %3259 = vmatpush1.bf16.msra.mxu0 %v2902
    %3260 = vmatprep.subr.bf16.mxu0 %v2910
    %3261 = vmatpush1.bf16.msra.mxu0 %v2909
    %3262 = vmatprep.subr.bf16.mxu0 %v2917
    %3263 = vmatpush1.bf16.msra.mxu0 %v2916
    %3264 = vmatprep.mubr.bf16.mxu0 %v2804
    %3265 = vmatmul.mubr.bf16.gmra.mrb[0].mxu0 %v2803
    %v3266 = vpop.f32.mrb[0].mxu0
    %v3267 = vadd.f32 %v3052, %v3266
    %v3268 = vpop.f32.mrb[0].mxu0
    %v3269 = vadd.f32 %v3056, %v3268
    %v3270 = vpop.f32.mrb[0].mxu0
    %v3271 = vpop.f32.mrb[0].mxu0
    %3272 = vdwg.mxu0
    %3273 = vmatprep.subr.bf16.mxu0 %v2924
    %3274 = vmatpush1.bf16.msra.mxu0 %v2923
    %3275 = vmatprep.subr.bf16.mxu0 %v2931
    %3276 = vmatpush1.bf16.msra.mxu0 %v2930
    %3277 = vmatprep.subr.bf16.mxu0 %v2938
    %3278 = vmatpush1.bf16.msra.mxu0 %v2937
    %3279 = vmatprep.subr.bf16.mxu0 %v2945
    %3280 = vmatpush1.bf16.msra.mxu0 %v2944
    %3281 = vmatprep.subr.bf16.mxu0 %v2952
    %3282 = vmatpush1.bf16.msra.mxu0 %v2951
    %3283 = vmatprep.subr.bf16.mxu0 %v2959
    %3284 = vmatpush1.bf16.msra.mxu0 %v2958
    %3285 = vmatprep.subr.bf16.mxu0 %v2966
    %3286 = vmatpush1.bf16.msra.mxu0 %v2965
    %3287 = vmatprep.subr.bf16.mxu0 %v2973
    %3288 = vmatpush1.bf16.msra.mxu0 %v2972
    %3289 = vmatprep.subr.bf16.mxu0 %v2980
    %3290 = vmatpush1.bf16.msra.mxu0 %v2979
    %3291 = vmatprep.subr.bf16.mxu0 %v2987
    %3292 = vmatpush1.bf16.msra.mxu0 %v2986
    %3293 = vmatprep.subr.bf16.mxu0 %v2994
    %3294 = vmatpush1.bf16.msra.mxu0 %v2993
    %3295 = vmatprep.subr.bf16.mxu0 %v3001
    %3296 = vmatpush1.bf16.msra.mxu0 %v3000
    %3297 = vmatprep.subr.bf16.mxu0 %v3008
    %3298 = vmatpush1.bf16.msra.mxu0 %v3007
    %3299 = vmatprep.subr.bf16.mxu0 %v3015
    %3300 = vmatpush1.bf16.msra.mxu0 %v3014
    %3301 = vmatprep.subr.bf16.mxu0 %v3022
    %3302 = vmatpush1.bf16.msra.mxu0 %v3021
    %3303 = vmatprep.subr.bf16.mxu0 %v3029
    %3304 = vmatpush1.bf16.msra.mxu0 %v3028
    %3305 = vmatprep.mubr.bf16.mxu0 %v2806
    %3306 = vmatmul.mubr.bf16.gmra.mrb[0].mxu0 %v2805
    %v3307 = vpop.f32.mrb[0].mxu0
    %v3308 = vadd.f32 %v3267, %v3307
    %v3309 = vpop.f32.mrb[0].mxu0
    %v3310 = vadd.f32 %v3269, %v3309
    %v3311 = vpop.f32.mrb[0].mxu0
    %v3312 = vpop.f32.mrb[0].mxu0
    %3313 = vdwg.mxu0
    %3314 = vmatprep.subr.bf16.mxu0 0
    %3315 = vmatpush1.bf16.msra.mxu0 %v2813
    %3316 = vmatprep.subr.bf16.mxu0 0
    %3317 = vmatpush1.bf16.msra.mxu0 %v2820
    %3318 = vmatprep.subr.bf16.mxu0 0
    %3319 = vmatpush1.bf16.msra.mxu0 %v2827
    %3320 = vmatprep.subr.bf16.mxu0 0
    %3321 = vmatpush1.bf16.msra.mxu0 %v2834
    %3322 = vmatprep.subr.bf16.mxu0 0
    %3323 = vmatpush1.bf16.msra.mxu0 %v2841
    %3324 = vmatprep.subr.bf16.mxu0 0
    %3325 = vmatpush1.bf16.msra.mxu0 %v2848
    %3326 = vmatprep.subr.bf16.mxu0 0
    %3327 = vmatpush1.bf16.msra.mxu0 %v2855
    %3328 = vmatprep.subr.bf16.mxu0 0
    %3329 = vmatpush1.bf16.msra.mxu0 %v2862
    %3330 = vmatprep.subr.bf16.mxu0 0
    %3331 = vmatpush1.bf16.msra.mxu0 %v2869
    %3332 = vmatprep.subr.bf16.mxu0 0
    %3333 = vmatpush1.bf16.msra.mxu0 %v2876
    %3334 = vmatprep.subr.bf16.mxu0 0
    %3335 = vmatpush1.bf16.msra.mxu0 %v2883
    %3336 = vmatprep.subr.bf16.mxu0 0
    %3337 = vmatpush1.bf16.msra.mxu0 %v2890
    %3338 = vmatprep.subr.bf16.mxu0 0
    %3339 = vmatpush1.bf16.msra.mxu0 %v2897
    %3340 = vmatprep.subr.bf16.mxu0 0
    %3341 = vmatpush1.bf16.msra.mxu0 %v2904
    %3342 = vmatprep.subr.bf16.mxu0 0
    %3343 = vmatpush1.bf16.msra.mxu0 %v2911
    %3344 = vmatprep.subr.bf16.mxu0 0
    %3345 = vmatpush1.bf16.msra.mxu0 %v2918
    %3346 = vmatprep.mubr.bf16.mxu0 %v2804
    %3347 = vmatmul.mubr.bf16.gmra.mrb[0].mxu0 %v2803
    %v3348 = vpop.f32.mrb[0].mxu0
    %v3349 = vadd.f32 %v3060, %v3348
    %v3350 = vpop.f32.mrb[0].mxu0
    %v3351 = vpop.f32.mrb[0].mxu0
    %v3352 = vpop.f32.mrb[0].mxu0
    %3353 = vdwg.mxu0
    %3354 = vmatprep.subr.bf16.mxu0 0
    %3355 = vmatpush1.bf16.msra.mxu0 %v2925
    %3356 = vmatprep.subr.bf16.mxu0 0
    %3357 = vmatpush1.bf16.msra.mxu0 %v2932
    %3358 = vmatprep.subr.bf16.mxu0 0
    %3359 = vmatpush1.bf16.msra.mxu0 %v2939
    %3360 = vmatprep.subr.bf16.mxu0 0
    %3361 = vmatpush1.bf16.msra.mxu0 %v2946
    %3362 = vmatprep.subr.bf16.mxu0 0
    %3363 = vmatpush1.bf16.msra.mxu0 %v2953
    %3364 = vmatprep.subr.bf16.mxu0 0
    %3365 = vmatpush1.bf16.msra.mxu0 %v2960
    %3366 = vmatprep.subr.bf16.mxu0 0
    %3367 = vmatpush1.bf16.msra.mxu0 %v2967
    %3368 = vmatprep.subr.bf16.mxu0 0
    %3369 = vmatpush1.bf16.msra.mxu0 %v2974
    %3370 = vmatprep.subr.bf16.mxu0 0
    %3371 = vmatpush1.bf16.msra.mxu0 %v2981
    %3372 = vmatprep.subr.bf16.mxu0 0
    %3373 = vmatpush1.bf16.msra.mxu0 %v2988
    %3374 = vmatprep.subr.bf16.mxu0 0
    %3375 = vmatpush1.bf16.msra.mxu0 %v2995
    %3376 = vmatprep.subr.bf16.mxu0 0
    %3377 = vmatpush1.bf16.msra.mxu0 %v3002
    %3378 = vmatprep.subr.bf16.mxu0 0
    %3379 = vmatpush1.bf16.msra.mxu0 %v3009
    %3380 = vmatprep.subr.bf16.mxu0 0
    %3381 = vmatpush1.bf16.msra.mxu0 %v3016
    %3382 = vmatprep.subr.bf16.mxu0 0
    %3383 = vmatpush1.bf16.msra.mxu0 %v3023
    %3384 = vmatprep.subr.bf16.mxu0 0
    %3385 = vmatpush1.bf16.msra.mxu0 %v3030
    %3386 = vmatprep.mubr.bf16.mxu0 %v2806
    %3387 = vmatmul.mubr.bf16.gmra.mrb[0].mxu0 %v2805
    %v3388 = vpop.f32.mrb[0].mxu0
    %v3389 = vadd.f32 %v3349, %v3388
    %v3390 = vpop.f32.mrb[0].mxu0
    %v3391 = vpop.f32.mrb[0].mxu0
    %v3392 = vpop.f32.mrb[0].mxu0
    %3393 = vdwg.mxu0
    %v3394 = vtanh.pop %v3144
    %v3395 = vtanh.pop %v3146
    %v3396 = vtanh.pop %v3226
    %v3397 = vtanh.pop %v3228
    %v3398 = vtanh.pop %v3308
    %v3399 = vtanh.pop %v3310
    %v3400 = vtanh.pop %v3389
    %3401 = vst [vmem:[#allocation4] sm:$0xff] %v3394
    %3402 = vst [vmem:[#allocation4 + $0x8] sm:$0xff] %v3395
    %3403 = vst [vmem:[#allocation4 + $0x10] sm:$0xff] %v3396
    %3404 = vst [vmem:[#allocation4 + $0x18] sm:$0xff] %v3397
    %3405 = vst [vmem:[#allocation4 + $0x20] sm:$0xff] %v3398
    %3406 = vst [vmem:[#allocation4 + $0x28] sm:$0xff] %v3399
    %vm3407 = vcmask 130048
    %3408 = vst.msk [vmem:[#allocation4 + $0x30] sm:$0xff] %vm3407, %v3400
    // Predicated region
    $region79: #{tpu_custom_call.1} parent=1 // pred_check
      _
    $region80: #{tpu_custom_call.1} parent=1 // pred_check_branch
      %3410 = sbr.rel (0) target = $region82
    $region81: #{tpu_custom_call.1} parent=1 // pred_region
      %s3412 = ssub.s32 896, 896
      %3413 = vsyncadd [#allocation5], %s3412
      %s3415 = sshll.u32 [#allocation4], 4
      %s3416 = int_to_ptr.vmem [resolvable:$true] %s3415
      %3418 = dma.vmem_to_hbm [thread:$0]  %s3416, 896, %s11, [#allocation5]
    $region82: #{tpu_custom_call.1} parent=1 // pred_fallthru
      _
    // Predicated region
    $region83: #{tpu_custom_call.1} parent=1 // pred_check
      _
    $region84: #{tpu_custom_call.1} parent=1 // pred_check_branch
      %3420 = sbr.rel (0) target = $region86
    $region85: #{tpu_custom_call.1} parent=1 // pred_region
      %3421 = dma.done [#allocation5], 896
    $region86: #{tpu_custom_call.1} parent=1 // pred_fallthru
      _
    %3422 = vsyncpa [#allocation5], 1
  %3423 = vsyncmov [#allocation3]
  %s3424 = vpop.sfrf %3423
  %p3425 = scmp.eq.s32.totalorder %s3424, 0
  %p3426 = pneg %p3425
  %3428 = shalt.err (%p3426)

</llo_original>
